<compile_context>
chip_gen: v7x
topology: tpu7x:2x2x1
jax: 0.10.0
libtpu: 0.0.40
codegen_flags: <defaults>
</compile_context>

<pallas_src>
import functools

import jax
import jax.numpy as jnp
from jax.experimental import pallas as pl
from jax.experimental.pallas import tpu as pltpu

BN_EPS = 1e-5  # nn.BatchNorm2d default


def _round_up(x, mult):
    return ((x + mult - 1) // mult) * mult


def _vmem_capacity_bytes():
    """Generation-aware VMEM capacity (falls back to the smallest, v7x)."""
    try:
        return int(pltpu.get_tpu_info().vmem_capacity_bytes)
    except Exception:
        return 64 * 1024 * 1024


def _choose_rows_block(m_total, c_pad, budget_bytes):
    """Largest lane-dense row tile for the elementwise pass that divides
    m_total and whose double-buffered (bf16 in + f32 out) working set fits the
    budget.  Multiples of 16 preferred (bf16 sublane packing)."""
    per_row = c_pad * (2 + 4) * 2          # bf16 in + f32 out, double-buffered
    cap = max(8, budget_bytes // per_row)
    for tm in (8192, 4096, 2048, 1024, 512, 256, 128, 64, 32, 16, 8):
        if tm <= cap and m_total % tm == 0:
            return tm
    return m_total                          # full-extent block is always legal


# ---------------------------------------------------------------------------
# Pass 1: direct dilated conv (K*K shifted matmuls) + per-image BN statistics.
# ---------------------------------------------------------------------------
def _make_conv_stats_kernel(k, hw, offsets):
    """k: kernel size (1 or 3); hw = H*W; offsets: static per-tap flat shifts
    into the H-padded, row-flattened image."""
    kk = k * k

    def kernel(x_ref, w_ref, *refs):
        # x_ref : (Lp, C_in)      bf16  (whole padded flattened image, VMEM)
        # w_ref : (kk, C_in, Cp)  bf16  (resident weight taps)
        # mask  : (2, HW, 1)      f32   (only for k == 3)
        # y_ref : (HW, Cp)        bf16
        # sum/sumsq : (1, Cp)     f32   (per-image partials)
        # acc_ref   : (HW, Cp)    f32   VMEM scratch accumulator
        if k == 3:
            mask_ref = refs[0]
            y_ref, sum_ref, sumsq_ref, acc_ref = refs[1:]
        else:
            mask_ref = None
            y_ref, sum_ref, sumsq_ref, acc_ref = refs

        for t in range(kk):
            xs = x_ref[pl.ds(offsets[t], hw), :]                  # (HW, C_in)
            contrib = jnp.dot(xs, w_ref[t],
                              preferred_element_type=jnp.float32)  # MXU
            if k == 3:
                kw_ = t % k
                if kw_ == 0:                 # left taps: invalid where w < r
                    contrib = contrib * mask_ref[0]
                elif kw_ == k - 1:           # right taps: invalid where w >= W-r
                    contrib = contrib * mask_ref[1]
            if t == 0:
                acc_ref[...] = contrib
            else:
                acc_ref[...] += contrib

        acc = acc_ref[...]
        y_ref[...] = acc.astype(y_ref.dtype)                      # bf16 Y
        # Stats from the f32 accumulator (padded channels have zero weight ->
        # contribute nothing).  Single cross-sublane reduce per image.
        sum_ref[...] = jnp.sum(acc, axis=0, keepdims=True)
        sumsq_ref[...] = jnp.sum(acc * acc, axis=0, keepdims=True)

    return kernel


# ---------------------------------------------------------------------------
# Pass 2: folded BatchNorm (per-channel scale/shift) + ReLU, lane-dense tiles.
# ---------------------------------------------------------------------------
def _bn_relu_kernel(y_ref, scale_ref, shift_ref, o_ref):
    y = y_ref[...].astype(jnp.float32)
    o_ref[...] = jnp.maximum(y * scale_ref[...] + shift_ref[...], 0.0)


@functools.partial(jax.jit, static_argnames=("rate",))
def aspp_module_forward(x, conv_weight, bn_gamma, bn_beta, *, rate):
    """Forward of ASPP_module.

    x           : (N, C_in, H, W)        f32  (NCHW, like PyTorch)
    conv_weight : (C_out, C_in, kH, kW)  f32
    bn_gamma    : (C_out,)               f32
    bn_beta     : (C_out,)               f32
    returns     : (N, C_out, H, W)       f32
    """
    n, c_in, h, w = x.shape
    c_out, c_in2, kh_, kw_ = conv_weight.shape
    assert c_in2 == c_in
    if rate == 1:
        k = 1
    else:
        k = 3
    assert kh_ == k and kw_ == k
    r = rate
    kk = k * k
    hw = h * w
    m_total = n * hw
    c_pad = _round_up(c_out, 128)           # lane-dense output channels

    # --- XLA-side layout prep (a couple of x-sized copies; no im2col slab) ---
    x_nhwc = jnp.transpose(x, (0, 2, 3, 1)).astype(jnp.bfloat16)   # (N,H,W,C)
    if k == 3:
        xp = jnp.pad(x_nhwc, ((0, 0), (r, r), (0, 0), (0, 0)))     # pad H only
        xf = xp.reshape(n, (h + 2 * r) * w, c_in)
        xf = jnp.pad(xf, ((0, 0), (r, r), (0, 0)))                 # guard rows
        lp = (h + 2 * r) * w + 2 * r
        # tap (kh,kw) reads Xf[m + off], off = r + kh*r*W + (kw-1)*r (static).
        offsets = tuple(r + kh_i * r * w + (kw_i - 1) * r
                        for kh_i in range(3) for kw_i in range(3))
        w_idx = jnp.arange(hw, dtype=jnp.int32) % w
        mask_lo = (w_idx >= r).astype(jnp.float32).reshape(hw, 1)     # kw == 0
        mask_hi = (w_idx < w - r).astype(jnp.float32).reshape(hw, 1)  # kw == 2
        masks = jnp.stack([mask_lo, mask_hi], axis=0)                 # (2,HW,1)
    else:
        xf = x_nhwc.reshape(n, hw, c_in)
        lp = hw
        offsets = (0,)
        masks = None

    # Weight taps: (k*k, C_in, C_pad) bf16, zero-padded output channels.
    w_taps = jnp.transpose(conv_weight, (2, 3, 1, 0)).reshape(kk, c_in, c_out)
    w_taps = jnp.pad(w_taps.astype(jnp.bfloat16),
                     ((0, 0), (0, 0), (0, c_pad - c_out)))

    vmem_cap = _vmem_capacity_bytes()
    # Double-buffering counted for every BlockSpec operand, incl. the
    # constant-index (resident) weight block.
    est1 = (2 * lp * c_in * 2                 # x block, bf16, double-buffered
            + 2 * kk * c_in * c_pad * 2       # weight, double-buffered
            + 2 * hw * c_pad * 2              # Y out, bf16, double-buffered
            + hw * c_pad * 4                  # f32 accumulator scratch
            + 2 * 2 * hw * 4                  # masks
            + 4 * 2 * c_pad * 4)              # stats outputs
    vmem_limit1 = int(min(0.7 * vmem_cap,
                          max(2 * est1, 32 * 1024 * 1024)))

    in_specs = [
        pl.BlockSpec((None, lp, c_in), lambda i: (i, 0, 0)),       # x image
        pl.BlockSpec((kk, c_in, c_pad), lambda i: (0, 0, 0)),      # weight
    ]
    operands = [xf, w_taps]
    if k == 3:
        in_specs.append(pl.BlockSpec((2, hw, 1), lambda i: (0, 0, 0)))
        operands.append(masks)

    flops = 2 * m_total * kk * c_in * c_pad
    bytes_accessed = (n * lp * c_in * 2 + kk * c_in * c_pad * 2
                      + m_total * c_pad * 2 + 2 * n * c_pad * 4)

    y, ysum, ysq = pl.pallas_call(
        _make_conv_stats_kernel(k, hw, offsets),
        grid=(n,),
        in_specs=in_specs,
        out_specs=(
            pl.BlockSpec((None, hw, c_pad), lambda i: (i, 0, 0)),  # Y bf16
            pl.BlockSpec((None, 1, c_pad), lambda i: (i, 0, 0)),   # per-image
            pl.BlockSpec((None, 1, c_pad), lambda i: (i, 0, 0)),   # partials
        ),
        out_shape=(
            jax.ShapeDtypeStruct((n, hw, c_pad), jnp.bfloat16),
            jax.ShapeDtypeStruct((n, 1, c_pad), jnp.float32),
            jax.ShapeDtypeStruct((n, 1, c_pad), jnp.float32),
        ),
        scratch_shapes=[pltpu.VMEM((hw, c_pad), jnp.float32)],
        compiler_params=pltpu.CompilerParams(
            # One image per grid step; per-image stat partials -> safe to run
            # the dominant matmul pass on both v7x TensorCores.
            dimension_semantics=("parallel",),
            vmem_limit_bytes=vmem_limit1),
        cost_estimate=pl.CostEstimate(flops=int(flops), transcendentals=0,
                                      bytes_accessed=int(bytes_accessed)),
    )(*operands)

    # --- Fold training-mode BatchNorm (biased batch variance) into scale/shift
    inv_m = 1.0 / float(m_total)
    mean = jnp.sum(ysum, axis=0) * inv_m                      # (1, c_pad)
    var = jnp.maximum(jnp.sum(ysq, axis=0) * inv_m - mean * mean, 0.0)
    inv_std = jax.lax.rsqrt(var + BN_EPS)
    gamma_p = jnp.pad(bn_gamma.astype(jnp.float32), (0, c_pad - c_out))
    beta_p = jnp.pad(bn_beta.astype(jnp.float32), (0, c_pad - c_out))
    scale = gamma_p.reshape(1, c_pad) * inv_std
    shift = beta_p.reshape(1, c_pad) - mean * scale

    # --- Pass 2: big, lane-dense elementwise tiles (decoupled from pass 1) ---
    tm2 = _choose_rows_block(m_total, c_pad, vmem_cap // 4)
    vmem_limit2 = int(min(0.7 * vmem_cap,
                          max(4 * tm2 * c_pad * (2 + 4), 32 * 1024 * 1024)))
    y_flat = y.reshape(m_total, c_pad)
    out = pl.pallas_call(
        _bn_relu_kernel,
        grid=(m_total // tm2,),
        in_specs=[
            pl.BlockSpec((tm2, c_pad), lambda i: (i, 0)),
            pl.BlockSpec((1, c_pad), lambda i: (0, 0)),
            pl.BlockSpec((1, c_pad), lambda i: (0, 0)),
        ],
        out_specs=pl.BlockSpec((tm2, c_pad), lambda i: (i, 0)),
        out_shape=jax.ShapeDtypeStruct((m_total, c_pad), jnp.float32),
        compiler_params=pltpu.CompilerParams(
            dimension_semantics=("parallel",),   # megacore on v7x
            vmem_limit_bytes=vmem_limit2),
    )(y_flat, scale, shift)

    out = out[:, :c_out].reshape(n, h, w, c_out)
    return jnp.transpose(out, (0, 3, 1, 2))      # NCHW, like the module


def _reference(x, conv_weight, bn_gamma, bn_beta, rate,
               conv_dtype=jnp.float32, y_store_dtype=None):
    """Pure-JAX reference matching PyTorch forward (training-mode BN).
    y_store_dtype mimics the kernel's bf16 Y storage between conv and BN."""
    padding = 0 if rate == 1 else rate
    y = jax.lax.conv_general_dilated(
        x.astype(conv_dtype), conv_weight.astype(conv_dtype),
        window_strides=(1, 1),
        padding=[(padding, padding), (padding, padding)],
        rhs_dilation=(rate, rate),
        dimension_numbers=("NCHW", "OIHW", "NCHW"),
        preferred_element_type=jnp.float32,
    )
    mean = jnp.mean(y, axis=(0, 2, 3), keepdims=True)
    var = jnp.mean((y - mean) ** 2, axis=(0, 2, 3), keepdims=True)
    if y_store_dtype is not None:
        y = y.astype(y_store_dtype).astype(jnp.float32)
    yn = (y - mean) * jax.lax.rsqrt(var + BN_EPS)
    yn = yn * bn_gamma.reshape(1, -1, 1, 1) + bn_beta.reshape(1, -1, 1, 1)
    return jnp.maximum(yn, 0.0)


if __name__ == "__main__":
    # Small shapes consistent with the module.
    N, C_IN, H, W = 2, 4, 16, 16
    C_OUT = 8
    RATE = 2               # -> kernel_size=3, padding=2, dilation=2
    KSIZE = 1 if RATE == 1 else 3

    key = jax.random.PRNGKey(0)
    kx, kwk = jax.random.split(key)
    x = jax.random.normal(kx, (N, C_IN, H, W), dtype=jnp.float32)

    # Deterministic parameter init mirroring ASPP_module._init_weight():
    #   conv: kaiming_normal_ (fan_in, gain=sqrt(2)); bn: weight=1, bias=0.
    fan_in = C_IN * KSIZE * KSIZE
    std = (2.0 / fan_in) ** 0.5
    conv_weight = std * jax.random.normal(
        kwk, (C_OUT, C_IN, KSIZE, KSIZE), dtype=jnp.float32)
    bn_gamma = jnp.ones((C_OUT,), dtype=jnp.float32)
    bn_beta = jnp.zeros((C_OUT,), dtype=jnp.float32)

    out = aspp_module_forward(x, conv_weight, bn_gamma, bn_beta, rate=RATE)
    out = jax.block_until_ready(out)
    assert out.shape == (N, C_OUT, H, W)

    # Matched-precision reference: bf16 conv inputs, f32 accumulate/BN stats,
    # Y rounded to bf16 before normalization (like the kernel).
    ref_matched = _reference(x, conv_weight, bn_gamma, bn_beta, RATE,
                             conv_dtype=jnp.bfloat16,
                             y_store_dtype=jnp.bfloat16)
    assert jnp.allclose(out, ref_matched, atol=5e-3, rtol=5e-3)

    # Sanity vs the full-f32 PyTorch-equivalent reference (bf16 matmul inputs
    # plus bf16 Y storage introduce ~1% relative error pre-normalization).
    ref_f32 = _reference(x, conv_weight, bn_gamma, bn_beta, RATE)
    assert jnp.allclose(out, ref_f32, atol=5e-2, rtol=5e-2)

    print("KERNEL_OK")
</pallas_src>

<mosaic_0001>
module attributes {stable_mosaic.version = 11 : i64} {
  func.func @kernel(%arg0: i32, %arg1: memref<1x324x4xbf16, #tpu.memory_space<vmem>>, %arg2: memref<9x4x128xbf16, #tpu.memory_space<vmem>>, %arg3: memref<2x256x1xf32, #tpu.memory_space<vmem>>, %arg4: memref<1x256x128xbf16, #tpu.memory_space<vmem>>, %arg5: memref<1x1x128xf32, #tpu.memory_space<vmem>>, %arg6: memref<1x1x128xf32, #tpu.memory_space<vmem>>, %arg7: memref<256x128xf32, #tpu.memory_space<vmem>>) attributes {dimension_semantics = [#tpu.dimension_semantics<parallel>], iteration_bounds = array<i64: 2>, scalar_prefetch = 0 : i64, scratch_operands = 1 : i64, tpu.core_type = #tpu.core_type<tc>, window_params = [{transform_indices = @transform_0, window_bounds = array<i64: 1, 324, 4>}, {pipeline_mode = #tpu.pipeline_mode<synchronous>, transform_indices = @transform_1, window_bounds = array<i64: 9, 4, 128>}, {pipeline_mode = #tpu.pipeline_mode<synchronous>, transform_indices = @transform_2, window_bounds = array<i64: 2, 256, 1>}, {transform_indices = @transform_3, window_bounds = array<i64: 1, 256, 128>}, {transform_indices = @transform_4, window_bounds = array<i64: 1, 1, 128>}, {transform_indices = @transform_5, window_bounds = array<i64: 1, 1, 128>}]} {
    %c0 = arith.constant 0 : index
    %c0_0 = arith.constant 0 : index
    %c0_1 = arith.constant 0 : index
    %0 = vector.load %arg1[%c0, %c0_0, %c0_1] : memref<1x324x4xbf16, #tpu.memory_space<vmem>>, vector<1x256x4xbf16>
    %1 = vector.shape_cast %0 : vector<1x256x4xbf16> to vector<256x4xbf16>
    %c0_2 = arith.constant 0 : index
    %c0_3 = arith.constant 0 : index
    %c0_4 = arith.constant 0 : index
    %2 = vector.load %arg2[%c0_2, %c0_3, %c0_4] : memref<9x4x128xbf16, #tpu.memory_space<vmem>>, vector<1x4x128xbf16>
    %3 = vector.shape_cast %2 : vector<1x4x128xbf16> to vector<4x128xbf16>
    %cst = arith.constant dense<0.000000e+00> : vector<256x128xf32>
    %4 = tpu.matmul %1, %3, %cst {dimension_numbers = #tpu.dot_dimension_numbers<[1], [0], [0], [1], [0, 0, 1, 1], [], []>} : vector<256x4xbf16>, vector<4x128xbf16>, vector<256x128xf32> -> vector<256x128xf32>
    %c0_5 = arith.constant 0 : index
    %c0_6 = arith.constant 0 : index
    %c0_7 = arith.constant 0 : index
    %5 = vector.load %arg3[%c0_5, %c0_6, %c0_7] : memref<2x256x1xf32, #tpu.memory_space<vmem>>, vector<1x256x1xf32>
    %6 = vector.shape_cast %5 : vector<1x256x1xf32> to vector<256x1xf32>
    %7 = vector.broadcast %6 : vector<256x1xf32> to vector<256x128xf32>
    %8 = arith.mulf %4, %7 : vector<256x128xf32>
    %c0_8 = arith.constant 0 : index
    %c0_9 = arith.constant 0 : index
    %9 = vector.load %arg7[%c0_8, %c0_9] : memref<256x128xf32, #tpu.memory_space<vmem>>, vector<256x128xf32>
    tpu.vector_store %arg7[%c0_8, %c0_9], %8 {strides = array<i32>} : memref<256x128xf32, #tpu.memory_space<vmem>>, vector<256x128xf32>,
    %c0_10 = arith.constant 0 : index
    %c2 = arith.constant 2 : index
    %c0_11 = arith.constant 0 : index
    %10 = vector.load %arg1[%c0_10, %c2, %c0_11] : memref<1x324x4xbf16, #tpu.memory_space<vmem>>, vector<1x256x4xbf16>
    %11 = vector.shape_cast %10 : vector<1x256x4xbf16> to vector<256x4xbf16>
    %c1 = arith.constant 1 : index
    %c0_12 = arith.constant 0 : index
    %c0_13 = arith.constant 0 : index
    %12 = vector.load %arg2[%c1, %c0_12, %c0_13] : memref<9x4x128xbf16, #tpu.memory_space<vmem>>, vector<1x4x128xbf16>
    %13 = vector.shape_cast %12 : vector<1x4x128xbf16> to vector<4x128xbf16>
    %cst_14 = arith.constant dense<0.000000e+00> : vector<256x128xf32>
    %14 = tpu.matmul %11, %13, %cst_14 {dimension_numbers = #tpu.dot_dimension_numbers<[1], [0], [0], [1], [0, 0, 1, 1], [], []>} : vector<256x4xbf16>, vector<4x128xbf16>, vector<256x128xf32> -> vector<256x128xf32>
    %c0_15 = arith.constant 0 : index
    %c0_16 = arith.constant 0 : index
    %15 = vector.load %arg7[%c0_15, %c0_16] : memref<256x128xf32, #tpu.memory_space<vmem>>, vector<256x128xf32>
    %16 = arith.addf %15, %14 : vector<256x128xf32>
    %c0_17 = arith.constant 0 : index
    %c0_18 = arith.constant 0 : index
    %17 = vector.load %arg7[%c0_17, %c0_18] : memref<256x128xf32, #tpu.memory_space<vmem>>, vector<256x128xf32>
    tpu.vector_store %arg7[%c0_17, %c0_18], %16 {strides = array<i32>} : memref<256x128xf32, #tpu.memory_space<vmem>>, vector<256x128xf32>,
    %c0_19 = arith.constant 0 : index
    %c4 = arith.constant 4 : index
    %c0_20 = arith.constant 0 : index
    %18 = vector.load %arg1[%c0_19, %c4, %c0_20] : memref<1x324x4xbf16, #tpu.memory_space<vmem>>, vector<1x256x4xbf16>
    %19 = vector.shape_cast %18 : vector<1x256x4xbf16> to vector<256x4xbf16>
    %c2_21 = arith.constant 2 : index
    %c0_22 = arith.constant 0 : index
    %c0_23 = arith.constant 0 : index
    %20 = vector.load %arg2[%c2_21, %c0_22, %c0_23] : memref<9x4x128xbf16, #tpu.memory_space<vmem>>, vector<1x4x128xbf16>
    %21 = vector.shape_cast %20 : vector<1x4x128xbf16> to vector<4x128xbf16>
    %cst_24 = arith.constant dense<0.000000e+00> : vector<256x128xf32>
    %22 = tpu.matmul %19, %21, %cst_24 {dimension_numbers = #tpu.dot_dimension_numbers<[1], [0], [0], [1], [0, 0, 1, 1], [], []>} : vector<256x4xbf16>, vector<4x128xbf16>, vector<256x128xf32> -> vector<256x128xf32>
    %c1_25 = arith.constant 1 : index
    %c0_26 = arith.constant 0 : index
    %c0_27 = arith.constant 0 : index
    %23 = vector.load %arg3[%c1_25, %c0_26, %c0_27] : memref<2x256x1xf32, #tpu.memory_space<vmem>>, vector<1x256x1xf32>
    %24 = vector.shape_cast %23 : vector<1x256x1xf32> to vector<256x1xf32>
    %25 = vector.broadcast %24 : vector<256x1xf32> to vector<256x128xf32>
    %26 = arith.mulf %22, %25 : vector<256x128xf32>
    %c0_28 = arith.constant 0 : index
    %c0_29 = arith.constant 0 : index
    %27 = vector.load %arg7[%c0_28, %c0_29] : memref<256x128xf32, #tpu.memory_space<vmem>>, vector<256x128xf32>
    %28 = arith.addf %27, %26 : vector<256x128xf32>
    %c0_30 = arith.constant 0 : index
    %c0_31 = arith.constant 0 : index
    %29 = vector.load %arg7[%c0_30, %c0_31] : memref<256x128xf32, #tpu.memory_space<vmem>>, vector<256x128xf32>
    tpu.vector_store %arg7[%c0_30, %c0_31], %28 {strides = array<i32>} : memref<256x128xf32, #tpu.memory_space<vmem>>, vector<256x128xf32>,
    %c0_32 = arith.constant 0 : index
    %c32 = arith.constant 32 : index
    %c0_33 = arith.constant 0 : index
    %30 = vector.load %arg1[%c0_32, %c32, %c0_33] : memref<1x324x4xbf16, #tpu.memory_space<vmem>>, vector<1x256x4xbf16>
    %31 = vector.shape_cast %30 : vector<1x256x4xbf16> to vector<256x4xbf16>
    %c3 = arith.constant 3 : index
    %c0_34 = arith.constant 0 : index
    %c0_35 = arith.constant 0 : index
    %32 = vector.load %arg2[%c3, %c0_34, %c0_35] : memref<9x4x128xbf16, #tpu.memory_space<vmem>>, vector<1x4x128xbf16>
    %33 = vector.shape_cast %32 : vector<1x4x128xbf16> to vector<4x128xbf16>
    %cst_36 = arith.constant dense<0.000000e+00> : vector<256x128xf32>
    %34 = tpu.matmul %31, %33, %cst_36 {dimension_numbers = #tpu.dot_dimension_numbers<[1], [0], [0], [1], [0, 0, 1, 1], [], []>} : vector<256x4xbf16>, vector<4x128xbf16>, vector<256x128xf32> -> vector<256x128xf32>
    %c0_37 = arith.constant 0 : index
    %c0_38 = arith.constant 0 : index
    %c0_39 = arith.constant 0 : index
    %35 = vector.load %arg3[%c0_37, %c0_38, %c0_39] : memref<2x256x1xf32, #tpu.memory_space<vmem>>, vector<1x256x1xf32>
    %36 = vector.shape_cast %35 : vector<1x256x1xf32> to vector<256x1xf32>
    %37 = vector.broadcast %36 : vector<256x1xf32> to vector<256x128xf32>
    %38 = arith.mulf %34, %37 : vector<256x128xf32>
    %c0_40 = arith.constant 0 : index
    %c0_41 = arith.constant 0 : index
    %39 = vector.load %arg7[%c0_40, %c0_41] : memref<256x128xf32, #tpu.memory_space<vmem>>, vector<256x128xf32>
    %40 = arith.addf %39, %38 : vector<256x128xf32>
    %c0_42 = arith.constant 0 : index
    %c0_43 = arith.constant 0 : index
    %41 = vector.load %arg7[%c0_42, %c0_43] : memref<256x128xf32, #tpu.memory_space<vmem>>, vector<256x128xf32>
    tpu.vector_store %arg7[%c0_42, %c0_43], %40 {strides = array<i32>} : memref<256x128xf32, #tpu.memory_space<vmem>>, vector<256x128xf32>,
    %c0_44 = arith.constant 0 : index
    %c34 = arith.constant 34 : index
    %c0_45 = arith.constant 0 : index
    %42 = vector.load %arg1[%c0_44, %c34, %c0_45] : memref<1x324x4xbf16, #tpu.memory_space<vmem>>, vector<1x256x4xbf16>
    %43 = vector.shape_cast %42 : vector<1x256x4xbf16> to vector<256x4xbf16>
    %c4_46 = arith.constant 4 : index
    %c0_47 = arith.constant 0 : index
    %c0_48 = arith.constant 0 : index
    %44 = vector.load %arg2[%c4_46, %c0_47, %c0_48] : memref<9x4x128xbf16, #tpu.memory_space<vmem>>, vector<1x4x128xbf16>
    %45 = vector.shape_cast %44 : vector<1x4x128xbf16> to vector<4x128xbf16>
    %cst_49 = arith.constant dense<0.000000e+00> : vector<256x128xf32>
    %46 = tpu.matmul %43, %45, %cst_49 {dimension_numbers = #tpu.dot_dimension_numbers<[1], [0], [0], [1], [0, 0, 1, 1], [], []>} : vector<256x4xbf16>, vector<4x128xbf16>, vector<256x128xf32> -> vector<256x128xf32>
    %c0_50 = arith.constant 0 : index
    %c0_51 = arith.constant 0 : index
    %47 = vector.load %arg7[%c0_50, %c0_51] : memref<256x128xf32, #tpu.memory_space<vmem>>, vector<256x128xf32>
    %48 = arith.addf %47, %46 : vector<256x128xf32>
    %c0_52 = arith.constant 0 : index
    %c0_53 = arith.constant 0 : index
    %49 = vector.load %arg7[%c0_52, %c0_53] : memref<256x128xf32, #tpu.memory_space<vmem>>, vector<256x128xf32>
    tpu.vector_store %arg7[%c0_52, %c0_53], %48 {strides = array<i32>} : memref<256x128xf32, #tpu.memory_space<vmem>>, vector<256x128xf32>,
    %c0_54 = arith.constant 0 : index
    %c36 = arith.constant 36 : index
    %c0_55 = arith.constant 0 : index
    %50 = vector.load %arg1[%c0_54, %c36, %c0_55] : memref<1x324x4xbf16, #tpu.memory_space<vmem>>, vector<1x256x4xbf16>
    %51 = vector.shape_cast %50 : vector<1x256x4xbf16> to vector<256x4xbf16>
    %c5 = arith.constant 5 : index
    %c0_56 = arith.constant 0 : index
    %c0_57 = arith.constant 0 : index
    %52 = vector.load %arg2[%c5, %c0_56, %c0_57] : memref<9x4x128xbf16, #tpu.memory_space<vmem>>, vector<1x4x128xbf16>
    %53 = vector.shape_cast %52 : vector<1x4x128xbf16> to vector<4x128xbf16>
    %cst_58 = arith.constant dense<0.000000e+00> : vector<256x128xf32>
    %54 = tpu.matmul %51, %53, %cst_58 {dimension_numbers = #tpu.dot_dimension_numbers<[1], [0], [0], [1], [0, 0, 1, 1], [], []>} : vector<256x4xbf16>, vector<4x128xbf16>, vector<256x128xf32> -> vector<256x128xf32>
    %c1_59 = arith.constant 1 : index
    %c0_60 = arith.constant 0 : index
    %c0_61 = arith.constant 0 : index
    %55 = vector.load %arg3[%c1_59, %c0_60, %c0_61] : memref<2x256x1xf32, #tpu.memory_space<vmem>>, vector<1x256x1xf32>
    %56 = vector.shape_cast %55 : vector<1x256x1xf32> to vector<256x1xf32>
    %57 = vector.broadcast %56 : vector<256x1xf32> to vector<256x128xf32>
    %58 = arith.mulf %54, %57 : vector<256x128xf32>
    %c0_62 = arith.constant 0 : index
    %c0_63 = arith.constant 0 : index
    %59 = vector.load %arg7[%c0_62, %c0_63] : memref<256x128xf32, #tpu.memory_space<vmem>>, vector<256x128xf32>
    %60 = arith.addf %59, %58 : vector<256x128xf32>
    %c0_64 = arith.constant 0 : index
    %c0_65 = arith.constant 0 : index
    %61 = vector.load %arg7[%c0_64, %c0_65] : memref<256x128xf32, #tpu.memory_space<vmem>>, vector<256x128xf32>
    tpu.vector_store %arg7[%c0_64, %c0_65], %60 {strides = array<i32>} : memref<256x128xf32, #tpu.memory_space<vmem>>, vector<256x128xf32>,
    %c0_66 = arith.constant 0 : index
    %c64 = arith.constant 64 : index
    %c0_67 = arith.constant 0 : index
    %62 = vector.load %arg1[%c0_66, %c64, %c0_67] : memref<1x324x4xbf16, #tpu.memory_space<vmem>>, vector<1x256x4xbf16>
    %63 = vector.shape_cast %62 : vector<1x256x4xbf16> to vector<256x4xbf16>
    %c6 = arith.constant 6 : index
    %c0_68 = arith.constant 0 : index
    %c0_69 = arith.constant 0 : index
    %64 = vector.load %arg2[%c6, %c0_68, %c0_69] : memref<9x4x128xbf16, #tpu.memory_space<vmem>>, vector<1x4x128xbf16>
    %65 = vector.shape_cast %64 : vector<1x4x128xbf16> to vector<4x128xbf16>
    %cst_70 = arith.constant dense<0.000000e+00> : vector<256x128xf32>
    %66 = tpu.matmul %63, %65, %cst_70 {dimension_numbers = #tpu.dot_dimension_numbers<[1], [0], [0], [1], [0, 0, 1, 1], [], []>} : vector<256x4xbf16>, vector<4x128xbf16>, vector<256x128xf32> -> vector<256x128xf32>
    %c0_71 = arith.constant 0 : index
    %c0_72 = arith.constant 0 : index
    %c0_73 = arith.constant 0 : index
    %67 = vector.load %arg3[%c0_71, %c0_72, %c0_73] : memref<2x256x1xf32, #tpu.memory_space<vmem>>, vector<1x256x1xf32>
    %68 = vector.shape_cast %67 : vector<1x256x1xf32> to vector<256x1xf32>
    %69 = vector.broadcast %68 : vector<256x1xf32> to vector<256x128xf32>
    %70 = arith.mulf %66, %69 : vector<256x128xf32>
    %c0_74 = arith.constant 0 : index
    %c0_75 = arith.constant 0 : index
    %71 = vector.load %arg7[%c0_74, %c0_75] : memref<256x128xf32, #tpu.memory_space<vmem>>, vector<256x128xf32>
    %72 = arith.addf %71, %70 : vector<256x128xf32>
    %c0_76 = arith.constant 0 : index
    %c0_77 = arith.constant 0 : index
    %73 = vector.load %arg7[%c0_76, %c0_77] : memref<256x128xf32, #tpu.memory_space<vmem>>, vector<256x128xf32>
    tpu.vector_store %arg7[%c0_76, %c0_77], %72 {strides = array<i32>} : memref<256x128xf32, #tpu.memory_space<vmem>>, vector<256x128xf32>,
    %c0_78 = arith.constant 0 : index
    %c66 = arith.constant 66 : index
    %c0_79 = arith.constant 0 : index
    %74 = vector.load %arg1[%c0_78, %c66, %c0_79] : memref<1x324x4xbf16, #tpu.memory_space<vmem>>, vector<1x256x4xbf16>
    %75 = vector.shape_cast %74 : vector<1x256x4xbf16> to vector<256x4xbf16>
    %c7 = arith.constant 7 : index
    %c0_80 = arith.constant 0 : index
    %c0_81 = arith.constant 0 : index
    %76 = vector.load %arg2[%c7, %c0_80, %c0_81] : memref<9x4x128xbf16, #tpu.memory_space<vmem>>, vector<1x4x128xbf16>
    %77 = vector.shape_cast %76 : vector<1x4x128xbf16> to vector<4x128xbf16>
    %cst_82 = arith.constant dense<0.000000e+00> : vector<256x128xf32>
    %78 = tpu.matmul %75, %77, %cst_82 {dimension_numbers = #tpu.dot_dimension_numbers<[1], [0], [0], [1], [0, 0, 1, 1], [], []>} : vector<256x4xbf16>, vector<4x128xbf16>, vector<256x128xf32> -> vector<256x128xf32>
    %c0_83 = arith.constant 0 : index
    %c0_84 = arith.constant 0 : index
    %79 = vector.load %arg7[%c0_83, %c0_84] : memref<256x128xf32, #tpu.memory_space<vmem>>, vector<256x128xf32>
    %80 = arith.addf %79, %78 : vector<256x128xf32>
    %c0_85 = arith.constant 0 : index
    %c0_86 = arith.constant 0 : index
    %81 = vector.load %arg7[%c0_85, %c0_86] : memref<256x128xf32, #tpu.memory_space<vmem>>, vector<256x128xf32>
    tpu.vector_store %arg7[%c0_85, %c0_86], %80 {strides = array<i32>} : memref<256x128xf32, #tpu.memory_space<vmem>>, vector<256x128xf32>,
    %c0_87 = arith.constant 0 : index
    %c68 = arith.constant 68 : index
    %c0_88 = arith.constant 0 : index
    %82 = vector.load %arg1[%c0_87, %c68, %c0_88] : memref<1x324x4xbf16, #tpu.memory_space<vmem>>, vector<1x256x4xbf16>
    %83 = vector.shape_cast %82 : vector<1x256x4xbf16> to vector<256x4xbf16>
    %c8 = arith.constant 8 : index
    %c0_89 = arith.constant 0 : index
    %c0_90 = arith.constant 0 : index
    %84 = vector.load %arg2[%c8, %c0_89, %c0_90] : memref<9x4x128xbf16, #tpu.memory_space<vmem>>, vector<1x4x128xbf16>
    %85 = vector.shape_cast %84 : vector<1x4x128xbf16> to vector<4x128xbf16>
    %cst_91 = arith.constant dense<0.000000e+00> : vector<256x128xf32>
    %86 = tpu.matmul %83, %85, %cst_91 {dimension_numbers = #tpu.dot_dimension_numbers<[1], [0], [0], [1], [0, 0, 1, 1], [], []>} : vector<256x4xbf16>, vector<4x128xbf16>, vector<256x128xf32> -> vector<256x128xf32>
    %c1_92 = arith.constant 1 : index
    %c0_93 = arith.constant 0 : index
    %c0_94 = arith.constant 0 : index
    %87 = vector.load %arg3[%c1_92, %c0_93, %c0_94] : memref<2x256x1xf32, #tpu.memory_space<vmem>>, vector<1x256x1xf32>
    %88 = vector.shape_cast %87 : vector<1x256x1xf32> to vector<256x1xf32>
    %89 = vector.broadcast %88 : vector<256x1xf32> to vector<256x128xf32>
    %90 = arith.mulf %86, %89 : vector<256x128xf32>
    %c0_95 = arith.constant 0 : index
    %c0_96 = arith.constant 0 : index
    %91 = vector.load %arg7[%c0_95, %c0_96] : memref<256x128xf32, #tpu.memory_space<vmem>>, vector<256x128xf32>
    %92 = arith.addf %91, %90 : vector<256x128xf32>
    %c0_97 = arith.constant 0 : index
    %c0_98 = arith.constant 0 : index
    %93 = vector.load %arg7[%c0_97, %c0_98] : memref<256x128xf32, #tpu.memory_space<vmem>>, vector<256x128xf32>
    tpu.vector_store %arg7[%c0_97, %c0_98], %92 {strides = array<i32>} : memref<256x128xf32, #tpu.memory_space<vmem>>, vector<256x128xf32>,
    %c0_99 = arith.constant 0 : index
    %c0_100 = arith.constant 0 : index
    %94 = vector.load %arg7[%c0_99, %c0_100] : memref<256x128xf32, #tpu.memory_space<vmem>>, vector<256x128xf32>
    %95 = arith.truncf %94 : vector<256x128xf32> to vector<256x128xbf16>
    %c0_101 = arith.constant 0 : index
    %c0_102 = arith.constant 0 : index
    %c0_103 = arith.constant 0 : index
    %96 = vector.load %arg4[%c0_101, %c0_102, %c0_103] : memref<1x256x128xbf16, #tpu.memory_space<vmem>>, vector<1x256x128xbf16>
    %97 = vector.shape_cast %96 : vector<1x256x128xbf16> to vector<256x128xbf16>
    %98 = vector.shape_cast %95 : vector<256x128xbf16> to vector<1x256x128xbf16>
    tpu.vector_store %arg4[%c0_101, %c0_102, %c0_103], %98 {strides = array<i32>} : memref<1x256x128xbf16, #tpu.memory_space<vmem>>, vector<1x256x128xbf16>,
    %cst_104 = arith.constant dense<0.000000e+00> : vector<128xf32>
    %99 = vector.multi_reduction <add>, %94, %cst_104 [0] : vector<256x128xf32> to vector<128xf32>
    %100 = vector.shape_cast %99 : vector<128xf32> to vector<1x128xf32>
    %c0_105 = arith.constant 0 : index
    %c0_106 = arith.constant 0 : index
    %c0_107 = arith.constant 0 : index
    %101 = vector.load %arg5[%c0_105, %c0_106, %c0_107] : memref<1x1x128xf32, #tpu.memory_space<vmem>>, vector<1x1x128xf32>
    %102 = vector.shape_cast %101 : vector<1x1x128xf32> to vector<1x128xf32>
    %103 = vector.shape_cast %100 : vector<1x128xf32> to vector<1x1x128xf32>
    tpu.vector_store %arg5[%c0_105, %c0_106, %c0_107], %103 {strides = array<i32>} : memref<1x1x128xf32, #tpu.memory_space<vmem>>, vector<1x1x128xf32>,
    %104 = arith.mulf %94, %94 : vector<256x128xf32>
    %cst_108 = arith.constant dense<0.000000e+00> : vector<128xf32>
    %105 = vector.multi_reduction <add>, %104, %cst_108 [0] : vector<256x128xf32> to vector<128xf32>
    %106 = vector.shape_cast %105 : vector<128xf32> to vector<1x128xf32>
    %c0_109 = arith.constant 0 : index
    %c0_110 = arith.constant 0 : index
    %c0_111 = arith.constant 0 : index
    %107 = vector.load %arg6[%c0_109, %c0_110, %c0_111] : memref<1x1x128xf32, #tpu.memory_space<vmem>>, vector<1x1x128xf32>
    %108 = vector.shape_cast %107 : vector<1x1x128xf32> to vector<1x128xf32>
    %109 = vector.shape_cast %106 : vector<1x128xf32> to vector<1x1x128xf32>
    tpu.vector_store %arg6[%c0_109, %c0_110, %c0_111], %109 {strides = array<i32>} : memref<1x1x128xf32, #tpu.memory_space<vmem>>, vector<1x1x128xf32>,
    return
  }
  func.func @transform_0(%arg0: i32) -> (i32, i32, i32) {
    %c0_i32 = arith.constant 0 : i32
    %c0_i32_0 = arith.constant 0 : i32
    %c0_i32_1 = arith.constant 0 : i32
    return %arg0, %c0_i32, %c0_i32_0 : i32, i32, i32
  }
  func.func @transform_1(%arg0: i32) -> (i32, i32, i32) {
    %c0_i32 = arith.constant 0 : i32
    %c0_i32_0 = arith.constant 0 : i32
    %c0_i32_1 = arith.constant 0 : i32
    %c0_i32_2 = arith.constant 0 : i32
    return %c0_i32, %c0_i32_0, %c0_i32_1 : i32, i32, i32
  }
  func.func @transform_2(%arg0: i32) -> (i32, i32, i32) {
    %c0_i32 = arith.constant 0 : i32
    %c0_i32_0 = arith.constant 0 : i32
    %c0_i32_1 = arith.constant 0 : i32
    %c0_i32_2 = arith.constant 0 : i32
    return %c0_i32, %c0_i32_0, %c0_i32_1 : i32, i32, i32
  }
  func.func @transform_3(%arg0: i32) -> (i32, i32, i32) {
    %c0_i32 = arith.constant 0 : i32
    %c0_i32_0 = arith.constant 0 : i32
    %c0_i32_1 = arith.constant 0 : i32
    return %arg0, %c0_i32, %c0_i32_0 : i32, i32, i32
  }
  func.func @transform_4(%arg0: i32) -> (i32, i32, i32) {
    %c0_i32 = arith.constant 0 : i32
    %c0_i32_0 = arith.constant 0 : i32
    %c0_i32_1 = arith.constant 0 : i32
    return %arg0, %c0_i32, %c0_i32_0 : i32, i32, i32
  }
  func.func @transform_5(%arg0: i32) -> (i32, i32, i32) {
    %c0_i32 = arith.constant 0 : i32
    %c0_i32_0 = arith.constant 0 : i32
    %c0_i32_1 = arith.constant 0 : i32
    return %arg0, %c0_i32, %c0_i32_0 : i32, i32, i32
  }
}

module attributes {stable_mosaic.version = 11 : i64} {
  func.func @_bn_relu_kernel(%arg0: i32, %arg1: memref<512x128xbf16, #tpu.memory_space<vmem>>, %arg2: memref<1x128xf32, #tpu.memory_space<vmem>>, %arg3: memref<1x128xf32, #tpu.memory_space<vmem>>, %arg4: memref<512x128xf32, #tpu.memory_space<vmem>>) attributes {dimension_semantics = [#tpu.dimension_semantics<parallel>], iteration_bounds = array<i64: 1>, scalar_prefetch = 0 : i64, scratch_operands = 0 : i64, tpu.core_type = #tpu.core_type<tc>, window_params = [{transform_indices = @transform_0, window_bounds = array<i64: 512, 128>}, {pipeline_mode = #tpu.pipeline_mode<synchronous>, transform_indices = @transform_1, window_bounds = array<i64: 1, 128>}, {pipeline_mode = #tpu.pipeline_mode<synchronous>, transform_indices = @transform_2, window_bounds = array<i64: 1, 128>}, {transform_indices = @transform_3, window_bounds = array<i64: 512, 128>}]} {
    %c0 = arith.constant 0 : index
    %c0_0 = arith.constant 0 : index
    %0 = vector.load %arg1[%c0, %c0_0] : memref<512x128xbf16, #tpu.memory_space<vmem>>, vector<512x128xbf16>
    %1 = arith.extf %0 : vector<512x128xbf16> to vector<512x128xf32>
    %c0_1 = arith.constant 0 : index
    %c0_2 = arith.constant 0 : index
    %2 = vector.load %arg2[%c0_1, %c0_2] : memref<1x128xf32, #tpu.memory_space<vmem>>, vector<1x128xf32>
    %3 = vector.broadcast %2 : vector<1x128xf32> to vector<512x128xf32>
    %4 = arith.mulf %1, %3 : vector<512x128xf32>
    %c0_3 = arith.constant 0 : index
    %c0_4 = arith.constant 0 : index
    %5 = vector.load %arg3[%c0_3, %c0_4] : memref<1x128xf32, #tpu.memory_space<vmem>>, vector<1x128xf32>
    %6 = vector.broadcast %5 : vector<1x128xf32> to vector<512x128xf32>
    %7 = arith.addf %4, %6 : vector<512x128xf32>
    %cst = arith.constant 0.000000e+00 : f32
    %8 = vector.broadcast %cst : f32 to vector<512x128xf32>
    %9 = arith.maximumf %7, %8 : vector<512x128xf32>
    %c0_5 = arith.constant 0 : index
    %c0_6 = arith.constant 0 : index
    %10 = vector.load %arg4[%c0_5, %c0_6] : memref<512x128xf32, #tpu.memory_space<vmem>>, vector<512x128xf32>
    tpu.vector_store %arg4[%c0_5, %c0_6], %9 {strides = array<i32>} : memref<512x128xf32, #tpu.memory_space<vmem>>, vector<512x128xf32>,
    return
  }
  func.func @transform_0(%arg0: i32) -> (i32, i32) {
    %c0_i32 = arith.constant 0 : i32
    %c0_i32_0 = arith.constant 0 : i32
    return %arg0, %c0_i32 : i32, i32
  }
  func.func @transform_1(%arg0: i32) -> (i32, i32) {
    %c0_i32 = arith.constant 0 : i32
    %c0_i32_0 = arith.constant 0 : i32
    %c0_i32_1 = arith.constant 0 : i32
    return %c0_i32, %c0_i32_0 : i32, i32
  }
  func.func @transform_2(%arg0: i32) -> (i32, i32) {
    %c0_i32 = arith.constant 0 : i32
    %c0_i32_0 = arith.constant 0 : i32
    %c0_i32_1 = arith.constant 0 : i32
    return %c0_i32, %c0_i32_0 : i32, i32
  }
  func.func @transform_3(%arg0: i32) -> (i32, i32) {
    %c0_i32 = arith.constant 0 : i32
    %c0_i32_0 = arith.constant 0 : i32
    return %arg0, %c0_i32 : i32, i32
  }
}

</mosaic_0001>

<llo_original>
// kernel: aspp_module_forward.3
$region0: #{aspp_module_forward.3}
  #allocation0 [shape = 'u32[]', space=smem, size = 0x4, offset = 0x4, fixed_abs, tag = 'smem constant byte address 0x4 - core index']
  #allocation1 [shape = 'u32[144,128]{1,0:T(1,128)}', space=vmem, size = 0x12000, scoped, tag = 'internal scratch']
  %s0 = inlined_call_operand.vmem [shape: bf16[512,128], index: 0, kind: input, shape index: {}]
  %s1 = inlined_call_operand.vmem [shape: f32[1,128], index: 1, kind: input, shape index: {}]
  %s2 = inlined_call_operand.vmem [shape: f32[1,128], index: 2, kind: input, shape index: {}]
  %s3 = inlined_call_operand.vmem [shape: f32[512,128], index: 3, kind: output, shape index: {}]
  %s4 = sld [smem:[#allocation0]]
  $region22: #{aspp_module_forward.3} parent=0
    _
  %s6 = ssub.s32 1, %s4
  %s7 = scalar_select 0, %s6, %s4
  // Predicated region
  $region2: #{aspp_module_forward.3} parent=0 // pred_check
    _
  $region3: #{aspp_module_forward.3} parent=0 // pred_check_branch
    %9 = sbr.rel (0) target = $region5
  $region4: #{aspp_module_forward.3} parent=0 // pred_region
    _
  $region5: #{aspp_module_forward.3} parent=0 // pred_fallthru
    _
  // Predicated region
  $region6: #{aspp_module_forward.3} parent=0 // pred_check
    _
  $region7: #{aspp_module_forward.3} parent=0 // pred_check_branch
    %11 = sbr.rel (0) target = $region9
  $region8: #{aspp_module_forward.3} parent=0 // pred_region
    _
  $region9: #{aspp_module_forward.3} parent=0 // pred_fallthru
    _
  // Predicated region
  $region10: #{aspp_module_forward.3} parent=0 // pred_check
    _
  $region11: #{aspp_module_forward.3} parent=0 // pred_check_branch
    %13 = sbr.rel (0) target = $region13
  $region12: #{aspp_module_forward.3} parent=0 // pred_region
    _
  $region13: #{aspp_module_forward.3} parent=0 // pred_fallthru
    _
  %v14 = vld [vmem:[%s0] sm:$0xf]
  %v15 = vld [vmem:[%s0 + $0x4] sm:$0xf]
  %v16 = vld [vmem:[%s0 + $0x8] sm:$0xf]
  %v17 = vld [vmem:[%s0 + $0xc] sm:$0xf]
  %v18 = vld [vmem:[%s0 + $0x10] sm:$0xf]
  %v19 = vld [vmem:[%s0 + $0x14] sm:$0xf]
  %v20 = vld [vmem:[%s0 + $0x18] sm:$0xf]
  %v21 = vld [vmem:[%s0 + $0x1c] sm:$0xf]
  %v22 = vld [vmem:[%s0 + $0x20] sm:$0xf]
  %v23 = vld [vmem:[%s0 + $0x24] sm:$0xf]
  %v24 = vld [vmem:[%s0 + $0x28] sm:$0xf]
  %v25 = vld [vmem:[%s0 + $0x2c] sm:$0xf]
  %v26 = vld [vmem:[%s0 + $0x30] sm:$0xf]
  %v27 = vld [vmem:[%s0 + $0x34] sm:$0xf]
  %v28 = vld [vmem:[%s0 + $0x38] sm:$0xf]
  %v29 = vld [vmem:[%s0 + $0x3c] sm:$0xf]
  %v30 = vld [vmem:[%s0 + $0x40] sm:$0xf]
  %v31 = vld [vmem:[%s0 + $0x44] sm:$0xf]
  %v32 = vld [vmem:[%s0 + $0x48] sm:$0xf]
  %v33 = vld [vmem:[%s0 + $0x4c] sm:$0xf]
  %v34 = vld [vmem:[%s0 + $0x50] sm:$0xf]
  %v35 = vld [vmem:[%s0 + $0x54] sm:$0xf]
  %v36 = vld [vmem:[%s0 + $0x58] sm:$0xf]
  %v37 = vld [vmem:[%s0 + $0x5c] sm:$0xf]
  %v38 = vld [vmem:[%s0 + $0x60] sm:$0xf]
  %v39 = vld [vmem:[%s0 + $0x64] sm:$0xf]
  %v40 = vld [vmem:[%s0 + $0x68] sm:$0xf]
  %v41 = vld [vmem:[%s0 + $0x6c] sm:$0xf]
  %v42 = vld [vmem:[%s0 + $0x70] sm:$0xf]
  %v43 = vld [vmem:[%s0 + $0x74] sm:$0xf]
  %v44 = vld [vmem:[%s0 + $0x78] sm:$0xf]
  %v45 = vld [vmem:[%s0 + $0x7c] sm:$0xf]
  %v46 = vld [vmem:[%s0 + $0x80] sm:$0xf]
  %v47 = vld [vmem:[%s0 + $0x84] sm:$0xf]
  %v48 = vld [vmem:[%s0 + $0x88] sm:$0xf]
  %v49 = vld [vmem:[%s0 + $0x8c] sm:$0xf]
  %v50 = vld [vmem:[%s0 + $0x90] sm:$0xf]
  %v51 = vld [vmem:[%s0 + $0x94] sm:$0xf]
  %v52 = vld [vmem:[%s0 + $0x98] sm:$0xf]
  %v53 = vld [vmem:[%s0 + $0x9c] sm:$0xf]
  %v54 = vld [vmem:[%s0 + $0xa0] sm:$0xf]
  %v55 = vld [vmem:[%s0 + $0xa4] sm:$0xf]
  %v56 = vld [vmem:[%s0 + $0xa8] sm:$0xf]
  %v57 = vld [vmem:[%s0 + $0xac] sm:$0xf]
  %v58 = vld [vmem:[%s0 + $0xb0] sm:$0xf]
  %v59 = vld [vmem:[%s0 + $0xb4] sm:$0xf]
  %v60 = vld [vmem:[%s0 + $0xb8] sm:$0xf]
  %v61 = vld [vmem:[%s0 + $0xbc] sm:$0xf]
  %v62 = vld [vmem:[%s0 + $0xc0] sm:$0xf]
  %v63 = vld [vmem:[%s0 + $0xc4] sm:$0xf]
  %v64 = vld [vmem:[%s0 + $0xc8] sm:$0xf]
  %v65 = vld [vmem:[%s0 + $0xcc] sm:$0xf]
  %v66 = vld [vmem:[%s0 + $0xd0] sm:$0xf]
  %v67 = vld [vmem:[%s0 + $0xd4] sm:$0xf]
  %v68 = vld [vmem:[%s0 + $0xd8] sm:$0xf]
  %v69 = vld [vmem:[%s0 + $0xdc] sm:$0xf]
  %v70 = vld [vmem:[%s0 + $0xe0] sm:$0xf]
  %v71 = vld [vmem:[%s0 + $0xe4] sm:$0xf]
  %v72 = vld [vmem:[%s0 + $0xe8] sm:$0xf]
  %v73 = vld [vmem:[%s0 + $0xec] sm:$0xf]
  %v74 = vld [vmem:[%s0 + $0xf0] sm:$0xf]
  %v75 = vld [vmem:[%s0 + $0xf4] sm:$0xf]
  %v76 = vld [vmem:[%s0 + $0xf8] sm:$0xf]
  %v77 = vld [vmem:[%s0 + $0xfc] sm:$0xf]
  %v78 = vunpack.c.l.bf16 %v14
  %v79 = vunpack.c.l.bf16 %v15
  %v80 = vunpack.c.l.bf16 %v16
  %v81 = vunpack.c.l.bf16 %v17
  %v82 = vunpack.c.l.bf16 %v18
  %v83 = vunpack.c.l.bf16 %v19
  %v84 = vunpack.c.l.bf16 %v20
  %v85 = vunpack.c.l.bf16 %v21
  %v86 = vunpack.c.l.bf16 %v22
  %v87 = vunpack.c.l.bf16 %v23
  %v88 = vunpack.c.l.bf16 %v24
  %v89 = vunpack.c.l.bf16 %v25
  %v90 = vunpack.c.l.bf16 %v26
  %v91 = vunpack.c.l.bf16 %v27
  %v92 = vunpack.c.l.bf16 %v28
  %v93 = vunpack.c.l.bf16 %v29
  %v94 = vunpack.c.l.bf16 %v30
  %v95 = vunpack.c.l.bf16 %v31
  %v96 = vunpack.c.l.bf16 %v32
  %v97 = vunpack.c.l.bf16 %v33
  %v98 = vunpack.c.l.bf16 %v34
  %v99 = vunpack.c.l.bf16 %v35
  %v100 = vunpack.c.l.bf16 %v36
  %v101 = vunpack.c.l.bf16 %v37
  %v102 = vunpack.c.l.bf16 %v38
  %v103 = vunpack.c.l.bf16 %v39
  %v104 = vunpack.c.l.bf16 %v40
  %v105 = vunpack.c.l.bf16 %v41
  %v106 = vunpack.c.l.bf16 %v42
  %v107 = vunpack.c.l.bf16 %v43
  %v108 = vunpack.c.l.bf16 %v44
  %v109 = vunpack.c.l.bf16 %v45
  %v110 = vunpack.c.l.bf16 %v46
  %v111 = vunpack.c.l.bf16 %v47
  %v112 = vunpack.c.l.bf16 %v48
  %v113 = vunpack.c.l.bf16 %v49
  %v114 = vunpack.c.l.bf16 %v50
  %v115 = vunpack.c.l.bf16 %v51
  %v116 = vunpack.c.l.bf16 %v52
  %v117 = vunpack.c.l.bf16 %v53
  %v118 = vunpack.c.l.bf16 %v54
  %v119 = vunpack.c.l.bf16 %v55
  %v120 = vunpack.c.l.bf16 %v56
  %v121 = vunpack.c.l.bf16 %v57
  %v122 = vunpack.c.l.bf16 %v58
  %v123 = vunpack.c.l.bf16 %v59
  %v124 = vunpack.c.l.bf16 %v60
  %v125 = vunpack.c.l.bf16 %v61
  %v126 = vunpack.c.l.bf16 %v62
  %v127 = vunpack.c.l.bf16 %v63
  %v128 = vunpack.c.l.bf16 %v64
  %v129 = vunpack.c.l.bf16 %v65
  %v130 = vunpack.c.l.bf16 %v66
  %v131 = vunpack.c.l.bf16 %v67
  %v132 = vunpack.c.l.bf16 %v68
  %v133 = vunpack.c.l.bf16 %v69
  %v134 = vunpack.c.l.bf16 %v70
  %v135 = vunpack.c.l.bf16 %v71
  %v136 = vunpack.c.l.bf16 %v72
  %v137 = vunpack.c.l.bf16 %v73
  %v138 = vunpack.c.l.bf16 %v74
  %v139 = vunpack.c.l.bf16 %v75
  %v140 = vunpack.c.l.bf16 %v76
  %v141 = vunpack.c.l.bf16 %v77
  %v142 = vld [vmem:[%s1] sm:$0x1]
  %v144 = vlaneseq
  %v145 = vshrl.u32 %v144, 7
  %v146 = vsub.s32 0, %v145
  %v147 = vrot.slane %v142, %v146
  %v149 = vmul.f32 %v78, %v147
  %v150 = vmul.f32 %v79, %v147
  %v151 = vmul.f32 %v80, %v147
  %v152 = vmul.f32 %v81, %v147
  %v153 = vmul.f32 %v82, %v147
  %v154 = vmul.f32 %v83, %v147
  %v155 = vmul.f32 %v84, %v147
  %v156 = vmul.f32 %v85, %v147
  %v157 = vmul.f32 %v86, %v147
  %v158 = vmul.f32 %v87, %v147
  %v159 = vmul.f32 %v88, %v147
  %v160 = vmul.f32 %v89, %v147
  %v161 = vmul.f32 %v90, %v147
  %v162 = vmul.f32 %v91, %v147
  %v163 = vmul.f32 %v92, %v147
  %v164 = vmul.f32 %v93, %v147
  %v165 = vmul.f32 %v94, %v147
  %v166 = vmul.f32 %v95, %v147
  %v167 = vmul.f32 %v96, %v147
  %v168 = vmul.f32 %v97, %v147
  %v169 = vmul.f32 %v98, %v147
  %v170 = vmul.f32 %v99, %v147
  %v171 = vmul.f32 %v100, %v147
  %v172 = vmul.f32 %v101, %v147
  %v173 = vmul.f32 %v102, %v147
  %v174 = vmul.f32 %v103, %v147
  %v175 = vmul.f32 %v104, %v147
  %v176 = vmul.f32 %v105, %v147
  %v177 = vmul.f32 %v106, %v147
  %v178 = vmul.f32 %v107, %v147
  %v179 = vmul.f32 %v108, %v147
  %v180 = vmul.f32 %v109, %v147
  %v181 = vmul.f32 %v110, %v147
  %v182 = vmul.f32 %v111, %v147
  %v183 = vmul.f32 %v112, %v147
  %v184 = vmul.f32 %v113, %v147
  %v185 = vmul.f32 %v114, %v147
  %v186 = vmul.f32 %v115, %v147
  %v187 = vmul.f32 %v116, %v147
  %v188 = vmul.f32 %v117, %v147
  %v189 = vmul.f32 %v118, %v147
  %v190 = vmul.f32 %v119, %v147
  %v191 = vmul.f32 %v120, %v147
  %v192 = vmul.f32 %v121, %v147
  %v193 = vmul.f32 %v122, %v147
  %v194 = vmul.f32 %v123, %v147
  %v195 = vmul.f32 %v124, %v147
  %v196 = vmul.f32 %v125, %v147
  %v197 = vmul.f32 %v126, %v147
  %v198 = vmul.f32 %v127, %v147
  %v199 = vmul.f32 %v128, %v147
  %v200 = vmul.f32 %v129, %v147
  %v201 = vmul.f32 %v130, %v147
  %v202 = vmul.f32 %v131, %v147
  %v203 = vmul.f32 %v132, %v147
  %v204 = vmul.f32 %v133, %v147
  %v205 = vmul.f32 %v134, %v147
  %v206 = vmul.f32 %v135, %v147
  %v207 = vmul.f32 %v136, %v147
  %v208 = vmul.f32 %v137, %v147
  %v209 = vmul.f32 %v138, %v147
  %v210 = vmul.f32 %v139, %v147
  %v211 = vmul.f32 %v140, %v147
  %v212 = vmul.f32 %v141, %v147
  %v213 = vld [vmem:[%s2] sm:$0x1]
  %v215 = vlaneseq
  %v216 = vshrl.u32 %v215, 7
  %v217 = vsub.s32 0, %v216
  %v218 = vrot.slane %v213, %v217
  %v220 = vadd.f32 %v149, %v218
  %v221 = vadd.f32 %v150, %v218
  %v222 = vadd.f32 %v151, %v218
  %v223 = vadd.f32 %v152, %v218
  %v224 = vadd.f32 %v153, %v218
  %v225 = vadd.f32 %v154, %v218
  %v226 = vadd.f32 %v155, %v218
  %v227 = vadd.f32 %v156, %v218
  %v228 = vadd.f32 %v157, %v218
  %v229 = vadd.f32 %v158, %v218
  %v230 = vadd.f32 %v159, %v218
  %v231 = vadd.f32 %v160, %v218
  %v232 = vadd.f32 %v161, %v218
  %v233 = vadd.f32 %v162, %v218
  %v234 = vadd.f32 %v163, %v218
  %v235 = vadd.f32 %v164, %v218
  %v236 = vadd.f32 %v165, %v218
  %v237 = vadd.f32 %v166, %v218
  %v238 = vadd.f32 %v167, %v218
  %v239 = vadd.f32 %v168, %v218
  %v240 = vadd.f32 %v169, %v218
  %v241 = vadd.f32 %v170, %v218
  %v242 = vadd.f32 %v171, %v218
  %v243 = vadd.f32 %v172, %v218
  %v244 = vadd.f32 %v173, %v218
  %v245 = vadd.f32 %v174, %v218
  %v246 = vadd.f32 %v175, %v218
  %v247 = vadd.f32 %v176, %v218
  %v248 = vadd.f32 %v177, %v218
  %v249 = vadd.f32 %v178, %v218
  %v250 = vadd.f32 %v179, %v218
  %v251 = vadd.f32 %v180, %v218
  %v252 = vadd.f32 %v181, %v218
  %v253 = vadd.f32 %v182, %v218
  %v254 = vadd.f32 %v183, %v218
  %v255 = vadd.f32 %v184, %v218
  %v256 = vadd.f32 %v185, %v218
  %v257 = vadd.f32 %v186, %v218
  %v258 = vadd.f32 %v187, %v218
  %v259 = vadd.f32 %v188, %v218
  %v260 = vadd.f32 %v189, %v218
  %v261 = vadd.f32 %v190, %v218
  %v262 = vadd.f32 %v191, %v218
  %v263 = vadd.f32 %v192, %v218
  %v264 = vadd.f32 %v193, %v218
  %v265 = vadd.f32 %v194, %v218
  %v266 = vadd.f32 %v195, %v218
  %v267 = vadd.f32 %v196, %v218
  %v268 = vadd.f32 %v197, %v218
  %v269 = vadd.f32 %v198, %v218
  %v270 = vadd.f32 %v199, %v218
  %v271 = vadd.f32 %v200, %v218
  %v272 = vadd.f32 %v201, %v218
  %v273 = vadd.f32 %v202, %v218
  %v274 = vadd.f32 %v203, %v218
  %v275 = vadd.f32 %v204, %v218
  %v276 = vadd.f32 %v205, %v218
  %v277 = vadd.f32 %v206, %v218
  %v278 = vadd.f32 %v207, %v218
  %v279 = vadd.f32 %v208, %v218
  %v280 = vadd.f32 %v209, %v218
  %v281 = vadd.f32 %v210, %v218
  %v282 = vadd.f32 %v211, %v218
  %v283 = vadd.f32 %v212, %v218
  %v284 = vmax.f32 %v220, 0.0
  %v285 = vmax.f32 %v221, 0.0
  %v286 = vmax.f32 %v222, 0.0
  %v287 = vmax.f32 %v223, 0.0
  %v288 = vmax.f32 %v224, 0.0
  %v289 = vmax.f32 %v225, 0.0
  %v290 = vmax.f32 %v226, 0.0
  %v291 = vmax.f32 %v227, 0.0
  %v292 = vmax.f32 %v228, 0.0
  %v293 = vmax.f32 %v229, 0.0
  %v294 = vmax.f32 %v230, 0.0
  %v295 = vmax.f32 %v231, 0.0
  %v296 = vmax.f32 %v232, 0.0
  %v297 = vmax.f32 %v233, 0.0
  %v298 = vmax.f32 %v234, 0.0
  %v299 = vmax.f32 %v235, 0.0
  %v300 = vmax.f32 %v236, 0.0
  %v301 = vmax.f32 %v237, 0.0
  %v302 = vmax.f32 %v238, 0.0
  %v303 = vmax.f32 %v239, 0.0
  %v304 = vmax.f32 %v240, 0.0
  %v305 = vmax.f32 %v241, 0.0
  %v306 = vmax.f32 %v242, 0.0
  %v307 = vmax.f32 %v243, 0.0
  %v308 = vmax.f32 %v244, 0.0
  %v309 = vmax.f32 %v245, 0.0
  %v310 = vmax.f32 %v246, 0.0
  %v311 = vmax.f32 %v247, 0.0
  %v312 = vmax.f32 %v248, 0.0
  %v313 = vmax.f32 %v249, 0.0
  %v314 = vmax.f32 %v250, 0.0
  %v315 = vmax.f32 %v251, 0.0
  %v316 = vmax.f32 %v252, 0.0
  %v317 = vmax.f32 %v253, 0.0
  %v318 = vmax.f32 %v254, 0.0
  %v319 = vmax.f32 %v255, 0.0
  %v320 = vmax.f32 %v256, 0.0
  %v321 = vmax.f32 %v257, 0.0
  %v322 = vmax.f32 %v258, 0.0
  %v323 = vmax.f32 %v259, 0.0
  %v324 = vmax.f32 %v260, 0.0
  %v325 = vmax.f32 %v261, 0.0
  %v326 = vmax.f32 %v262, 0.0
  %v327 = vmax.f32 %v263, 0.0
  %v328 = vmax.f32 %v264, 0.0
  %v329 = vmax.f32 %v265, 0.0
  %v330 = vmax.f32 %v266, 0.0
  %v331 = vmax.f32 %v267, 0.0
  %v332 = vmax.f32 %v268, 0.0
  %v333 = vmax.f32 %v269, 0.0
  %v334 = vmax.f32 %v270, 0.0
  %v335 = vmax.f32 %v271, 0.0
  %v336 = vmax.f32 %v272, 0.0
  %v337 = vmax.f32 %v273, 0.0
  %v338 = vmax.f32 %v274, 0.0
  %v339 = vmax.f32 %v275, 0.0
  %v340 = vmax.f32 %v276, 0.0
  %v341 = vmax.f32 %v277, 0.0
  %v342 = vmax.f32 %v278, 0.0
  %v343 = vmax.f32 %v279, 0.0
  %v344 = vmax.f32 %v280, 0.0
  %v345 = vmax.f32 %v281, 0.0
  %v346 = vmax.f32 %v282, 0.0
  %v347 = vmax.f32 %v283, 0.0
  %348 = vst [vmem:[%s3] sm:$0xff] %v284
  %349 = vst [vmem:[%s3 + $0x8] sm:$0xff] %v285
  %350 = vst [vmem:[%s3 + $0x10] sm:$0xff] %v286
  %351 = vst [vmem:[%s3 + $0x18] sm:$0xff] %v287
  %352 = vst [vmem:[%s3 + $0x20] sm:$0xff] %v288
  %353 = vst [vmem:[%s3 + $0x28] sm:$0xff] %v289
  %354 = vst [vmem:[%s3 + $0x30] sm:$0xff] %v290
  %355 = vst [vmem:[%s3 + $0x38] sm:$0xff] %v291
  %356 = vst [vmem:[%s3 + $0x40] sm:$0xff] %v292
  %357 = vst [vmem:[%s3 + $0x48] sm:$0xff] %v293
  %358 = vst [vmem:[%s3 + $0x50] sm:$0xff] %v294
  %359 = vst [vmem:[%s3 + $0x58] sm:$0xff] %v295
  %360 = vst [vmem:[%s3 + $0x60] sm:$0xff] %v296
  %361 = vst [vmem:[%s3 + $0x68] sm:$0xff] %v297
  %362 = vst [vmem:[%s3 + $0x70] sm:$0xff] %v298
  %363 = vst [vmem:[%s3 + $0x78] sm:$0xff] %v299
  %364 = vst [vmem:[%s3 + $0x80] sm:$0xff] %v300
  %365 = vst [vmem:[%s3 + $0x88] sm:$0xff] %v301
  %366 = vst [vmem:[%s3 + $0x90] sm:$0xff] %v302
  %367 = vst [vmem:[%s3 + $0x98] sm:$0xff] %v303
  %368 = vst [vmem:[%s3 + $0xa0] sm:$0xff] %v304
  %369 = vst [vmem:[%s3 + $0xa8] sm:$0xff] %v305
  %370 = vst [vmem:[%s3 + $0xb0] sm:$0xff] %v306
  %371 = vst [vmem:[%s3 + $0xb8] sm:$0xff] %v307
  %372 = vst [vmem:[%s3 + $0xc0] sm:$0xff] %v308
  %373 = vst [vmem:[%s3 + $0xc8] sm:$0xff] %v309
  %374 = vst [vmem:[%s3 + $0xd0] sm:$0xff] %v310
  %375 = vst [vmem:[%s3 + $0xd8] sm:$0xff] %v311
  %376 = vst [vmem:[%s3 + $0xe0] sm:$0xff] %v312
  %377 = vst [vmem:[%s3 + $0xe8] sm:$0xff] %v313
  %378 = vst [vmem:[%s3 + $0xf0] sm:$0xff] %v314
  %379 = vst [vmem:[%s3 + $0xf8] sm:$0xff] %v315
  %380 = vst [vmem:[%s3 + $0x100] sm:$0xff] %v316
  %381 = vst [vmem:[%s3 + $0x108] sm:$0xff] %v317
  %382 = vst [vmem:[%s3 + $0x110] sm:$0xff] %v318
  %383 = vst [vmem:[%s3 + $0x118] sm:$0xff] %v319
  %384 = vst [vmem:[%s3 + $0x120] sm:$0xff] %v320
  %385 = vst [vmem:[%s3 + $0x128] sm:$0xff] %v321
  %386 = vst [vmem:[%s3 + $0x130] sm:$0xff] %v322
  %387 = vst [vmem:[%s3 + $0x138] sm:$0xff] %v323
  %388 = vst [vmem:[%s3 + $0x140] sm:$0xff] %v324
  %389 = vst [vmem:[%s3 + $0x148] sm:$0xff] %v325
  %390 = vst [vmem:[%s3 + $0x150] sm:$0xff] %v326
  %391 = vst [vmem:[%s3 + $0x158] sm:$0xff] %v327
  %392 = vst [vmem:[%s3 + $0x160] sm:$0xff] %v328
  %393 = vst [vmem:[%s3 + $0x168] sm:$0xff] %v329
  %394 = vst [vmem:[%s3 + $0x170] sm:$0xff] %v330
  %395 = vst [vmem:[%s3 + $0x178] sm:$0xff] %v331
  %396 = vst [vmem:[%s3 + $0x180] sm:$0xff] %v332
  %397 = vst [vmem:[%s3 + $0x188] sm:$0xff] %v333
  %398 = vst [vmem:[%s3 + $0x190] sm:$0xff] %v334
  %399 = vst [vmem:[%s3 + $0x198] sm:$0xff] %v335
  %400 = vst [vmem:[%s3 + $0x1a0] sm:$0xff] %v336
  %401 = vst [vmem:[%s3 + $0x1a8] sm:$0xff] %v337
  %402 = vst [vmem:[%s3 + $0x1b0] sm:$0xff] %v338
  %403 = vst [vmem:[%s3 + $0x1b8] sm:$0xff] %v339
  %404 = vst [vmem:[%s3 + $0x1c0] sm:$0xff] %v340
  %405 = vst [vmem:[%s3 + $0x1c8] sm:$0xff] %v341
  %406 = vst [vmem:[%s3 + $0x1d0] sm:$0xff] %v342
  %407 = vst [vmem:[%s3 + $0x1d8] sm:$0xff] %v343
  %408 = vst [vmem:[%s3 + $0x1e0] sm:$0xff] %v344
  %409 = vst [vmem:[%s3 + $0x1e8] sm:$0xff] %v345
  %410 = vst [vmem:[%s3 + $0x1f0] sm:$0xff] %v346
  %411 = vst [vmem:[%s3 + $0x1f8] sm:$0xff] %v347
  // Predicated region
  $region14: #{aspp_module_forward.3} parent=0 // pred_check
    _
  $region15: #{aspp_module_forward.3} parent=0 // pred_check_branch
    %413 = sbr.rel (0) target = $region17
  $region16: #{aspp_module_forward.3} parent=0 // pred_region
    _
  $region17: #{aspp_module_forward.3} parent=0 // pred_fallthru
    _
  // Predicated region
  $region18: #{aspp_module_forward.3} parent=0 // pred_check
    _
  $region19: #{aspp_module_forward.3} parent=0 // pred_check_branch
    %415 = sbr.rel (0) target = $region21
  $region20: #{aspp_module_forward.3} parent=0 // pred_region
    _
  $region21: #{aspp_module_forward.3} parent=0 // pred_fallthru
    _

// kernel: aspp_module_forward.2
$region0: #{aspp_module_forward.2}
  #allocation0 [shape = 'u32[]', space=smem, size = 0x4, offset = 0x4, fixed_abs, tag = 'smem constant byte address 0x4 - core index']
  #allocation1 [shape = 'u32[144,128]{1,0:T(1,128)}', space=vmem, size = 0x12000, scoped, tag = 'internal scratch']
  #allocation2 [shape = 'f32[256,128]{1,0:T(8,128)}', space=vmem, size = 0x20000, scoped, tag = 'scratch operand']
  %s0 = inlined_call_operand.vmem [shape: bf16[2,324,4], index: 0, kind: input, shape index: {}]
  %s1 = inlined_call_operand.vmem [shape: bf16[9,4,128], index: 1, kind: input, shape index: {}]
  %s2 = inlined_call_operand.vmem [shape: f32[2,256,1], index: 2, kind: input, shape index: {}]
  %s3 = inlined_call_operand.vmem [shape: bf16[2,256,128], index: 3, kind: output, shape index: {0}]
  %s4 = inlined_call_operand.vmem [shape: f32[2,1,128], index: 4, kind: output, shape index: {1}]
  %s5 = inlined_call_operand.vmem [shape: f32[2,1,128], index: 5, kind: output, shape index: {2}]
  %6 = xla_tuple %s3, %s4, %s5
  %s7 = sld [smem:[#allocation0]]
  $region61: #{aspp_module_forward.2} parent=0
    _
  %s9 = ssub.s32 1, %s7
  %s10 = scalar_select 0, %s9, %s7
  loop: start=0, step=1, limit=4
  $region2: #{aspp_module_forward.2} parent=0 // loop_pre_header
    _
  $region3: #{aspp_module_forward.2} parent=0 // loop_header
    %s12 = sphi 0, %s16
    %p13 = scmp.ge.s32.totalorder %s12, 4
    %s22 = sphi 0, %s24
    %s25 = sphi 0, %s22
    %s26 = sphi 0, %s25
    %s42 = sphi 0, %s26
    %s46 = sphi 0, %s46
    %s48 = sphi 0, %s46
    %s49 = sphi 0, %s48
    %s63 = sphi 0, %s49
    %s67 = sphi 0, %s67
    %s69 = sphi 0, %s67
    %s70 = sphi 0, %s69
    %s84 = sphi 0, %s70
    %s90 = sphi 0, %s92
    %s93 = sphi 0, %s90
    %s94 = sphi 0, %s93
    %s110 = sphi 0, %s94
    %s116 = sphi 0, %s118
    %s119 = sphi 0, %s116
    %s120 = sphi 0, %s119
    %s136 = sphi 0, %s120
    %s142 = sphi 0, %s144
    %s145 = sphi 0, %s142
    %s146 = sphi 0, %s145
    %s162 = sphi 0, %s146
  $region4: #{aspp_module_forward.2} parent=0 // loop_header_branch
    %15 = sbr.rel (%p13) target = $region8
  $region5: #{aspp_module_forward.2} parent=0 // loop_body
    %s17 = ssub.s32 %s12, 1
    %s18 = ssub.s32 %s12, 2
    %s19 = sadd.s32 %s12, 1
    %s20 = ssub.s32 %s12, %s19
    %p21 = scmp.eq.s32.totalorder %s20, 0
    %s23 = sadd.s32 %s22, 1
    %s24 = scalar_select %p21, %s22, %s23
    %p27 = pneg %p21
    %p28 = scmp.eq.s32.totalorder %s12, 1
    %p29 = por %p27, %p28
    %p30 = scmp.ne.s32.totalorder %s22, %s25
    %p31 = scmp.eq.s32.totalorder %s12, 0
    %p32 = por %p30, %p31
    %p33 = scmp.ne.s32.totalorder %s22, %s25
    %p34 = scmp.eq.s32.totalorder %s17, 1
    %p35 = por %p33, %p34
    %p36 = scmp.ne.s32.totalorder %s25, %s26
    %p37 = scmp.eq.s32.totalorder %s17, 0
    %p38 = por %p36, %p37
    %p39 = scmp.ne.s32.totalorder %s25, %s26
    %p40 = scmp.eq.s32.totalorder %s18, 1
    %p41 = por %p39, %p40
    %p43 = scmp.ne.s32.totalorder %s26, %s42
    %p44 = scmp.eq.s32.totalorder %s18, 0
    %p45 = por %p43, %p44
    %s47 = sadd.s32 %s46, 1
    %p50 = scmp.eq.s32.totalorder %s12, 1
    %p51 = scmp.ne.s32.totalorder %s46, %s48
    %p52 = scmp.eq.s32.totalorder %s12, 0
    %p53 = por %p51, %p52
    %p54 = scmp.ne.s32.totalorder %s46, %s48
    %p55 = scmp.eq.s32.totalorder %s17, 1
    %p56 = por %p54, %p55
    %p57 = scmp.ne.s32.totalorder %s48, %s49
    %p58 = scmp.eq.s32.totalorder %s17, 0
    %p59 = por %p57, %p58
    %p60 = scmp.ne.s32.totalorder %s48, %s49
    %p61 = scmp.eq.s32.totalorder %s18, 1
    %p62 = por %p60, %p61
    %p64 = scmp.ne.s32.totalorder %s49, %s63
    %p65 = scmp.eq.s32.totalorder %s18, 0
    %p66 = por %p64, %p65
    %s68 = sadd.s32 %s67, 1
    %p71 = scmp.eq.s32.totalorder %s12, 1
    %p72 = scmp.ne.s32.totalorder %s67, %s69
    %p73 = scmp.eq.s32.totalorder %s12, 0
    %p74 = por %p72, %p73
    %p75 = scmp.ne.s32.totalorder %s67, %s69
    %p76 = scmp.eq.s32.totalorder %s17, 1
    %p77 = por %p75, %p76
    %p78 = scmp.ne.s32.totalorder %s69, %s70
    %p79 = scmp.eq.s32.totalorder %s17, 0
    %p80 = por %p78, %p79
    %p81 = scmp.ne.s32.totalorder %s69, %s70
    %p82 = scmp.eq.s32.totalorder %s18, 1
    %p83 = por %p81, %p82
    %p85 = scmp.ne.s32.totalorder %s70, %s84
    %p86 = scmp.eq.s32.totalorder %s18, 0
    %p87 = por %p85, %p86
    %s88 = ssub.s32 %s12, %s19
    %p89 = scmp.eq.s32.totalorder %s88, 0
    %s91 = sadd.s32 %s90, 1
    %s92 = scalar_select %p89, %s90, %s91
    %p95 = pneg %p89
    %p96 = scmp.eq.s32.totalorder %s12, 1
    %p97 = por %p95, %p96
    %p98 = scmp.ne.s32.totalorder %s90, %s93
    %p99 = scmp.eq.s32.totalorder %s12, 0
    %p100 = por %p98, %p99
    %p101 = scmp.ne.s32.totalorder %s90, %s93
    %p102 = scmp.eq.s32.totalorder %s17, 1
    %p103 = por %p101, %p102
    %p104 = scmp.ne.s32.totalorder %s93, %s94
    %p105 = scmp.eq.s32.totalorder %s17, 0
    %p106 = por %p104, %p105
    %p107 = scmp.ne.s32.totalorder %s93, %s94
    %p108 = scmp.eq.s32.totalorder %s18, 1
    %p109 = por %p107, %p108
    %p111 = scmp.ne.s32.totalorder %s94, %s110
    %p112 = scmp.eq.s32.totalorder %s18, 0
    %p113 = por %p111, %p112
    %s114 = ssub.s32 %s12, %s19
    %p115 = scmp.eq.s32.totalorder %s114, 0
    %s117 = sadd.s32 %s116, 1
    %s118 = scalar_select %p115, %s116, %s117
    %p121 = pneg %p115
    %p122 = scmp.eq.s32.totalorder %s12, 1
    %p123 = por %p121, %p122
    %p124 = scmp.ne.s32.totalorder %s116, %s119
    %p125 = scmp.eq.s32.totalorder %s12, 0
    %p126 = por %p124, %p125
    %p127 = scmp.ne.s32.totalorder %s116, %s119
    %p128 = scmp.eq.s32.totalorder %s17, 1
    %p129 = por %p127, %p128
    %p130 = scmp.ne.s32.totalorder %s119, %s120
    %p131 = scmp.eq.s32.totalorder %s17, 0
    %p132 = por %p130, %p131
    %p133 = scmp.ne.s32.totalorder %s119, %s120
    %p134 = scmp.eq.s32.totalorder %s18, 1
    %p135 = por %p133, %p134
    %p137 = scmp.ne.s32.totalorder %s120, %s136
    %p138 = scmp.eq.s32.totalorder %s18, 0
    %p139 = por %p137, %p138
    %s140 = ssub.s32 %s12, %s19
    %p141 = scmp.eq.s32.totalorder %s140, 0
    %s143 = sadd.s32 %s142, 1
    %s144 = scalar_select %p141, %s142, %s143
    %p147 = pneg %p141
    %p148 = scmp.eq.s32.totalorder %s12, 1
    %p149 = por %p147, %p148
    %p150 = scmp.ne.s32.totalorder %s142, %s145
    %p151 = scmp.eq.s32.totalorder %s12, 0
    %p152 = por %p150, %p151
    %p153 = scmp.ne.s32.totalorder %s142, %s145
    %p154 = scmp.eq.s32.totalorder %s17, 1
    %p155 = por %p153, %p154
    %p156 = scmp.ne.s32.totalorder %s145, %s146
    %p157 = scmp.eq.s32.totalorder %s17, 0
    %p158 = por %p156, %p157
    %p159 = scmp.ne.s32.totalorder %s145, %s146
    %p160 = scmp.eq.s32.totalorder %s18, 1
    %p161 = por %p159, %p160
    %p163 = scmp.ne.s32.totalorder %s146, %s162
    %p164 = scmp.eq.s32.totalorder %s18, 0
    %p165 = por %p163, %p164
    %p166 = scmp.le.s32.totalorder 1, %s12
    %p167 = scmp.lt.s32.totalorder %s12, 3
    %p168 = pnand %p166, %p167
    %p169 = pneg %p168
    // Predicated region
    $region9: #{aspp_module_forward.2} parent=5 // pred_check
      _
    $region10: #{aspp_module_forward.2} parent=5 // pred_check_branch
      %171 = sbr.rel (%p168) target = $region12
    $region11: #{aspp_module_forward.2} parent=5 // pred_region
      %s172 = ssub.s32 %s12, 1
      // Predicated region
      $region13: #{aspp_module_forward.2} parent=11 // pred_check
        %p173 = pneg %p59
      $region14: #{aspp_module_forward.2} parent=11 // pred_check_branch
        %175 = sbr.rel (%p173) target = $region16
      $region15: #{aspp_module_forward.2} parent=11 // pred_region
        _
      $region16: #{aspp_module_forward.2} parent=11 // pred_fallthru
        _
      // Predicated region
      $region17: #{aspp_module_forward.2} parent=11 // pred_check
        %p176 = pneg %p80
      $region18: #{aspp_module_forward.2} parent=11 // pred_check_branch
        %178 = sbr.rel (%p176) target = $region20
      $region19: #{aspp_module_forward.2} parent=11 // pred_region
        _
      $region20: #{aspp_module_forward.2} parent=11 // pred_fallthru
        _
    $region12: #{aspp_module_forward.2} parent=5 // pred_fallthru
      _
    %p179 = scmp.lt.s32.totalorder %s12, 2
    // Predicated region
    $region21: #{aspp_module_forward.2} parent=5 // pred_check
      %p180 = pneg %p179
    $region22: #{aspp_module_forward.2} parent=5 // pred_check_branch
      %182 = sbr.rel (%p180) target = $region24
    $region23: #{aspp_module_forward.2} parent=5 // pred_region
      // Predicated region
      $region25: #{aspp_module_forward.2} parent=23 // pred_check
        %p183 = pneg %p32
      $region26: #{aspp_module_forward.2} parent=23 // pred_check_branch
        %185 = sbr.rel (%p183) target = $region28
      $region27: #{aspp_module_forward.2} parent=23 // pred_region
        %p186 = scmp.lt.s32.totalorder %s12, 1
        %s187 = scalar_select %p186, %s12, 1
        %s188 = smul.addr %s187, 41
        %s189 = smul.addr %s188, 4
        %s190 = scalar_lea.vmem %s0, %s189
      $region28: #{aspp_module_forward.2} parent=23 // pred_fallthru
        _
    $region24: #{aspp_module_forward.2} parent=5 // pred_fallthru
      _
    %p191 = scmp.le.s32.totalorder 1, %s12
    %p192 = scmp.lt.s32.totalorder %s12, 3
    %p193 = pnand %p191, %p192
    %p194 = pneg %p193
    // Predicated region
    $region29: #{aspp_module_forward.2} parent=5 // pred_check
      _
    $region30: #{aspp_module_forward.2} parent=5 // pred_check_branch
      %196 = sbr.rel (%p193) target = $region32
    $region31: #{aspp_module_forward.2} parent=5 // pred_region
      %s197 = ssub.s32 %s12, 1
      %p198 = scmp.lt.s32.totalorder %s17, 1
      %s199 = scalar_select %p198, %s17, 1
      %s200 = smul.addr %s199, 41
      %s201 = smul.addr %s200, 4
      %s202 = scalar_lea.vmem %s0, %s201
      %p203 = pneg %p38
      %p204 = pneg %p35
      %p205 = pneg %p59
      %p206 = pneg %p56
      %p207 = pneg %p80
      %p208 = pneg %p77
      %p209 = pneg %p106
      %p210 = pneg %p103
      %p211 = scmp.lt.s32.totalorder %s17, 1
      %s212 = scalar_select %p211, %s17, 1
      %s213 = smul.addr %s212, 32
      %s214 = smul.addr %s213, 4
      %s215 = scalar_lea.vmem %s3, %s214
      %p216 = pneg %p132
      %p217 = pneg %p129
      %p218 = scmp.lt.s32.totalorder %s17, 1
      %s219 = scalar_select %p218, %s17, 1
      %s220 = scalar_lea.vmem %s4, %s219
      %p221 = pneg %p158
      %p222 = pneg %p155
      %p223 = scmp.lt.s32.totalorder %s17, 1
      %s224 = scalar_select %p223, %s17, 1
      %s225 = scalar_lea.vmem %s5, %s224
      %p226 = scmp.lt.s32.totalorder %s17, 1
      %s227 = scalar_select %p226, %s17, 1
      %s228 = smul.addr %s227, 41
      %s229 = smul.addr %s228, 4
      %s230 = scalar_lea.vmem %s0, %s229
      %p231 = scmp.lt.s32.totalorder %s17, 1
      %s232 = scalar_select %p231, %s17, 1
      %s233 = smul.addr %s232, 32
      %s234 = smul.addr %s233, 4
      %s235 = scalar_lea.vmem %s3, %s234
      %p236 = scmp.lt.s32.totalorder %s17, 1
      %s237 = scalar_select %p236, %s17, 1
      %s238 = scalar_lea.vmem %s4, %s237
      %p239 = scmp.lt.s32.totalorder %s17, 1
      %s240 = scalar_select %p239, %s17, 1
      %s241 = scalar_lea.vmem %s5, %s240
      %v243 = vld [vmem:[%s230] sm:$0xf]
      %v244 = vld [vmem:[%s230 + $0x4] sm:$0xf]
      %v245 = vld [vmem:[%s230 + $0x8] sm:$0xf]
      %v246 = vld [vmem:[%s230 + $0xc] sm:$0xf]
      %v247 = vld [vmem:[%s230 + $0x10] sm:$0xf]
      %v248 = vld [vmem:[%s230 + $0x14] sm:$0xf]
      %v249 = vld [vmem:[%s230 + $0x18] sm:$0xf]
      %v250 = vld [vmem:[%s230 + $0x1c] sm:$0xf]
      %v251 = vld [vmem:[%s230 + $0x20] sm:$0xf]
      %v252 = vld [vmem:[%s230 + $0x24] sm:$0xf]
      %v253 = vld [vmem:[%s230 + $0x28] sm:$0xf]
      %v254 = vld [vmem:[%s230 + $0x2c] sm:$0xf]
      %v255 = vld [vmem:[%s230 + $0x30] sm:$0xf]
      %v256 = vld [vmem:[%s230 + $0x34] sm:$0xf]
      %v257 = vld [vmem:[%s230 + $0x38] sm:$0xf]
      %v258 = vld [vmem:[%s230 + $0x3c] sm:$0xf]
      %v259 = vld [vmem:[%s230 + $0x40] sm:$0xf]
      %v260 = vld [vmem:[%s230 + $0x44] sm:$0xf]
      %v261 = vld [vmem:[%s230 + $0x48] sm:$0xf]
      %v262 = vld [vmem:[%s230 + $0x4c] sm:$0xf]
      %v263 = vld [vmem:[%s230 + $0x50] sm:$0xf]
      %v264 = vld [vmem:[%s230 + $0x54] sm:$0xf]
      %v265 = vld [vmem:[%s230 + $0x58] sm:$0xf]
      %v266 = vld [vmem:[%s230 + $0x5c] sm:$0xf]
      %v267 = vld [vmem:[%s230 + $0x60] sm:$0xf]
      %v268 = vld [vmem:[%s230 + $0x64] sm:$0xf]
      %v269 = vld [vmem:[%s230 + $0x68] sm:$0xf]
      %v270 = vld [vmem:[%s230 + $0x6c] sm:$0xf]
      %v271 = vld [vmem:[%s230 + $0x70] sm:$0xf]
      %v272 = vld [vmem:[%s230 + $0x74] sm:$0xf]
      %v273 = vld [vmem:[%s230 + $0x78] sm:$0xf]
      %v274 = vld [vmem:[%s230 + $0x7c] sm:$0xf]
      %v275 = vld [vmem:[%s1] sm:$0x3]
      %v308 = vunpack.c.l.b16 %v243
      %v309 = vunpack.c.l.b16 %v244
      %v310 = vunpack.c.l.b16 %v245
      %v311 = vunpack.c.l.b16 %v246
      %v312 = vunpack.c.l.b16 %v247
      %v313 = vunpack.c.l.b16 %v248
      %v314 = vunpack.c.l.b16 %v249
      %v315 = vunpack.c.l.b16 %v250
      %v316 = vunpack.c.l.b16 %v251
      %v317 = vunpack.c.l.b16 %v252
      %v318 = vunpack.c.l.b16 %v253
      %v319 = vunpack.c.l.b16 %v254
      %v320 = vunpack.c.l.b16 %v255
      %v321 = vunpack.c.l.b16 %v256
      %v322 = vunpack.c.l.b16 %v257
      %v323 = vunpack.c.l.b16 %v258
      %v324 = vunpack.c.l.b16 %v259
      %v325 = vunpack.c.l.b16 %v260
      %v326 = vunpack.c.l.b16 %v261
      %v327 = vunpack.c.l.b16 %v262
      %v328 = vunpack.c.l.b16 %v263
      %v329 = vunpack.c.l.b16 %v264
      %v330 = vunpack.c.l.b16 %v265
      %v331 = vunpack.c.l.b16 %v266
      %v332 = vunpack.c.l.b16 %v267
      %v333 = vunpack.c.l.b16 %v268
      %v334 = vunpack.c.l.b16 %v269
      %v335 = vunpack.c.l.b16 %v270
      %v336 = vunpack.c.l.b16 %v271
      %v337 = vunpack.c.l.b16 %v272
      %v338 = vunpack.c.l.b16 %v273
      %v339 = vunpack.c.l.b16 %v274
      %v340 = vpack.c.b16 %v309, %v308
      %v341 = vpack.c.b16 %v311, %v310
      %v342 = vpack.c.b16 %v313, %v312
      %v343 = vpack.c.b16 %v315, %v314
      %v344 = vpack.c.b16 %v317, %v316
      %v345 = vpack.c.b16 %v319, %v318
      %v346 = vpack.c.b16 %v321, %v320
      %v347 = vpack.c.b16 %v323, %v322
      %v348 = vpack.c.b16 %v325, %v324
      %v349 = vpack.c.b16 %v327, %v326
      %v350 = vpack.c.b16 %v329, %v328
      %v351 = vpack.c.b16 %v331, %v330
      %v352 = vpack.c.b16 %v333, %v332
      %v353 = vpack.c.b16 %v335, %v334
      %v354 = vpack.c.b16 %v337, %v336
      %v355 = vpack.c.b16 %v339, %v338
      %vm356 = vcmask 31744
      %v358 = vsel %vm356, %v340, 0
      %v361 = vsel %vm356, %v341, 0
      %v364 = vsel %vm356, %v342, 0
      %v367 = vsel %vm356, %v343, 0
      %v370 = vsel %vm356, %v344, 0
      %v373 = vsel %vm356, %v345, 0
      %v376 = vsel %vm356, %v346, 0
      %v379 = vsel %vm356, %v347, 0
      %v382 = vsel %vm356, %v348, 0
      %v385 = vsel %vm356, %v349, 0
      %v388 = vsel %vm356, %v350, 0
      %v391 = vsel %vm356, %v351, 0
      %v394 = vsel %vm356, %v352, 0
      %v397 = vsel %vm356, %v353, 0
      %v400 = vsel %vm356, %v354, 0
      %v403 = vsel %vm356, %v355, 0
      %vm405 = vcmask 1041408
      %v407 = vsel %vm405, %v275, 0
      %409 = vmatprep.subr.bf16.mxu0 0
      %410 = vmatpush1.bf16.msra.mxu0 %v407
      %411 = vmatprep.subr.bf16.mxu0 0
      %412 = vmatpush1.bf16.msra.mxu0 0
      %413 = vmatprep.subr.bf16.mxu0 0
      %414 = vmatpush1.bf16.msra.mxu0 0
      %415 = vmatprep.subr.bf16.mxu0 0
      %416 = vmatpush1.bf16.msra.mxu0 0
      %417 = vmatprep.subr.bf16.mxu0 0
      %418 = vmatpush1.bf16.msra.mxu0 0
      %419 = vmatprep.subr.bf16.mxu0 0
      %420 = vmatpush1.bf16.msra.mxu0 0
      %421 = vmatprep.subr.bf16.mxu0 0
      %422 = vmatpush1.bf16.msra.mxu0 0
      %423 = vmatprep.subr.bf16.mxu0 0
      %424 = vmatpush1.bf16.msra.mxu0 0
      %425 = vmatprep.subr.bf16.mxu0 0
      %426 = vmatpush1.bf16.msra.mxu0 0
      %427 = vmatprep.subr.bf16.mxu0 0
      %428 = vmatpush1.bf16.msra.mxu0 0
      %429 = vmatprep.subr.bf16.mxu0 0
      %430 = vmatpush1.bf16.msra.mxu0 0
      %431 = vmatprep.subr.bf16.mxu0 0
      %432 = vmatpush1.bf16.msra.mxu0 0
      %433 = vmatprep.subr.bf16.mxu0 0
      %434 = vmatpush1.bf16.msra.mxu0 0
      %435 = vmatprep.subr.bf16.mxu0 0
      %436 = vmatpush1.bf16.msra.mxu0 0
      %437 = vmatprep.subr.bf16.mxu0 0
      %438 = vmatpush1.bf16.msra.mxu0 0
      %439 = vmatprep.subr.bf16.mxu0 0
      %440 = vmatpush1.bf16.msra.mxu0 0
      %441 = vmatprep.mubr.bf16.mxu0 0
      %442 = vmatmul.mubr.bf16.gmra.mrb[0].mxu0 %v358
      %v443 = vpop.f32.mrb[0].mxu0
      %v444 = vadd.f32 0.0, %v443
      %v445 = vpop.f32.mrb[0].mxu0
      %v446 = vpop.f32.mrb[0].mxu0
      %v447 = vadd.f32 0.0, %v446
      %v448 = vpop.f32.mrb[0].mxu0
      %449 = vmatprep.mubr.bf16.mxu0 0
      %450 = vmatmul.mubr.bf16.gmra.mrb[0].mxu0 %v361
      %v451 = vpop.f32.mrb[0].mxu0
      %v452 = vadd.f32 0.0, %v451
      %v453 = vpop.f32.mrb[0].mxu0
      %v454 = vpop.f32.mrb[0].mxu0
      %v455 = vadd.f32 0.0, %v454
      %v456 = vpop.f32.mrb[0].mxu0
      %457 = vmatprep.mubr.bf16.mxu0 0
      %458 = vmatmul.mubr.bf16.gmra.mrb[0].mxu0 %v364
      %v459 = vpop.f32.mrb[0].mxu0
      %v460 = vadd.f32 0.0, %v459
      %v461 = vpop.f32.mrb[0].mxu0
      %v462 = vpop.f32.mrb[0].mxu0
      %v463 = vadd.f32 0.0, %v462
      %v464 = vpop.f32.mrb[0].mxu0
      %465 = vmatprep.mubr.bf16.mxu0 0
      %466 = vmatmul.mubr.bf16.gmra.mrb[0].mxu0 %v367
      %v467 = vpop.f32.mrb[0].mxu0
      %v468 = vadd.f32 0.0, %v467
      %v469 = vpop.f32.mrb[0].mxu0
      %v470 = vpop.f32.mrb[0].mxu0
      %v471 = vadd.f32 0.0, %v470
      %v472 = vpop.f32.mrb[0].mxu0
      %473 = vmatprep.mubr.bf16.mxu0 0
      %474 = vmatmul.mubr.bf16.gmra.mrb[0].mxu0 %v370
      %v475 = vpop.f32.mrb[0].mxu0
      %v476 = vadd.f32 0.0, %v475
      %v477 = vpop.f32.mrb[0].mxu0
      %v478 = vpop.f32.mrb[0].mxu0
      %v479 = vadd.f32 0.0, %v478
      %v480 = vpop.f32.mrb[0].mxu0
      %481 = vmatprep.mubr.bf16.mxu0 0
      %482 = vmatmul.mubr.bf16.gmra.mrb[0].mxu0 %v373
      %v483 = vpop.f32.mrb[0].mxu0
      %v484 = vadd.f32 0.0, %v483
      %v485 = vpop.f32.mrb[0].mxu0
      %v486 = vpop.f32.mrb[0].mxu0
      %v487 = vadd.f32 0.0, %v486
      %v488 = vpop.f32.mrb[0].mxu0
      %489 = vmatprep.mubr.bf16.mxu0 0
      %490 = vmatmul.mubr.bf16.gmra.mrb[0].mxu0 %v376
      %v491 = vpop.f32.mrb[0].mxu0
      %v492 = vadd.f32 0.0, %v491
      %v493 = vpop.f32.mrb[0].mxu0
      %v494 = vpop.f32.mrb[0].mxu0
      %v495 = vadd.f32 0.0, %v494
      %v496 = vpop.f32.mrb[0].mxu0
      %497 = vmatprep.mubr.bf16.mxu0 0
      %498 = vmatmul.mubr.bf16.gmra.mrb[0].mxu0 %v379
      %v499 = vpop.f32.mrb[0].mxu0
      %v500 = vadd.f32 0.0, %v499
      %v501 = vpop.f32.mrb[0].mxu0
      %v502 = vpop.f32.mrb[0].mxu0
      %v503 = vadd.f32 0.0, %v502
      %v504 = vpop.f32.mrb[0].mxu0
      %505 = vmatprep.mubr.bf16.mxu0 0
      %506 = vmatmul.mubr.bf16.gmra.mrb[0].mxu0 %v382
      %v507 = vpop.f32.mrb[0].mxu0
      %v508 = vadd.f32 0.0, %v507
      %v509 = vpop.f32.mrb[0].mxu0
      %v510 = vpop.f32.mrb[0].mxu0
      %v511 = vadd.f32 0.0, %v510
      %v512 = vpop.f32.mrb[0].mxu0
      %513 = vmatprep.mubr.bf16.mxu0 0
      %514 = vmatmul.mubr.bf16.gmra.mrb[0].mxu0 %v385
      %v515 = vpop.f32.mrb[0].mxu0
      %v516 = vadd.f32 0.0, %v515
      %v517 = vpop.f32.mrb[0].mxu0
      %v518 = vpop.f32.mrb[0].mxu0
      %v519 = vadd.f32 0.0, %v518
      %v520 = vpop.f32.mrb[0].mxu0
      %521 = vmatprep.mubr.bf16.mxu0 0
      %522 = vmatmul.mubr.bf16.gmra.mrb[0].mxu0 %v388
      %v523 = vpop.f32.mrb[0].mxu0
      %v524 = vadd.f32 0.0, %v523
      %v525 = vpop.f32.mrb[0].mxu0
      %v526 = vpop.f32.mrb[0].mxu0
      %v527 = vadd.f32 0.0, %v526
      %v528 = vpop.f32.mrb[0].mxu0
      %529 = vmatprep.mubr.bf16.mxu0 0
      %530 = vmatmul.mubr.bf16.gmra.mrb[0].mxu0 %v391
      %v531 = vpop.f32.mrb[0].mxu0
      %v532 = vadd.f32 0.0, %v531
      %v533 = vpop.f32.mrb[0].mxu0
      %v534 = vpop.f32.mrb[0].mxu0
      %v535 = vadd.f32 0.0, %v534
      %v536 = vpop.f32.mrb[0].mxu0
      %537 = vmatprep.mubr.bf16.mxu0 0
      %538 = vmatmul.mubr.bf16.gmra.mrb[0].mxu0 %v394
      %v539 = vpop.f32.mrb[0].mxu0
      %v540 = vadd.f32 0.0, %v539
      %v541 = vpop.f32.mrb[0].mxu0
      %v542 = vpop.f32.mrb[0].mxu0
      %v543 = vadd.f32 0.0, %v542
      %v544 = vpop.f32.mrb[0].mxu0
      %545 = vmatprep.mubr.bf16.mxu0 0
      %546 = vmatmul.mubr.bf16.gmra.mrb[0].mxu0 %v397
      %v547 = vpop.f32.mrb[0].mxu0
      %v548 = vadd.f32 0.0, %v547
      %v549 = vpop.f32.mrb[0].mxu0
      %v550 = vpop.f32.mrb[0].mxu0
      %v551 = vadd.f32 0.0, %v550
      %v552 = vpop.f32.mrb[0].mxu0
      %553 = vmatprep.mubr.bf16.mxu0 0
      %554 = vmatmul.mubr.bf16.gmra.mrb[0].mxu0 %v400
      %v555 = vpop.f32.mrb[0].mxu0
      %v556 = vadd.f32 0.0, %v555
      %v557 = vpop.f32.mrb[0].mxu0
      %v558 = vpop.f32.mrb[0].mxu0
      %v559 = vadd.f32 0.0, %v558
      %v560 = vpop.f32.mrb[0].mxu0
      %561 = vmatprep.mubr.bf16.mxu0 0
      %562 = vmatmul.mubr.bf16.gmra.mrb[0].mxu0 %v403
      %v563 = vpop.f32.mrb[0].mxu0
      %v564 = vadd.f32 0.0, %v563
      %v565 = vpop.f32.mrb[0].mxu0
      %v566 = vpop.f32.mrb[0].mxu0
      %v567 = vadd.f32 0.0, %v566
      %v568 = vpop.f32.mrb[0].mxu0
      %569 = vdwg.mxu0
      %v570 = vld [vmem:[%s2] sm:$0xff]
      %v571 = vld [vmem:[%s2 + $0x8] sm:$0xff]
      %v572 = vld [vmem:[%s2 + $0x10] sm:$0xff]
      %v573 = vld [vmem:[%s2 + $0x18] sm:$0xff]
      %v574 = vld [vmem:[%s2 + $0x20] sm:$0xff]
      %v575 = vld [vmem:[%s2 + $0x28] sm:$0xff]
      %v576 = vld [vmem:[%s2 + $0x30] sm:$0xff]
      %v577 = vld [vmem:[%s2 + $0x38] sm:$0xff]
      %v578 = vld [vmem:[%s2 + $0x40] sm:$0xff]
      %v579 = vld [vmem:[%s2 + $0x48] sm:$0xff]
      %v580 = vld [vmem:[%s2 + $0x50] sm:$0xff]
      %v581 = vld [vmem:[%s2 + $0x58] sm:$0xff]
      %v582 = vld [vmem:[%s2 + $0x60] sm:$0xff]
      %v583 = vld [vmem:[%s2 + $0x68] sm:$0xff]
      %v584 = vld [vmem:[%s2 + $0x70] sm:$0xff]
      %v585 = vld [vmem:[%s2 + $0x78] sm:$0xff]
      %v586 = vld [vmem:[%s2 + $0x80] sm:$0xff]
      %v587 = vld [vmem:[%s2 + $0x88] sm:$0xff]
      %v588 = vld [vmem:[%s2 + $0x90] sm:$0xff]
      %v589 = vld [vmem:[%s2 + $0x98] sm:$0xff]
      %v590 = vld [vmem:[%s2 + $0xa0] sm:$0xff]
      %v591 = vld [vmem:[%s2 + $0xa8] sm:$0xff]
      %v592 = vld [vmem:[%s2 + $0xb0] sm:$0xff]
      %v593 = vld [vmem:[%s2 + $0xb8] sm:$0xff]
      %v594 = vld [vmem:[%s2 + $0xc0] sm:$0xff]
      %v595 = vld [vmem:[%s2 + $0xc8] sm:$0xff]
      %v596 = vld [vmem:[%s2 + $0xd0] sm:$0xff]
      %v597 = vld [vmem:[%s2 + $0xd8] sm:$0xff]
      %v598 = vld [vmem:[%s2 + $0xe0] sm:$0xff]
      %v599 = vld [vmem:[%s2 + $0xe8] sm:$0xff]
      %v600 = vld [vmem:[%s2 + $0xf0] sm:$0xff]
      %v601 = vld [vmem:[%s2 + $0xf8] sm:$0xff]
      %603 = vset.pattern.permute.xlu0 0
      %604 = vperm.xlu0 %603, %v570
      %v605 = vpop.permute.xlu0 %604
      %608 = vset.pattern.permute.xlu0 0
      %609 = vperm.xlu0 %608, %v571
      %v610 = vpop.permute.xlu0 %609
      %613 = vset.pattern.permute.xlu0 0
      %614 = vperm.xlu0 %613, %v572
      %v615 = vpop.permute.xlu0 %614
      %618 = vset.pattern.permute.xlu0 0
      %619 = vperm.xlu0 %618, %v573
      %v620 = vpop.permute.xlu0 %619
      %623 = vset.pattern.permute.xlu0 0
      %624 = vperm.xlu0 %623, %v574
      %v625 = vpop.permute.xlu0 %624
      %628 = vset.pattern.permute.xlu0 0
      %629 = vperm.xlu0 %628, %v575
      %v630 = vpop.permute.xlu0 %629
      %633 = vset.pattern.permute.xlu0 0
      %634 = vperm.xlu0 %633, %v576
      %v635 = vpop.permute.xlu0 %634
      %638 = vset.pattern.permute.xlu0 0
      %639 = vperm.xlu0 %638, %v577
      %v640 = vpop.permute.xlu0 %639
      %643 = vset.pattern.permute.xlu0 0
      %644 = vperm.xlu0 %643, %v578
      %v645 = vpop.permute.xlu0 %644
      %648 = vset.pattern.permute.xlu0 0
      %649 = vperm.xlu0 %648, %v579
      %v650 = vpop.permute.xlu0 %649
      %653 = vset.pattern.permute.xlu0 0
      %654 = vperm.xlu0 %653, %v580
      %v655 = vpop.permute.xlu0 %654
      %658 = vset.pattern.permute.xlu0 0
      %659 = vperm.xlu0 %658, %v581
      %v660 = vpop.permute.xlu0 %659
      %663 = vset.pattern.permute.xlu0 0
      %664 = vperm.xlu0 %663, %v582
      %v665 = vpop.permute.xlu0 %664
      %668 = vset.pattern.permute.xlu0 0
      %669 = vperm.xlu0 %668, %v583
      %v670 = vpop.permute.xlu0 %669
      %673 = vset.pattern.permute.xlu0 0
      %674 = vperm.xlu0 %673, %v584
      %v675 = vpop.permute.xlu0 %674
      %678 = vset.pattern.permute.xlu0 0
      %679 = vperm.xlu0 %678, %v585
      %v680 = vpop.permute.xlu0 %679
      %683 = vset.pattern.permute.xlu0 0
      %684 = vperm.xlu0 %683, %v586
      %v685 = vpop.permute.xlu0 %684
      %688 = vset.pattern.permute.xlu0 0
      %689 = vperm.xlu0 %688, %v587
      %v690 = vpop.permute.xlu0 %689
      %693 = vset.pattern.permute.xlu0 0
      %694 = vperm.xlu0 %693, %v588
      %v695 = vpop.permute.xlu0 %694
      %698 = vset.pattern.permute.xlu0 0
      %699 = vperm.xlu0 %698, %v589
      %v700 = vpop.permute.xlu0 %699
      %703 = vset.pattern.permute.xlu0 0
      %704 = vperm.xlu0 %703, %v590
      %v705 = vpop.permute.xlu0 %704
      %708 = vset.pattern.permute.xlu0 0
      %709 = vperm.xlu0 %708, %v591
      %v710 = vpop.permute.xlu0 %709
      %713 = vset.pattern.permute.xlu0 0
      %714 = vperm.xlu0 %713, %v592
      %v715 = vpop.permute.xlu0 %714
      %718 = vset.pattern.permute.xlu0 0
      %719 = vperm.xlu0 %718, %v593
      %v720 = vpop.permute.xlu0 %719
      %723 = vset.pattern.permute.xlu0 0
      %724 = vperm.xlu0 %723, %v594
      %v725 = vpop.permute.xlu0 %724
      %728 = vset.pattern.permute.xlu0 0
      %729 = vperm.xlu0 %728, %v595
      %v730 = vpop.permute.xlu0 %729
      %733 = vset.pattern.permute.xlu0 0
      %734 = vperm.xlu0 %733, %v596
      %v735 = vpop.permute.xlu0 %734
      %738 = vset.pattern.permute.xlu0 0
      %739 = vperm.xlu0 %738, %v597
      %v740 = vpop.permute.xlu0 %739
      %743 = vset.pattern.permute.xlu0 0
      %744 = vperm.xlu0 %743, %v598
      %v745 = vpop.permute.xlu0 %744
      %748 = vset.pattern.permute.xlu0 0
      %749 = vperm.xlu0 %748, %v599
      %v750 = vpop.permute.xlu0 %749
      %753 = vset.pattern.permute.xlu0 0
      %754 = vperm.xlu0 %753, %v600
      %v755 = vpop.permute.xlu0 %754
      %758 = vset.pattern.permute.xlu0 0
      %759 = vperm.xlu0 %758, %v601
      %v760 = vpop.permute.xlu0 %759
      %v762 = vmul.f32 %v444, %v605
      %v763 = vmul.f32 %v447, %v610
      %v764 = vmul.f32 %v452, %v615
      %v765 = vmul.f32 %v455, %v620
      %v766 = vmul.f32 %v460, %v625
      %v767 = vmul.f32 %v463, %v630
      %v768 = vmul.f32 %v468, %v635
      %v769 = vmul.f32 %v471, %v640
      %v770 = vmul.f32 %v476, %v645
      %v771 = vmul.f32 %v479, %v650
      %v772 = vmul.f32 %v484, %v655
      %v773 = vmul.f32 %v487, %v660
      %v774 = vmul.f32 %v492, %v665
      %v775 = vmul.f32 %v495, %v670
      %v776 = vmul.f32 %v500, %v675
      %v777 = vmul.f32 %v503, %v680
      %v778 = vmul.f32 %v508, %v685
      %v779 = vmul.f32 %v511, %v690
      %v780 = vmul.f32 %v516, %v695
      %v781 = vmul.f32 %v519, %v700
      %v782 = vmul.f32 %v524, %v705
      %v783 = vmul.f32 %v527, %v710
      %v784 = vmul.f32 %v532, %v715
      %v785 = vmul.f32 %v535, %v720
      %v786 = vmul.f32 %v540, %v725
      %v787 = vmul.f32 %v543, %v730
      %v788 = vmul.f32 %v548, %v735
      %v789 = vmul.f32 %v551, %v740
      %v790 = vmul.f32 %v556, %v745
      %v791 = vmul.f32 %v559, %v750
      %v792 = vmul.f32 %v564, %v755
      %v793 = vmul.f32 %v567, %v760
      %794 = vst [vmem:[#allocation2] sm:$0xff] %v762
      %795 = vst [vmem:[#allocation2 + $0x8] sm:$0xff] %v763
      %796 = vst [vmem:[#allocation2 + $0x10] sm:$0xff] %v764
      %797 = vst [vmem:[#allocation2 + $0x18] sm:$0xff] %v765
      %798 = vst [vmem:[#allocation2 + $0x20] sm:$0xff] %v766
      %799 = vst [vmem:[#allocation2 + $0x28] sm:$0xff] %v767
      %800 = vst [vmem:[#allocation2 + $0x30] sm:$0xff] %v768
      %801 = vst [vmem:[#allocation2 + $0x38] sm:$0xff] %v769
      %802 = vst [vmem:[#allocation2 + $0x40] sm:$0xff] %v770
      %803 = vst [vmem:[#allocation2 + $0x48] sm:$0xff] %v771
      %804 = vst [vmem:[#allocation2 + $0x50] sm:$0xff] %v772
      %805 = vst [vmem:[#allocation2 + $0x58] sm:$0xff] %v773
      %806 = vst [vmem:[#allocation2 + $0x60] sm:$0xff] %v774
      %807 = vst [vmem:[#allocation2 + $0x68] sm:$0xff] %v775
      %808 = vst [vmem:[#allocation2 + $0x70] sm:$0xff] %v776
      %809 = vst [vmem:[#allocation2 + $0x78] sm:$0xff] %v777
      %810 = vst [vmem:[#allocation2 + $0x80] sm:$0xff] %v778
      %811 = vst [vmem:[#allocation2 + $0x88] sm:$0xff] %v779
      %812 = vst [vmem:[#allocation2 + $0x90] sm:$0xff] %v780
      %813 = vst [vmem:[#allocation2 + $0x98] sm:$0xff] %v781
      %814 = vst [vmem:[#allocation2 + $0xa0] sm:$0xff] %v782
      %815 = vst [vmem:[#allocation2 + $0xa8] sm:$0xff] %v783
      %816 = vst [vmem:[#allocation2 + $0xb0] sm:$0xff] %v784
      %817 = vst [vmem:[#allocation2 + $0xb8] sm:$0xff] %v785
      %818 = vst [vmem:[#allocation2 + $0xc0] sm:$0xff] %v786
      %819 = vst [vmem:[#allocation2 + $0xc8] sm:$0xff] %v787
      %820 = vst [vmem:[#allocation2 + $0xd0] sm:$0xff] %v788
      %821 = vst [vmem:[#allocation2 + $0xd8] sm:$0xff] %v789
      %822 = vst [vmem:[#allocation2 + $0xe0] sm:$0xff] %v790
      %823 = vst [vmem:[#allocation2 + $0xe8] sm:$0xff] %v791
      %824 = vst [vmem:[#allocation2 + $0xf0] sm:$0xff] %v792
      %825 = vst [vmem:[#allocation2 + $0xf8] sm:$0xff] %v793
      %v826 = vld [vmem:[%s230] sm:$0xe]
      %v827 = vld [vmem:[%s230 + $0x4] sm:$0xf]
      %v828 = vld [vmem:[%s230 + $0x8] sm:$0xf]
      %v829 = vld [vmem:[%s230 + $0xc] sm:$0xf]
      %v830 = vld [vmem:[%s230 + $0x10] sm:$0xf]
      %v831 = vld [vmem:[%s230 + $0x14] sm:$0xf]
      %v832 = vld [vmem:[%s230 + $0x18] sm:$0xf]
      %v833 = vld [vmem:[%s230 + $0x1c] sm:$0xf]
      %v834 = vld [vmem:[%s230 + $0x20] sm:$0xf]
      %v835 = vld [vmem:[%s230 + $0x24] sm:$0xf]
      %v836 = vld [vmem:[%s230 + $0x28] sm:$0xf]
      %v837 = vld [vmem:[%s230 + $0x2c] sm:$0xf]
      %v838 = vld [vmem:[%s230 + $0x30] sm:$0xf]
      %v839 = vld [vmem:[%s230 + $0x34] sm:$0xf]
      %v840 = vld [vmem:[%s230 + $0x38] sm:$0xf]
      %v841 = vld [vmem:[%s230 + $0x3c] sm:$0xf]
      %v842 = vld [vmem:[%s230 + $0x40] sm:$0xf]
      %v843 = vld [vmem:[%s230 + $0x44] sm:$0xf]
      %v844 = vld [vmem:[%s230 + $0x48] sm:$0xf]
      %v845 = vld [vmem:[%s230 + $0x4c] sm:$0xf]
      %v846 = vld [vmem:[%s230 + $0x50] sm:$0xf]
      %v847 = vld [vmem:[%s230 + $0x54] sm:$0xf]
      %v848 = vld [vmem:[%s230 + $0x58] sm:$0xf]
      %v849 = vld [vmem:[%s230 + $0x5c] sm:$0xf]
      %v850 = vld [vmem:[%s230 + $0x60] sm:$0xf]
      %v851 = vld [vmem:[%s230 + $0x64] sm:$0xf]
      %v852 = vld [vmem:[%s230 + $0x68] sm:$0xf]
      %v853 = vld [vmem:[%s230 + $0x6c] sm:$0xf]
      %v854 = vld [vmem:[%s230 + $0x70] sm:$0xf]
      %v855 = vld [vmem:[%s230 + $0x74] sm:$0xf]
      %v856 = vld [vmem:[%s230 + $0x78] sm:$0xf]
      %v857 = vld [vmem:[%s230 + $0x7c] sm:$0xf]
      %v858 = vld [vmem:[%s230 + $0x80] sm:$0x1]
      %s859 = scalar_lea.vmem %s1, 2
      %v860 = vld [vmem:[%s859] sm:$0x3]
      %v894 = vunpack.c.l.b16 %v826
      %v895 = vunpack.c.l.b16 %v827
      %v896 = vunpack.c.l.b16 %v828
      %v897 = vunpack.c.l.b16 %v829
      %v898 = vunpack.c.l.b16 %v830
      %v899 = vunpack.c.l.b16 %v831
      %v900 = vunpack.c.l.b16 %v832
      %v901 = vunpack.c.l.b16 %v833
      %v902 = vunpack.c.l.b16 %v834
      %v903 = vunpack.c.l.b16 %v835
      %v904 = vunpack.c.l.b16 %v836
      %v905 = vunpack.c.l.b16 %v837
      %v906 = vunpack.c.l.b16 %v838
      %v907 = vunpack.c.l.b16 %v839
      %v908 = vunpack.c.l.b16 %v840
      %v909 = vunpack.c.l.b16 %v841
      %v910 = vunpack.c.l.b16 %v842
      %v911 = vunpack.c.l.b16 %v843
      %v912 = vunpack.c.l.b16 %v844
      %v913 = vunpack.c.l.b16 %v845
      %v914 = vunpack.c.l.b16 %v846
      %v915 = vunpack.c.l.b16 %v847
      %v916 = vunpack.c.l.b16 %v848
      %v917 = vunpack.c.l.b16 %v849
      %v918 = vunpack.c.l.b16 %v850
      %v919 = vunpack.c.l.b16 %v851
      %v920 = vunpack.c.l.b16 %v852
      %v921 = vunpack.c.l.b16 %v853
      %v922 = vunpack.c.l.b16 %v854
      %v923 = vunpack.c.l.b16 %v855
      %v924 = vunpack.c.l.b16 %v856
      %v925 = vunpack.c.l.b16 %v857
      %v926 = vunpack.c.l.b16 %v858
      %v927 = vpack.c.b16 %v895, %v894
      %v928 = vpack.c.b16 %v897, %v896
      %v929 = vpack.c.b16 %v899, %v898
      %v930 = vpack.c.b16 %v901, %v900
      %v931 = vpack.c.b16 %v903, %v902
      %v932 = vpack.c.b16 %v905, %v904
      %v933 = vpack.c.b16 %v907, %v906
      %v934 = vpack.c.b16 %v909, %v908
      %v935 = vpack.c.b16 %v911, %v910
      %v936 = vpack.c.b16 %v913, %v912
      %v937 = vpack.c.b16 %v915, %v914
      %v938 = vpack.c.b16 %v917, %v916
      %v939 = vpack.c.b16 %v919, %v918
      %v940 = vpack.c.b16 %v921, %v920
      %v941 = vpack.c.b16 %v923, %v922
      %v942 = vpack.c.b16 %v925, %v924
      %v943 = vpack.c.b16 %v926, %v926
      %vm944 = vcmask 1046528
      %v945 = vrot.slane %v927, 1
      %v946 = vrot.slane %v928, 1
      %v947 = vsel %vm944, %v945, %v946
      %v948 = vrot.slane %v929, 1
      %v949 = vsel %vm944, %v946, %v948
      %v950 = vrot.slane %v930, 1
      %v951 = vsel %vm944, %v948, %v950
      %v952 = vrot.slane %v931, 1
      %v953 = vsel %vm944, %v950, %v952
      %v954 = vrot.slane %v932, 1
      %v955 = vsel %vm944, %v952, %v954
      %v956 = vrot.slane %v933, 1
      %v957 = vsel %vm944, %v954, %v956
      %v958 = vrot.slane %v934, 1
      %v959 = vsel %vm944, %v956, %v958
      %v960 = vrot.slane %v935, 1
      %v961 = vsel %vm944, %v958, %v960
      %v962 = vrot.slane %v936, 1
      %v963 = vsel %vm944, %v960, %v962
      %v964 = vrot.slane %v937, 1
      %v965 = vsel %vm944, %v962, %v964
      %v966 = vrot.slane %v938, 1
      %v967 = vsel %vm944, %v964, %v966
      %v968 = vrot.slane %v939, 1
      %v969 = vsel %vm944, %v966, %v968
      %v970 = vrot.slane %v940, 1
      %v971 = vsel %vm944, %v968, %v970
      %v972 = vrot.slane %v941, 1
      %v973 = vsel %vm944, %v970, %v972
      %v974 = vrot.slane %v942, 1
      %v975 = vsel %vm944, %v972, %v974
      %v976 = vrot.slane %v943, 1
      %v977 = vsel %vm944, %v974, %v976
      %v979 = vsel %vm356, %v947, 0
      %v982 = vsel %vm356, %v949, 0
      %v985 = vsel %vm356, %v951, 0
      %v988 = vsel %vm356, %v953, 0
      %v991 = vsel %vm356, %v955, 0
      %v994 = vsel %vm356, %v957, 0
      %v997 = vsel %vm356, %v959, 0
      %v1000 = vsel %vm356, %v961, 0
      %v1003 = vsel %vm356, %v963, 0
      %v1006 = vsel %vm356, %v965, 0
      %v1009 = vsel %vm356, %v967, 0
      %v1012 = vsel %vm356, %v969, 0
      %v1015 = vsel %vm356, %v971, 0
      %v1018 = vsel %vm356, %v973, 0
      %v1021 = vsel %vm356, %v975, 0
      %v1024 = vsel %vm356, %v977, 0
      %v1027 = vsel %vm405, %v860, 0
      %1029 = vmatprep.subr.bf16.mxu0 0
      %1030 = vmatpush1.bf16.msra.mxu0 %v1027
      %1031 = vmatprep.subr.bf16.mxu0 0
      %1032 = vmatpush1.bf16.msra.mxu0 0
      %1033 = vmatprep.subr.bf16.mxu0 0
      %1034 = vmatpush1.bf16.msra.mxu0 0
      %1035 = vmatprep.subr.bf16.mxu0 0
      %1036 = vmatpush1.bf16.msra.mxu0 0
      %1037 = vmatprep.subr.bf16.mxu0 0
      %1038 = vmatpush1.bf16.msra.mxu0 0
      %1039 = vmatprep.subr.bf16.mxu0 0
      %1040 = vmatpush1.bf16.msra.mxu0 0
      %1041 = vmatprep.subr.bf16.mxu0 0
      %1042 = vmatpush1.bf16.msra.mxu0 0
      %1043 = vmatprep.subr.bf16.mxu0 0
      %1044 = vmatpush1.bf16.msra.mxu0 0
      %1045 = vmatprep.subr.bf16.mxu0 0
      %1046 = vmatpush1.bf16.msra.mxu0 0
      %1047 = vmatprep.subr.bf16.mxu0 0
      %1048 = vmatpush1.bf16.msra.mxu0 0
      %1049 = vmatprep.subr.bf16.mxu0 0
      %1050 = vmatpush1.bf16.msra.mxu0 0
      %1051 = vmatprep.subr.bf16.mxu0 0
      %1052 = vmatpush1.bf16.msra.mxu0 0
      %1053 = vmatprep.subr.bf16.mxu0 0
      %1054 = vmatpush1.bf16.msra.mxu0 0
      %1055 = vmatprep.subr.bf16.mxu0 0
      %1056 = vmatpush1.bf16.msra.mxu0 0
      %1057 = vmatprep.subr.bf16.mxu0 0
      %1058 = vmatpush1.bf16.msra.mxu0 0
      %1059 = vmatprep.subr.bf16.mxu0 0
      %1060 = vmatpush1.bf16.msra.mxu0 0
      %1061 = vmatprep.mubr.bf16.mxu0 0
      %1062 = vmatmul.mubr.bf16.gmra.mrb[0].mxu0 %v979
      %v1063 = vpop.f32.mrb[0].mxu0
      %v1064 = vadd.f32 0.0, %v1063
      %v1065 = vpop.f32.mrb[0].mxu0
      %v1066 = vpop.f32.mrb[0].mxu0
      %v1067 = vadd.f32 0.0, %v1066
      %v1068 = vpop.f32.mrb[0].mxu0
      %1069 = vmatprep.mubr.bf16.mxu0 0
      %1070 = vmatmul.mubr.bf16.gmra.mrb[0].mxu0 %v982
      %v1071 = vpop.f32.mrb[0].mxu0
      %v1072 = vadd.f32 0.0, %v1071
      %v1073 = vpop.f32.mrb[0].mxu0
      %v1074 = vpop.f32.mrb[0].mxu0
      %v1075 = vadd.f32 0.0, %v1074
      %v1076 = vpop.f32.mrb[0].mxu0
      %1077 = vmatprep.mubr.bf16.mxu0 0
      %1078 = vmatmul.mubr.bf16.gmra.mrb[0].mxu0 %v985
      %v1079 = vpop.f32.mrb[0].mxu0
      %v1080 = vadd.f32 0.0, %v1079
      %v1081 = vpop.f32.mrb[0].mxu0
      %v1082 = vpop.f32.mrb[0].mxu0
      %v1083 = vadd.f32 0.0, %v1082
      %v1084 = vpop.f32.mrb[0].mxu0
      %1085 = vmatprep.mubr.bf16.mxu0 0
      %1086 = vmatmul.mubr.bf16.gmra.mrb[0].mxu0 %v988
      %v1087 = vpop.f32.mrb[0].mxu0
      %v1088 = vadd.f32 0.0, %v1087
      %v1089 = vpop.f32.mrb[0].mxu0
      %v1090 = vpop.f32.mrb[0].mxu0
      %v1091 = vadd.f32 0.0, %v1090
      %v1092 = vpop.f32.mrb[0].mxu0
      %1093 = vmatprep.mubr.bf16.mxu0 0
      %1094 = vmatmul.mubr.bf16.gmra.mrb[0].mxu0 %v991
      %v1095 = vpop.f32.mrb[0].mxu0
      %v1096 = vadd.f32 0.0, %v1095
      %v1097 = vpop.f32.mrb[0].mxu0
      %v1098 = vpop.f32.mrb[0].mxu0
      %v1099 = vadd.f32 0.0, %v1098
      %v1100 = vpop.f32.mrb[0].mxu0
      %1101 = vmatprep.mubr.bf16.mxu0 0
      %1102 = vmatmul.mubr.bf16.gmra.mrb[0].mxu0 %v994
      %v1103 = vpop.f32.mrb[0].mxu0
      %v1104 = vadd.f32 0.0, %v1103
      %v1105 = vpop.f32.mrb[0].mxu0
      %v1106 = vpop.f32.mrb[0].mxu0
      %v1107 = vadd.f32 0.0, %v1106
      %v1108 = vpop.f32.mrb[0].mxu0
      %1109 = vmatprep.mubr.bf16.mxu0 0
      %1110 = vmatmul.mubr.bf16.gmra.mrb[0].mxu0 %v997
      %v1111 = vpop.f32.mrb[0].mxu0
      %v1112 = vadd.f32 0.0, %v1111
      %v1113 = vpop.f32.mrb[0].mxu0
      %v1114 = vpop.f32.mrb[0].mxu0
      %v1115 = vadd.f32 0.0, %v1114
      %v1116 = vpop.f32.mrb[0].mxu0
      %1117 = vmatprep.mubr.bf16.mxu0 0
      %1118 = vmatmul.mubr.bf16.gmra.mrb[0].mxu0 %v1000
      %v1119 = vpop.f32.mrb[0].mxu0
      %v1120 = vadd.f32 0.0, %v1119
      %v1121 = vpop.f32.mrb[0].mxu0
      %v1122 = vpop.f32.mrb[0].mxu0
      %v1123 = vadd.f32 0.0, %v1122
      %v1124 = vpop.f32.mrb[0].mxu0
      %1125 = vmatprep.mubr.bf16.mxu0 0
      %1126 = vmatmul.mubr.bf16.gmra.mrb[0].mxu0 %v1003
      %v1127 = vpop.f32.mrb[0].mxu0
      %v1128 = vadd.f32 0.0, %v1127
      %v1129 = vpop.f32.mrb[0].mxu0
      %v1130 = vpop.f32.mrb[0].mxu0
      %v1131 = vadd.f32 0.0, %v1130
      %v1132 = vpop.f32.mrb[0].mxu0
      %1133 = vmatprep.mubr.bf16.mxu0 0
      %1134 = vmatmul.mubr.bf16.gmra.mrb[0].mxu0 %v1006
      %v1135 = vpop.f32.mrb[0].mxu0
      %v1136 = vadd.f32 0.0, %v1135
      %v1137 = vpop.f32.mrb[0].mxu0
      %v1138 = vpop.f32.mrb[0].mxu0
      %v1139 = vadd.f32 0.0, %v1138
      %v1140 = vpop.f32.mrb[0].mxu0
      %1141 = vmatprep.mubr.bf16.mxu0 0
      %1142 = vmatmul.mubr.bf16.gmra.mrb[0].mxu0 %v1009
      %v1143 = vpop.f32.mrb[0].mxu0
      %v1144 = vadd.f32 0.0, %v1143
      %v1145 = vpop.f32.mrb[0].mxu0
      %v1146 = vpop.f32.mrb[0].mxu0
      %v1147 = vadd.f32 0.0, %v1146
      %v1148 = vpop.f32.mrb[0].mxu0
      %1149 = vmatprep.mubr.bf16.mxu0 0
      %1150 = vmatmul.mubr.bf16.gmra.mrb[0].mxu0 %v1012
      %v1151 = vpop.f32.mrb[0].mxu0
      %v1152 = vadd.f32 0.0, %v1151
      %v1153 = vpop.f32.mrb[0].mxu0
      %v1154 = vpop.f32.mrb[0].mxu0
      %v1155 = vadd.f32 0.0, %v1154
      %v1156 = vpop.f32.mrb[0].mxu0
      %1157 = vmatprep.mubr.bf16.mxu0 0
      %1158 = vmatmul.mubr.bf16.gmra.mrb[0].mxu0 %v1015
      %v1159 = vpop.f32.mrb[0].mxu0
      %v1160 = vadd.f32 0.0, %v1159
      %v1161 = vpop.f32.mrb[0].mxu0
      %v1162 = vpop.f32.mrb[0].mxu0
      %v1163 = vadd.f32 0.0, %v1162
      %v1164 = vpop.f32.mrb[0].mxu0
      %1165 = vmatprep.mubr.bf16.mxu0 0
      %1166 = vmatmul.mubr.bf16.gmra.mrb[0].mxu0 %v1018
      %v1167 = vpop.f32.mrb[0].mxu0
      %v1168 = vadd.f32 0.0, %v1167
      %v1169 = vpop.f32.mrb[0].mxu0
      %v1170 = vpop.f32.mrb[0].mxu0
      %v1171 = vadd.f32 0.0, %v1170
      %v1172 = vpop.f32.mrb[0].mxu0
      %1173 = vmatprep.mubr.bf16.mxu0 0
      %1174 = vmatmul.mubr.bf16.gmra.mrb[0].mxu0 %v1021
      %v1175 = vpop.f32.mrb[0].mxu0
      %v1176 = vadd.f32 0.0, %v1175
      %v1177 = vpop.f32.mrb[0].mxu0
      %v1178 = vpop.f32.mrb[0].mxu0
      %v1179 = vadd.f32 0.0, %v1178
      %v1180 = vpop.f32.mrb[0].mxu0
      %1181 = vmatprep.mubr.bf16.mxu0 0
      %1182 = vmatmul.mubr.bf16.gmra.mrb[0].mxu0 %v1024
      %v1183 = vpop.f32.mrb[0].mxu0
      %v1184 = vadd.f32 0.0, %v1183
      %v1185 = vpop.f32.mrb[0].mxu0
      %v1186 = vpop.f32.mrb[0].mxu0
      %v1187 = vadd.f32 0.0, %v1186
      %v1188 = vpop.f32.mrb[0].mxu0
      %1189 = vdwg.mxu0
      %v1190 = vld [vmem:[#allocation2] sm:$0xff]
      %v1191 = vld [vmem:[#allocation2 + $0x8] sm:$0xff]
      %v1192 = vld [vmem:[#allocation2 + $0x10] sm:$0xff]
      %v1193 = vld [vmem:[#allocation2 + $0x18] sm:$0xff]
      %v1194 = vld [vmem:[#allocation2 + $0x20] sm:$0xff]
      %v1195 = vld [vmem:[#allocation2 + $0x28] sm:$0xff]
      %v1196 = vld [vmem:[#allocation2 + $0x30] sm:$0xff]
      %v1197 = vld [vmem:[#allocation2 + $0x38] sm:$0xff]
      %v1198 = vld [vmem:[#allocation2 + $0x40] sm:$0xff]
      %v1199 = vld [vmem:[#allocation2 + $0x48] sm:$0xff]
      %v1200 = vld [vmem:[#allocation2 + $0x50] sm:$0xff]
      %v1201 = vld [vmem:[#allocation2 + $0x58] sm:$0xff]
      %v1202 = vld [vmem:[#allocation2 + $0x60] sm:$0xff]
      %v1203 = vld [vmem:[#allocation2 + $0x68] sm:$0xff]
      %v1204 = vld [vmem:[#allocation2 + $0x70] sm:$0xff]
      %v1205 = vld [vmem:[#allocation2 + $0x78] sm:$0xff]
      %v1206 = vld [vmem:[#allocation2 + $0x80] sm:$0xff]
      %v1207 = vld [vmem:[#allocation2 + $0x88] sm:$0xff]
      %v1208 = vld [vmem:[#allocation2 + $0x90] sm:$0xff]
      %v1209 = vld [vmem:[#allocation2 + $0x98] sm:$0xff]
      %v1210 = vld [vmem:[#allocation2 + $0xa0] sm:$0xff]
      %v1211 = vld [vmem:[#allocation2 + $0xa8] sm:$0xff]
      %v1212 = vld [vmem:[#allocation2 + $0xb0] sm:$0xff]
      %v1213 = vld [vmem:[#allocation2 + $0xb8] sm:$0xff]
      %v1214 = vld [vmem:[#allocation2 + $0xc0] sm:$0xff]
      %v1215 = vld [vmem:[#allocation2 + $0xc8] sm:$0xff]
      %v1216 = vld [vmem:[#allocation2 + $0xd0] sm:$0xff]
      %v1217 = vld [vmem:[#allocation2 + $0xd8] sm:$0xff]
      %v1218 = vld [vmem:[#allocation2 + $0xe0] sm:$0xff]
      %v1219 = vld [vmem:[#allocation2 + $0xe8] sm:$0xff]
      %v1220 = vld [vmem:[#allocation2 + $0xf0] sm:$0xff]
      %v1221 = vld [vmem:[#allocation2 + $0xf8] sm:$0xff]
      %v1222 = vadd.f32 %v1190, %v1064
      %v1223 = vadd.f32 %v1191, %v1067
      %v1224 = vadd.f32 %v1192, %v1072
      %v1225 = vadd.f32 %v1193, %v1075
      %v1226 = vadd.f32 %v1194, %v1080
      %v1227 = vadd.f32 %v1195, %v1083
      %v1228 = vadd.f32 %v1196, %v1088
      %v1229 = vadd.f32 %v1197, %v1091
      %v1230 = vadd.f32 %v1198, %v1096
      %v1231 = vadd.f32 %v1199, %v1099
      %v1232 = vadd.f32 %v1200, %v1104
      %v1233 = vadd.f32 %v1201, %v1107
      %v1234 = vadd.f32 %v1202, %v1112
      %v1235 = vadd.f32 %v1203, %v1115
      %v1236 = vadd.f32 %v1204, %v1120
      %v1237 = vadd.f32 %v1205, %v1123
      %v1238 = vadd.f32 %v1206, %v1128
      %v1239 = vadd.f32 %v1207, %v1131
      %v1240 = vadd.f32 %v1208, %v1136
      %v1241 = vadd.f32 %v1209, %v1139
      %v1242 = vadd.f32 %v1210, %v1144
      %v1243 = vadd.f32 %v1211, %v1147
      %v1244 = vadd.f32 %v1212, %v1152
      %v1245 = vadd.f32 %v1213, %v1155
      %v1246 = vadd.f32 %v1214, %v1160
      %v1247 = vadd.f32 %v1215, %v1163
      %v1248 = vadd.f32 %v1216, %v1168
      %v1249 = vadd.f32 %v1217, %v1171
      %v1250 = vadd.f32 %v1218, %v1176
      %v1251 = vadd.f32 %v1219, %v1179
      %v1252 = vadd.f32 %v1220, %v1184
      %v1253 = vadd.f32 %v1221, %v1187
      %1254 = vst [vmem:[#allocation2] sm:$0xff] %v1222
      %1255 = vst [vmem:[#allocation2 + $0x8] sm:$0xff] %v1223
      %1256 = vst [vmem:[#allocation2 + $0x10] sm:$0xff] %v1224
      %1257 = vst [vmem:[#allocation2 + $0x18] sm:$0xff] %v1225
      %1258 = vst [vmem:[#allocation2 + $0x20] sm:$0xff] %v1226
      %1259 = vst [vmem:[#allocation2 + $0x28] sm:$0xff] %v1227
      %1260 = vst [vmem:[#allocation2 + $0x30] sm:$0xff] %v1228
      %1261 = vst [vmem:[#allocation2 + $0x38] sm:$0xff] %v1229
      %1262 = vst [vmem:[#allocation2 + $0x40] sm:$0xff] %v1230
      %1263 = vst [vmem:[#allocation2 + $0x48] sm:$0xff] %v1231
      %1264 = vst [vmem:[#allocation2 + $0x50] sm:$0xff] %v1232
      %1265 = vst [vmem:[#allocation2 + $0x58] sm:$0xff] %v1233
      %1266 = vst [vmem:[#allocation2 + $0x60] sm:$0xff] %v1234
      %1267 = vst [vmem:[#allocation2 + $0x68] sm:$0xff] %v1235
      %1268 = vst [vmem:[#allocation2 + $0x70] sm:$0xff] %v1236
      %1269 = vst [vmem:[#allocation2 + $0x78] sm:$0xff] %v1237
      %1270 = vst [vmem:[#allocation2 + $0x80] sm:$0xff] %v1238
      %1271 = vst [vmem:[#allocation2 + $0x88] sm:$0xff] %v1239
      %1272 = vst [vmem:[#allocation2 + $0x90] sm:$0xff] %v1240
      %1273 = vst [vmem:[#allocation2 + $0x98] sm:$0xff] %v1241
      %1274 = vst [vmem:[#allocation2 + $0xa0] sm:$0xff] %v1242
      %1275 = vst [vmem:[#allocation2 + $0xa8] sm:$0xff] %v1243
      %1276 = vst [vmem:[#allocation2 + $0xb0] sm:$0xff] %v1244
      %1277 = vst [vmem:[#allocation2 + $0xb8] sm:$0xff] %v1245
      %1278 = vst [vmem:[#allocation2 + $0xc0] sm:$0xff] %v1246
      %1279 = vst [vmem:[#allocation2 + $0xc8] sm:$0xff] %v1247
      %1280 = vst [vmem:[#allocation2 + $0xd0] sm:$0xff] %v1248
      %1281 = vst [vmem:[#allocation2 + $0xd8] sm:$0xff] %v1249
      %1282 = vst [vmem:[#allocation2 + $0xe0] sm:$0xff] %v1250
      %1283 = vst [vmem:[#allocation2 + $0xe8] sm:$0xff] %v1251
      %1284 = vst [vmem:[#allocation2 + $0xf0] sm:$0xff] %v1252
      %1285 = vst [vmem:[#allocation2 + $0xf8] sm:$0xff] %v1253
      %v1286 = vld [vmem:[%s230] sm:$0xc]
      %v1287 = vld [vmem:[%s230 + $0x4] sm:$0xf]
      %v1288 = vld [vmem:[%s230 + $0x8] sm:$0xf]
      %v1289 = vld [vmem:[%s230 + $0xc] sm:$0xf]
      %v1290 = vld [vmem:[%s230 + $0x10] sm:$0xf]
      %v1291 = vld [vmem:[%s230 + $0x14] sm:$0xf]
      %v1292 = vld [vmem:[%s230 + $0x18] sm:$0xf]
      %v1293 = vld [vmem:[%s230 + $0x1c] sm:$0xf]
      %v1294 = vld [vmem:[%s230 + $0x20] sm:$0xf]
      %v1295 = vld [vmem:[%s230 + $0x24] sm:$0xf]
      %v1296 = vld [vmem:[%s230 + $0x28] sm:$0xf]
      %v1297 = vld [vmem:[%s230 + $0x2c] sm:$0xf]
      %v1298 = vld [vmem:[%s230 + $0x30] sm:$0xf]
      %v1299 = vld [vmem:[%s230 + $0x34] sm:$0xf]
      %v1300 = vld [vmem:[%s230 + $0x38] sm:$0xf]
      %v1301 = vld [vmem:[%s230 + $0x3c] sm:$0xf]
      %v1302 = vld [vmem:[%s230 + $0x40] sm:$0xf]
      %v1303 = vld [vmem:[%s230 + $0x44] sm:$0xf]
      %v1304 = vld [vmem:[%s230 + $0x48] sm:$0xf]
      %v1305 = vld [vmem:[%s230 + $0x4c] sm:$0xf]
      %v1306 = vld [vmem:[%s230 + $0x50] sm:$0xf]
      %v1307 = vld [vmem:[%s230 + $0x54] sm:$0xf]
      %v1308 = vld [vmem:[%s230 + $0x58] sm:$0xf]
      %v1309 = vld [vmem:[%s230 + $0x5c] sm:$0xf]
      %v1310 = vld [vmem:[%s230 + $0x60] sm:$0xf]
      %v1311 = vld [vmem:[%s230 + $0x64] sm:$0xf]
      %v1312 = vld [vmem:[%s230 + $0x68] sm:$0xf]
      %v1313 = vld [vmem:[%s230 + $0x6c] sm:$0xf]
      %v1314 = vld [vmem:[%s230 + $0x70] sm:$0xf]
      %v1315 = vld [vmem:[%s230 + $0x74] sm:$0xf]
      %v1316 = vld [vmem:[%s230 + $0x78] sm:$0xf]
      %v1317 = vld [vmem:[%s230 + $0x7c] sm:$0xf]
      %v1318 = vld [vmem:[%s230 + $0x80] sm:$0x3]
      %s1319 = scalar_lea.vmem %s1, 4
      %v1320 = vld [vmem:[%s1319] sm:$0x3]
      %v1354 = vunpack.c.l.b16 %v1286
      %v1355 = vunpack.c.l.b16 %v1287
      %v1356 = vunpack.c.l.b16 %v1288
      %v1357 = vunpack.c.l.b16 %v1289
      %v1358 = vunpack.c.l.b16 %v1290
      %v1359 = vunpack.c.l.b16 %v1291
      %v1360 = vunpack.c.l.b16 %v1292
      %v1361 = vunpack.c.l.b16 %v1293
      %v1362 = vunpack.c.l.b16 %v1294
      %v1363 = vunpack.c.l.b16 %v1295
      %v1364 = vunpack.c.l.b16 %v1296
      %v1365 = vunpack.c.l.b16 %v1297
      %v1366 = vunpack.c.l.b16 %v1298
      %v1367 = vunpack.c.l.b16 %v1299
      %v1368 = vunpack.c.l.b16 %v1300
      %v1369 = vunpack.c.l.b16 %v1301
      %v1370 = vunpack.c.l.b16 %v1302
      %v1371 = vunpack.c.l.b16 %v1303
      %v1372 = vunpack.c.l.b16 %v1304
      %v1373 = vunpack.c.l.b16 %v1305
      %v1374 = vunpack.c.l.b16 %v1306
      %v1375 = vunpack.c.l.b16 %v1307
      %v1376 = vunpack.c.l.b16 %v1308
      %v1377 = vunpack.c.l.b16 %v1309
      %v1378 = vunpack.c.l.b16 %v1310
      %v1379 = vunpack.c.l.b16 %v1311
      %v1380 = vunpack.c.l.b16 %v1312
      %v1381 = vunpack.c.l.b16 %v1313
      %v1382 = vunpack.c.l.b16 %v1314
      %v1383 = vunpack.c.l.b16 %v1315
      %v1384 = vunpack.c.l.b16 %v1316
      %v1385 = vunpack.c.l.b16 %v1317
      %v1386 = vunpack.c.l.b16 %v1318
      %v1387 = vpack.c.b16 %v1355, %v1354
      %v1388 = vpack.c.b16 %v1357, %v1356
      %v1389 = vpack.c.b16 %v1359, %v1358
      %v1390 = vpack.c.b16 %v1361, %v1360
      %v1391 = vpack.c.b16 %v1363, %v1362
      %v1392 = vpack.c.b16 %v1365, %v1364
      %v1393 = vpack.c.b16 %v1367, %v1366
      %v1394 = vpack.c.b16 %v1369, %v1368
      %v1395 = vpack.c.b16 %v1371, %v1370
      %v1396 = vpack.c.b16 %v1373, %v1372
      %v1397 = vpack.c.b16 %v1375, %v1374
      %v1398 = vpack.c.b16 %v1377, %v1376
      %v1399 = vpack.c.b16 %v1379, %v1378
      %v1400 = vpack.c.b16 %v1381, %v1380
      %v1401 = vpack.c.b16 %v1383, %v1382
      %v1402 = vpack.c.b16 %v1385, %v1384
      %v1403 = vpack.c.b16 %v1386, %v1386
      %vm1404 = vcmask 1045504
      %v1405 = vrot.slane %v1387, 2
      %v1406 = vrot.slane %v1388, 2
      %v1407 = vsel %vm1404, %v1405, %v1406
      %v1408 = vrot.slane %v1389, 2
      %v1409 = vsel %vm1404, %v1406, %v1408
      %v1410 = vrot.slane %v1390, 2
      %v1411 = vsel %vm1404, %v1408, %v1410
      %v1412 = vrot.slane %v1391, 2
      %v1413 = vsel %vm1404, %v1410, %v1412
      %v1414 = vrot.slane %v1392, 2
      %v1415 = vsel %vm1404, %v1412, %v1414
      %v1416 = vrot.slane %v1393, 2
      %v1417 = vsel %vm1404, %v1414, %v1416
      %v1418 = vrot.slane %v1394, 2
      %v1419 = vsel %vm1404, %v1416, %v1418
      %v1420 = vrot.slane %v1395, 2
      %v1421 = vsel %vm1404, %v1418, %v1420
      %v1422 = vrot.slane %v1396, 2
      %v1423 = vsel %vm1404, %v1420, %v1422
      %v1424 = vrot.slane %v1397, 2
      %v1425 = vsel %vm1404, %v1422, %v1424
      %v1426 = vrot.slane %v1398, 2
      %v1427 = vsel %vm1404, %v1424, %v1426
      %v1428 = vrot.slane %v1399, 2
      %v1429 = vsel %vm1404, %v1426, %v1428
      %v1430 = vrot.slane %v1400, 2
      %v1431 = vsel %vm1404, %v1428, %v1430
      %v1432 = vrot.slane %v1401, 2
      %v1433 = vsel %vm1404, %v1430, %v1432
      %v1434 = vrot.slane %v1402, 2
      %v1435 = vsel %vm1404, %v1432, %v1434
      %v1436 = vrot.slane %v1403, 2
      %v1437 = vsel %vm1404, %v1434, %v1436
      %v1439 = vsel %vm356, %v1407, 0
      %v1442 = vsel %vm356, %v1409, 0
      %v1445 = vsel %vm356, %v1411, 0
      %v1448 = vsel %vm356, %v1413, 0
      %v1451 = vsel %vm356, %v1415, 0
      %v1454 = vsel %vm356, %v1417, 0
      %v1457 = vsel %vm356, %v1419, 0
      %v1460 = vsel %vm356, %v1421, 0
      %v1463 = vsel %vm356, %v1423, 0
      %v1466 = vsel %vm356, %v1425, 0
      %v1469 = vsel %vm356, %v1427, 0
      %v1472 = vsel %vm356, %v1429, 0
      %v1475 = vsel %vm356, %v1431, 0
      %v1478 = vsel %vm356, %v1433, 0
      %v1481 = vsel %vm356, %v1435, 0
      %v1484 = vsel %vm356, %v1437, 0
      %v1487 = vsel %vm405, %v1320, 0
      %1489 = vmatprep.subr.bf16.mxu0 0
      %1490 = vmatpush1.bf16.msra.mxu0 %v1487
      %1491 = vmatprep.subr.bf16.mxu0 0
      %1492 = vmatpush1.bf16.msra.mxu0 0
      %1493 = vmatprep.subr.bf16.mxu0 0
      %1494 = vmatpush1.bf16.msra.mxu0 0
      %1495 = vmatprep.subr.bf16.mxu0 0
      %1496 = vmatpush1.bf16.msra.mxu0 0
      %1497 = vmatprep.subr.bf16.mxu0 0
      %1498 = vmatpush1.bf16.msra.mxu0 0
      %1499 = vmatprep.subr.bf16.mxu0 0
      %1500 = vmatpush1.bf16.msra.mxu0 0
      %1501 = vmatprep.subr.bf16.mxu0 0
      %1502 = vmatpush1.bf16.msra.mxu0 0
      %1503 = vmatprep.subr.bf16.mxu0 0
      %1504 = vmatpush1.bf16.msra.mxu0 0
      %1505 = vmatprep.subr.bf16.mxu0 0
      %1506 = vmatpush1.bf16.msra.mxu0 0
      %1507 = vmatprep.subr.bf16.mxu0 0
      %1508 = vmatpush1.bf16.msra.mxu0 0
      %1509 = vmatprep.subr.bf16.mxu0 0
      %1510 = vmatpush1.bf16.msra.mxu0 0
      %1511 = vmatprep.subr.bf16.mxu0 0
      %1512 = vmatpush1.bf16.msra.mxu0 0
      %1513 = vmatprep.subr.bf16.mxu0 0
      %1514 = vmatpush1.bf16.msra.mxu0 0
      %1515 = vmatprep.subr.bf16.mxu0 0
      %1516 = vmatpush1.bf16.msra.mxu0 0
      %1517 = vmatprep.subr.bf16.mxu0 0
      %1518 = vmatpush1.bf16.msra.mxu0 0
      %1519 = vmatprep.subr.bf16.mxu0 0
      %1520 = vmatpush1.bf16.msra.mxu0 0
      %1521 = vmatprep.mubr.bf16.mxu0 0
      %1522 = vmatmul.mubr.bf16.gmra.mrb[0].mxu0 %v1439
      %v1523 = vpop.f32.mrb[0].mxu0
      %v1524 = vadd.f32 0.0, %v1523
      %v1525 = vpop.f32.mrb[0].mxu0
      %v1526 = vpop.f32.mrb[0].mxu0
      %v1527 = vadd.f32 0.0, %v1526
      %v1528 = vpop.f32.mrb[0].mxu0
      %1529 = vmatprep.mubr.bf16.mxu0 0
      %1530 = vmatmul.mubr.bf16.gmra.mrb[0].mxu0 %v1442
      %v1531 = vpop.f32.mrb[0].mxu0
      %v1532 = vadd.f32 0.0, %v1531
      %v1533 = vpop.f32.mrb[0].mxu0
      %v1534 = vpop.f32.mrb[0].mxu0
      %v1535 = vadd.f32 0.0, %v1534
      %v1536 = vpop.f32.mrb[0].mxu0
      %1537 = vmatprep.mubr.bf16.mxu0 0
      %1538 = vmatmul.mubr.bf16.gmra.mrb[0].mxu0 %v1445
      %v1539 = vpop.f32.mrb[0].mxu0
      %v1540 = vadd.f32 0.0, %v1539
      %v1541 = vpop.f32.mrb[0].mxu0
      %v1542 = vpop.f32.mrb[0].mxu0
      %v1543 = vadd.f32 0.0, %v1542
      %v1544 = vpop.f32.mrb[0].mxu0
      %1545 = vmatprep.mubr.bf16.mxu0 0
      %1546 = vmatmul.mubr.bf16.gmra.mrb[0].mxu0 %v1448
      %v1547 = vpop.f32.mrb[0].mxu0
      %v1548 = vadd.f32 0.0, %v1547
      %v1549 = vpop.f32.mrb[0].mxu0
      %v1550 = vpop.f32.mrb[0].mxu0
      %v1551 = vadd.f32 0.0, %v1550
      %v1552 = vpop.f32.mrb[0].mxu0
      %1553 = vmatprep.mubr.bf16.mxu0 0
      %1554 = vmatmul.mubr.bf16.gmra.mrb[0].mxu0 %v1451
      %v1555 = vpop.f32.mrb[0].mxu0
      %v1556 = vadd.f32 0.0, %v1555
      %v1557 = vpop.f32.mrb[0].mxu0
      %v1558 = vpop.f32.mrb[0].mxu0
      %v1559 = vadd.f32 0.0, %v1558
      %v1560 = vpop.f32.mrb[0].mxu0
      %1561 = vmatprep.mubr.bf16.mxu0 0
      %1562 = vmatmul.mubr.bf16.gmra.mrb[0].mxu0 %v1454
      %v1563 = vpop.f32.mrb[0].mxu0
      %v1564 = vadd.f32 0.0, %v1563
      %v1565 = vpop.f32.mrb[0].mxu0
      %v1566 = vpop.f32.mrb[0].mxu0
      %v1567 = vadd.f32 0.0, %v1566
      %v1568 = vpop.f32.mrb[0].mxu0
      %1569 = vmatprep.mubr.bf16.mxu0 0
      %1570 = vmatmul.mubr.bf16.gmra.mrb[0].mxu0 %v1457
      %v1571 = vpop.f32.mrb[0].mxu0
      %v1572 = vadd.f32 0.0, %v1571
      %v1573 = vpop.f32.mrb[0].mxu0
      %v1574 = vpop.f32.mrb[0].mxu0
      %v1575 = vadd.f32 0.0, %v1574
      %v1576 = vpop.f32.mrb[0].mxu0
      %1577 = vmatprep.mubr.bf16.mxu0 0
      %1578 = vmatmul.mubr.bf16.gmra.mrb[0].mxu0 %v1460
      %v1579 = vpop.f32.mrb[0].mxu0
      %v1580 = vadd.f32 0.0, %v1579
      %v1581 = vpop.f32.mrb[0].mxu0
      %v1582 = vpop.f32.mrb[0].mxu0
      %v1583 = vadd.f32 0.0, %v1582
      %v1584 = vpop.f32.mrb[0].mxu0
      %1585 = vmatprep.mubr.bf16.mxu0 0
      %1586 = vmatmul.mubr.bf16.gmra.mrb[0].mxu0 %v1463
      %v1587 = vpop.f32.mrb[0].mxu0
      %v1588 = vadd.f32 0.0, %v1587
      %v1589 = vpop.f32.mrb[0].mxu0
      %v1590 = vpop.f32.mrb[0].mxu0
      %v1591 = vadd.f32 0.0, %v1590
      %v1592 = vpop.f32.mrb[0].mxu0
      %1593 = vmatprep.mubr.bf16.mxu0 0
      %1594 = vmatmul.mubr.bf16.gmra.mrb[0].mxu0 %v1466
      %v1595 = vpop.f32.mrb[0].mxu0
      %v1596 = vadd.f32 0.0, %v1595
      %v1597 = vpop.f32.mrb[0].mxu0
      %v1598 = vpop.f32.mrb[0].mxu0
      %v1599 = vadd.f32 0.0, %v1598
      %v1600 = vpop.f32.mrb[0].mxu0
      %1601 = vmatprep.mubr.bf16.mxu0 0
      %1602 = vmatmul.mubr.bf16.gmra.mrb[0].mxu0 %v1469
      %v1603 = vpop.f32.mrb[0].mxu0
      %v1604 = vadd.f32 0.0, %v1603
      %v1605 = vpop.f32.mrb[0].mxu0
      %v1606 = vpop.f32.mrb[0].mxu0
      %v1607 = vadd.f32 0.0, %v1606
      %v1608 = vpop.f32.mrb[0].mxu0
      %1609 = vmatprep.mubr.bf16.mxu0 0
      %1610 = vmatmul.mubr.bf16.gmra.mrb[0].mxu0 %v1472
      %v1611 = vpop.f32.mrb[0].mxu0
      %v1612 = vadd.f32 0.0, %v1611
      %v1613 = vpop.f32.mrb[0].mxu0
      %v1614 = vpop.f32.mrb[0].mxu0
      %v1615 = vadd.f32 0.0, %v1614
      %v1616 = vpop.f32.mrb[0].mxu0
      %1617 = vmatprep.mubr.bf16.mxu0 0
      %1618 = vmatmul.mubr.bf16.gmra.mrb[0].mxu0 %v1475
      %v1619 = vpop.f32.mrb[0].mxu0
      %v1620 = vadd.f32 0.0, %v1619
      %v1621 = vpop.f32.mrb[0].mxu0
      %v1622 = vpop.f32.mrb[0].mxu0
      %v1623 = vadd.f32 0.0, %v1622
      %v1624 = vpop.f32.mrb[0].mxu0
      %1625 = vmatprep.mubr.bf16.mxu0 0
      %1626 = vmatmul.mubr.bf16.gmra.mrb[0].mxu0 %v1478
      %v1627 = vpop.f32.mrb[0].mxu0
      %v1628 = vadd.f32 0.0, %v1627
      %v1629 = vpop.f32.mrb[0].mxu0
      %v1630 = vpop.f32.mrb[0].mxu0
      %v1631 = vadd.f32 0.0, %v1630
      %v1632 = vpop.f32.mrb[0].mxu0
      %1633 = vmatprep.mubr.bf16.mxu0 0
      %1634 = vmatmul.mubr.bf16.gmra.mrb[0].mxu0 %v1481
      %v1635 = vpop.f32.mrb[0].mxu0
      %v1636 = vadd.f32 0.0, %v1635
      %v1637 = vpop.f32.mrb[0].mxu0
      %v1638 = vpop.f32.mrb[0].mxu0
      %v1639 = vadd.f32 0.0, %v1638
      %v1640 = vpop.f32.mrb[0].mxu0
      %1641 = vmatprep.mubr.bf16.mxu0 0
      %1642 = vmatmul.mubr.bf16.gmra.mrb[0].mxu0 %v1484
      %v1643 = vpop.f32.mrb[0].mxu0
      %v1644 = vadd.f32 0.0, %v1643
      %v1645 = vpop.f32.mrb[0].mxu0
      %v1646 = vpop.f32.mrb[0].mxu0
      %v1647 = vadd.f32 0.0, %v1646
      %v1648 = vpop.f32.mrb[0].mxu0
      %1649 = vdwg.mxu0
      %s1650 = scalar_lea.vmem %s2, 256
      %v1651 = vld [vmem:[%s1650] sm:$0xff]
      %v1652 = vld [vmem:[%s1650 + $0x8] sm:$0xff]
      %v1653 = vld [vmem:[%s1650 + $0x10] sm:$0xff]
      %v1654 = vld [vmem:[%s1650 + $0x18] sm:$0xff]
      %v1655 = vld [vmem:[%s1650 + $0x20] sm:$0xff]
      %v1656 = vld [vmem:[%s1650 + $0x28] sm:$0xff]
      %v1657 = vld [vmem:[%s1650 + $0x30] sm:$0xff]
      %v1658 = vld [vmem:[%s1650 + $0x38] sm:$0xff]
      %v1659 = vld [vmem:[%s1650 + $0x40] sm:$0xff]
      %v1660 = vld [vmem:[%s1650 + $0x48] sm:$0xff]
      %v1661 = vld [vmem:[%s1650 + $0x50] sm:$0xff]
      %v1662 = vld [vmem:[%s1650 + $0x58] sm:$0xff]
      %v1663 = vld [vmem:[%s1650 + $0x60] sm:$0xff]
      %v1664 = vld [vmem:[%s1650 + $0x68] sm:$0xff]
      %v1665 = vld [vmem:[%s1650 + $0x70] sm:$0xff]
      %v1666 = vld [vmem:[%s1650 + $0x78] sm:$0xff]
      %v1667 = vld [vmem:[%s1650 + $0x80] sm:$0xff]
      %v1668 = vld [vmem:[%s1650 + $0x88] sm:$0xff]
      %v1669 = vld [vmem:[%s1650 + $0x90] sm:$0xff]
      %v1670 = vld [vmem:[%s1650 + $0x98] sm:$0xff]
      %v1671 = vld [vmem:[%s1650 + $0xa0] sm:$0xff]
      %v1672 = vld [vmem:[%s1650 + $0xa8] sm:$0xff]
      %v1673 = vld [vmem:[%s1650 + $0xb0] sm:$0xff]
      %v1674 = vld [vmem:[%s1650 + $0xb8] sm:$0xff]
      %v1675 = vld [vmem:[%s1650 + $0xc0] sm:$0xff]
      %v1676 = vld [vmem:[%s1650 + $0xc8] sm:$0xff]
      %v1677 = vld [vmem:[%s1650 + $0xd0] sm:$0xff]
      %v1678 = vld [vmem:[%s1650 + $0xd8] sm:$0xff]
      %v1679 = vld [vmem:[%s1650 + $0xe0] sm:$0xff]
      %v1680 = vld [vmem:[%s1650 + $0xe8] sm:$0xff]
      %v1681 = vld [vmem:[%s1650 + $0xf0] sm:$0xff]
      %v1682 = vld [vmem:[%s1650 + $0xf8] sm:$0xff]
      %1684 = vset.pattern.permute.xlu0 0
      %1685 = vperm.xlu0 %1684, %v1651
      %v1686 = vpop.permute.xlu0 %1685
      %1689 = vset.pattern.permute.xlu0 0
      %1690 = vperm.xlu0 %1689, %v1652
      %v1691 = vpop.permute.xlu0 %1690
      %1694 = vset.pattern.permute.xlu0 0
      %1695 = vperm.xlu0 %1694, %v1653
      %v1696 = vpop.permute.xlu0 %1695
      %1699 = vset.pattern.permute.xlu0 0
      %1700 = vperm.xlu0 %1699, %v1654
      %v1701 = vpop.permute.xlu0 %1700
      %1704 = vset.pattern.permute.xlu0 0
      %1705 = vperm.xlu0 %1704, %v1655
      %v1706 = vpop.permute.xlu0 %1705
      %1709 = vset.pattern.permute.xlu0 0
      %1710 = vperm.xlu0 %1709, %v1656
      %v1711 = vpop.permute.xlu0 %1710
      %1714 = vset.pattern.permute.xlu0 0
      %1715 = vperm.xlu0 %1714, %v1657
      %v1716 = vpop.permute.xlu0 %1715
      %1719 = vset.pattern.permute.xlu0 0
      %1720 = vperm.xlu0 %1719, %v1658
      %v1721 = vpop.permute.xlu0 %1720
      %1724 = vset.pattern.permute.xlu0 0
      %1725 = vperm.xlu0 %1724, %v1659
      %v1726 = vpop.permute.xlu0 %1725
      %1729 = vset.pattern.permute.xlu0 0
      %1730 = vperm.xlu0 %1729, %v1660
      %v1731 = vpop.permute.xlu0 %1730
      %1734 = vset.pattern.permute.xlu0 0
      %1735 = vperm.xlu0 %1734, %v1661
      %v1736 = vpop.permute.xlu0 %1735
      %1739 = vset.pattern.permute.xlu0 0
      %1740 = vperm.xlu0 %1739, %v1662
      %v1741 = vpop.permute.xlu0 %1740
      %1744 = vset.pattern.permute.xlu0 0
      %1745 = vperm.xlu0 %1744, %v1663
      %v1746 = vpop.permute.xlu0 %1745
      %1749 = vset.pattern.permute.xlu0 0
      %1750 = vperm.xlu0 %1749, %v1664
      %v1751 = vpop.permute.xlu0 %1750
      %1754 = vset.pattern.permute.xlu0 0
      %1755 = vperm.xlu0 %1754, %v1665
      %v1756 = vpop.permute.xlu0 %1755
      %1759 = vset.pattern.permute.xlu0 0
      %1760 = vperm.xlu0 %1759, %v1666
      %v1761 = vpop.permute.xlu0 %1760
      %1764 = vset.pattern.permute.xlu0 0
      %1765 = vperm.xlu0 %1764, %v1667
      %v1766 = vpop.permute.xlu0 %1765
      %1769 = vset.pattern.permute.xlu0 0
      %1770 = vperm.xlu0 %1769, %v1668
      %v1771 = vpop.permute.xlu0 %1770
      %1774 = vset.pattern.permute.xlu0 0
      %1775 = vperm.xlu0 %1774, %v1669
      %v1776 = vpop.permute.xlu0 %1775
      %1779 = vset.pattern.permute.xlu0 0
      %1780 = vperm.xlu0 %1779, %v1670
      %v1781 = vpop.permute.xlu0 %1780
      %1784 = vset.pattern.permute.xlu0 0
      %1785 = vperm.xlu0 %1784, %v1671
      %v1786 = vpop.permute.xlu0 %1785
      %1789 = vset.pattern.permute.xlu0 0
      %1790 = vperm.xlu0 %1789, %v1672
      %v1791 = vpop.permute.xlu0 %1790
      %1794 = vset.pattern.permute.xlu0 0
      %1795 = vperm.xlu0 %1794, %v1673
      %v1796 = vpop.permute.xlu0 %1795
      %1799 = vset.pattern.permute.xlu0 0
      %1800 = vperm.xlu0 %1799, %v1674
      %v1801 = vpop.permute.xlu0 %1800
      %1804 = vset.pattern.permute.xlu0 0
      %1805 = vperm.xlu0 %1804, %v1675
      %v1806 = vpop.permute.xlu0 %1805
      %1809 = vset.pattern.permute.xlu0 0
      %1810 = vperm.xlu0 %1809, %v1676
      %v1811 = vpop.permute.xlu0 %1810
      %1814 = vset.pattern.permute.xlu0 0
      %1815 = vperm.xlu0 %1814, %v1677
      %v1816 = vpop.permute.xlu0 %1815
      %1819 = vset.pattern.permute.xlu0 0
      %1820 = vperm.xlu0 %1819, %v1678
      %v1821 = vpop.permute.xlu0 %1820
      %1824 = vset.pattern.permute.xlu0 0
      %1825 = vperm.xlu0 %1824, %v1679
      %v1826 = vpop.permute.xlu0 %1825
      %1829 = vset.pattern.permute.xlu0 0
      %1830 = vperm.xlu0 %1829, %v1680
      %v1831 = vpop.permute.xlu0 %1830
      %1834 = vset.pattern.permute.xlu0 0
      %1835 = vperm.xlu0 %1834, %v1681
      %v1836 = vpop.permute.xlu0 %1835
      %1839 = vset.pattern.permute.xlu0 0
      %1840 = vperm.xlu0 %1839, %v1682
      %v1841 = vpop.permute.xlu0 %1840
      %v1843 = vmul.f32 %v1524, %v1686
      %v1844 = vmul.f32 %v1527, %v1691
      %v1845 = vmul.f32 %v1532, %v1696
      %v1846 = vmul.f32 %v1535, %v1701
      %v1847 = vmul.f32 %v1540, %v1706
      %v1848 = vmul.f32 %v1543, %v1711
      %v1849 = vmul.f32 %v1548, %v1716
      %v1850 = vmul.f32 %v1551, %v1721
      %v1851 = vmul.f32 %v1556, %v1726
      %v1852 = vmul.f32 %v1559, %v1731
      %v1853 = vmul.f32 %v1564, %v1736
      %v1854 = vmul.f32 %v1567, %v1741
      %v1855 = vmul.f32 %v1572, %v1746
      %v1856 = vmul.f32 %v1575, %v1751
      %v1857 = vmul.f32 %v1580, %v1756
      %v1858 = vmul.f32 %v1583, %v1761
      %v1859 = vmul.f32 %v1588, %v1766
      %v1860 = vmul.f32 %v1591, %v1771
      %v1861 = vmul.f32 %v1596, %v1776
      %v1862 = vmul.f32 %v1599, %v1781
      %v1863 = vmul.f32 %v1604, %v1786
      %v1864 = vmul.f32 %v1607, %v1791
      %v1865 = vmul.f32 %v1612, %v1796
      %v1866 = vmul.f32 %v1615, %v1801
      %v1867 = vmul.f32 %v1620, %v1806
      %v1868 = vmul.f32 %v1623, %v1811
      %v1869 = vmul.f32 %v1628, %v1816
      %v1870 = vmul.f32 %v1631, %v1821
      %v1871 = vmul.f32 %v1636, %v1826
      %v1872 = vmul.f32 %v1639, %v1831
      %v1873 = vmul.f32 %v1644, %v1836
      %v1874 = vmul.f32 %v1647, %v1841
      %v1875 = vld [vmem:[#allocation2] sm:$0xff]
      %v1876 = vld [vmem:[#allocation2 + $0x8] sm:$0xff]
      %v1877 = vld [vmem:[#allocation2 + $0x10] sm:$0xff]
      %v1878 = vld [vmem:[#allocation2 + $0x18] sm:$0xff]
      %v1879 = vld [vmem:[#allocation2 + $0x20] sm:$0xff]
      %v1880 = vld [vmem:[#allocation2 + $0x28] sm:$0xff]
      %v1881 = vld [vmem:[#allocation2 + $0x30] sm:$0xff]
      %v1882 = vld [vmem:[#allocation2 + $0x38] sm:$0xff]
      %v1883 = vld [vmem:[#allocation2 + $0x40] sm:$0xff]
      %v1884 = vld [vmem:[#allocation2 + $0x48] sm:$0xff]
      %v1885 = vld [vmem:[#allocation2 + $0x50] sm:$0xff]
      %v1886 = vld [vmem:[#allocation2 + $0x58] sm:$0xff]
      %v1887 = vld [vmem:[#allocation2 + $0x60] sm:$0xff]
      %v1888 = vld [vmem:[#allocation2 + $0x68] sm:$0xff]
      %v1889 = vld [vmem:[#allocation2 + $0x70] sm:$0xff]
      %v1890 = vld [vmem:[#allocation2 + $0x78] sm:$0xff]
      %v1891 = vld [vmem:[#allocation2 + $0x80] sm:$0xff]
      %v1892 = vld [vmem:[#allocation2 + $0x88] sm:$0xff]
      %v1893 = vld [vmem:[#allocation2 + $0x90] sm:$0xff]
      %v1894 = vld [vmem:[#allocation2 + $0x98] sm:$0xff]
      %v1895 = vld [vmem:[#allocation2 + $0xa0] sm:$0xff]
      %v1896 = vld [vmem:[#allocation2 + $0xa8] sm:$0xff]
      %v1897 = vld [vmem:[#allocation2 + $0xb0] sm:$0xff]
      %v1898 = vld [vmem:[#allocation2 + $0xb8] sm:$0xff]
      %v1899 = vld [vmem:[#allocation2 + $0xc0] sm:$0xff]
      %v1900 = vld [vmem:[#allocation2 + $0xc8] sm:$0xff]
      %v1901 = vld [vmem:[#allocation2 + $0xd0] sm:$0xff]
      %v1902 = vld [vmem:[#allocation2 + $0xd8] sm:$0xff]
      %v1903 = vld [vmem:[#allocation2 + $0xe0] sm:$0xff]
      %v1904 = vld [vmem:[#allocation2 + $0xe8] sm:$0xff]
      %v1905 = vld [vmem:[#allocation2 + $0xf0] sm:$0xff]
      %v1906 = vld [vmem:[#allocation2 + $0xf8] sm:$0xff]
      %v1907 = vadd.f32 %v1875, %v1843
      %v1908 = vadd.f32 %v1876, %v1844
      %v1909 = vadd.f32 %v1877, %v1845
      %v1910 = vadd.f32 %v1878, %v1846
      %v1911 = vadd.f32 %v1879, %v1847
      %v1912 = vadd.f32 %v1880, %v1848
      %v1913 = vadd.f32 %v1881, %v1849
      %v1914 = vadd.f32 %v1882, %v1850
      %v1915 = vadd.f32 %v1883, %v1851
      %v1916 = vadd.f32 %v1884, %v1852
      %v1917 = vadd.f32 %v1885, %v1853
      %v1918 = vadd.f32 %v1886, %v1854
      %v1919 = vadd.f32 %v1887, %v1855
      %v1920 = vadd.f32 %v1888, %v1856
      %v1921 = vadd.f32 %v1889, %v1857
      %v1922 = vadd.f32 %v1890, %v1858
      %v1923 = vadd.f32 %v1891, %v1859
      %v1924 = vadd.f32 %v1892, %v1860
      %v1925 = vadd.f32 %v1893, %v1861
      %v1926 = vadd.f32 %v1894, %v1862
      %v1927 = vadd.f32 %v1895, %v1863
      %v1928 = vadd.f32 %v1896, %v1864
      %v1929 = vadd.f32 %v1897, %v1865
      %v1930 = vadd.f32 %v1898, %v1866
      %v1931 = vadd.f32 %v1899, %v1867
      %v1932 = vadd.f32 %v1900, %v1868
      %v1933 = vadd.f32 %v1901, %v1869
      %v1934 = vadd.f32 %v1902, %v1870
      %v1935 = vadd.f32 %v1903, %v1871
      %v1936 = vadd.f32 %v1904, %v1872
      %v1937 = vadd.f32 %v1905, %v1873
      %v1938 = vadd.f32 %v1906, %v1874
      %1939 = vst [vmem:[#allocation2] sm:$0xff] %v1907
      %1940 = vst [vmem:[#allocation2 + $0x8] sm:$0xff] %v1908
      %1941 = vst [vmem:[#allocation2 + $0x10] sm:$0xff] %v1909
      %1942 = vst [vmem:[#allocation2 + $0x18] sm:$0xff] %v1910
      %1943 = vst [vmem:[#allocation2 + $0x20] sm:$0xff] %v1911
      %1944 = vst [vmem:[#allocation2 + $0x28] sm:$0xff] %v1912
      %1945 = vst [vmem:[#allocation2 + $0x30] sm:$0xff] %v1913
      %1946 = vst [vmem:[#allocation2 + $0x38] sm:$0xff] %v1914
      %1947 = vst [vmem:[#allocation2 + $0x40] sm:$0xff] %v1915
      %1948 = vst [vmem:[#allocation2 + $0x48] sm:$0xff] %v1916
      %1949 = vst [vmem:[#allocation2 + $0x50] sm:$0xff] %v1917
      %1950 = vst [vmem:[#allocation2 + $0x58] sm:$0xff] %v1918
      %1951 = vst [vmem:[#allocation2 + $0x60] sm:$0xff] %v1919
      %1952 = vst [vmem:[#allocation2 + $0x68] sm:$0xff] %v1920
      %1953 = vst [vmem:[#allocation2 + $0x70] sm:$0xff] %v1921
      %1954 = vst [vmem:[#allocation2 + $0x78] sm:$0xff] %v1922
      %1955 = vst [vmem:[#allocation2 + $0x80] sm:$0xff] %v1923
      %1956 = vst [vmem:[#allocation2 + $0x88] sm:$0xff] %v1924
      %1957 = vst [vmem:[#allocation2 + $0x90] sm:$0xff] %v1925
      %1958 = vst [vmem:[#allocation2 + $0x98] sm:$0xff] %v1926
      %1959 = vst [vmem:[#allocation2 + $0xa0] sm:$0xff] %v1927
      %1960 = vst [vmem:[#allocation2 + $0xa8] sm:$0xff] %v1928
      %1961 = vst [vmem:[#allocation2 + $0xb0] sm:$0xff] %v1929
      %1962 = vst [vmem:[#allocation2 + $0xb8] sm:$0xff] %v1930
      %1963 = vst [vmem:[#allocation2 + $0xc0] sm:$0xff] %v1931
      %1964 = vst [vmem:[#allocation2 + $0xc8] sm:$0xff] %v1932
      %1965 = vst [vmem:[#allocation2 + $0xd0] sm:$0xff] %v1933
      %1966 = vst [vmem:[#allocation2 + $0xd8] sm:$0xff] %v1934
      %1967 = vst [vmem:[#allocation2 + $0xe0] sm:$0xff] %v1935
      %1968 = vst [vmem:[#allocation2 + $0xe8] sm:$0xff] %v1936
      %1969 = vst [vmem:[#allocation2 + $0xf0] sm:$0xff] %v1937
      %1970 = vst [vmem:[#allocation2 + $0xf8] sm:$0xff] %v1938
      %v1971 = vld [vmem:[%s230 + $0x10] sm:$0xf]
      %v1972 = vld [vmem:[%s230 + $0x14] sm:$0xf]
      %v1973 = vld [vmem:[%s230 + $0x18] sm:$0xf]
      %v1974 = vld [vmem:[%s230 + $0x1c] sm:$0xf]
      %v1975 = vld [vmem:[%s230 + $0x20] sm:$0xf]
      %v1976 = vld [vmem:[%s230 + $0x24] sm:$0xf]
      %v1977 = vld [vmem:[%s230 + $0x28] sm:$0xf]
      %v1978 = vld [vmem:[%s230 + $0x2c] sm:$0xf]
      %v1979 = vld [vmem:[%s230 + $0x30] sm:$0xf]
      %v1980 = vld [vmem:[%s230 + $0x34] sm:$0xf]
      %v1981 = vld [vmem:[%s230 + $0x38] sm:$0xf]
      %v1982 = vld [vmem:[%s230 + $0x3c] sm:$0xf]
      %v1983 = vld [vmem:[%s230 + $0x40] sm:$0xf]
      %v1984 = vld [vmem:[%s230 + $0x44] sm:$0xf]
      %v1985 = vld [vmem:[%s230 + $0x48] sm:$0xf]
      %v1986 = vld [vmem:[%s230 + $0x4c] sm:$0xf]
      %v1987 = vld [vmem:[%s230 + $0x50] sm:$0xf]
      %v1988 = vld [vmem:[%s230 + $0x54] sm:$0xf]
      %v1989 = vld [vmem:[%s230 + $0x58] sm:$0xf]
      %v1990 = vld [vmem:[%s230 + $0x5c] sm:$0xf]
      %v1991 = vld [vmem:[%s230 + $0x60] sm:$0xf]
      %v1992 = vld [vmem:[%s230 + $0x64] sm:$0xf]
      %v1993 = vld [vmem:[%s230 + $0x68] sm:$0xf]
      %v1994 = vld [vmem:[%s230 + $0x6c] sm:$0xf]
      %v1995 = vld [vmem:[%s230 + $0x70] sm:$0xf]
      %v1996 = vld [vmem:[%s230 + $0x74] sm:$0xf]
      %v1997 = vld [vmem:[%s230 + $0x78] sm:$0xf]
      %v1998 = vld [vmem:[%s230 + $0x7c] sm:$0xf]
      %v1999 = vld [vmem:[%s230 + $0x80] sm:$0xf]
      %v2000 = vld [vmem:[%s230 + $0x84] sm:$0xf]
      %v2001 = vld [vmem:[%s230 + $0x88] sm:$0xf]
      %v2002 = vld [vmem:[%s230 + $0x8c] sm:$0xf]
      %s2003 = scalar_lea.vmem %s1, 6
      %v2004 = vld [vmem:[%s2003] sm:$0x3]
      %v2037 = vunpack.c.l.b16 %v1971
      %v2038 = vunpack.c.l.b16 %v1972
      %v2039 = vunpack.c.l.b16 %v1973
      %v2040 = vunpack.c.l.b16 %v1974
      %v2041 = vunpack.c.l.b16 %v1975
      %v2042 = vunpack.c.l.b16 %v1976
      %v2043 = vunpack.c.l.b16 %v1977
      %v2044 = vunpack.c.l.b16 %v1978
      %v2045 = vunpack.c.l.b16 %v1979
      %v2046 = vunpack.c.l.b16 %v1980
      %v2047 = vunpack.c.l.b16 %v1981
      %v2048 = vunpack.c.l.b16 %v1982
      %v2049 = vunpack.c.l.b16 %v1983
      %v2050 = vunpack.c.l.b16 %v1984
      %v2051 = vunpack.c.l.b16 %v1985
      %v2052 = vunpack.c.l.b16 %v1986
      %v2053 = vunpack.c.l.b16 %v1987
      %v2054 = vunpack.c.l.b16 %v1988
      %v2055 = vunpack.c.l.b16 %v1989
      %v2056 = vunpack.c.l.b16 %v1990
      %v2057 = vunpack.c.l.b16 %v1991
      %v2058 = vunpack.c.l.b16 %v1992
      %v2059 = vunpack.c.l.b16 %v1993
      %v2060 = vunpack.c.l.b16 %v1994
      %v2061 = vunpack.c.l.b16 %v1995
      %v2062 = vunpack.c.l.b16 %v1996
      %v2063 = vunpack.c.l.b16 %v1997
      %v2064 = vunpack.c.l.b16 %v1998
      %v2065 = vunpack.c.l.b16 %v1999
      %v2066 = vunpack.c.l.b16 %v2000
      %v2067 = vunpack.c.l.b16 %v2001
      %v2068 = vunpack.c.l.b16 %v2002
      %v2069 = vpack.c.b16 %v2038, %v2037
      %v2070 = vpack.c.b16 %v2040, %v2039
      %v2071 = vpack.c.b16 %v2042, %v2041
      %v2072 = vpack.c.b16 %v2044, %v2043
      %v2073 = vpack.c.b16 %v2046, %v2045
      %v2074 = vpack.c.b16 %v2048, %v2047
      %v2075 = vpack.c.b16 %v2050, %v2049
      %v2076 = vpack.c.b16 %v2052, %v2051
      %v2077 = vpack.c.b16 %v2054, %v2053
      %v2078 = vpack.c.b16 %v2056, %v2055
      %v2079 = vpack.c.b16 %v2058, %v2057
      %v2080 = vpack.c.b16 %v2060, %v2059
      %v2081 = vpack.c.b16 %v2062, %v2061
      %v2082 = vpack.c.b16 %v2064, %v2063
      %v2083 = vpack.c.b16 %v2066, %v2065
      %v2084 = vpack.c.b16 %v2068, %v2067
      %v2086 = vsel %vm356, %v2069, 0
      %v2089 = vsel %vm356, %v2070, 0
      %v2092 = vsel %vm356, %v2071, 0
      %v2095 = vsel %vm356, %v2072, 0
      %v2098 = vsel %vm356, %v2073, 0
      %v2101 = vsel %vm356, %v2074, 0
      %v2104 = vsel %vm356, %v2075, 0
      %v2107 = vsel %vm356, %v2076, 0
      %v2110 = vsel %vm356, %v2077, 0
      %v2113 = vsel %vm356, %v2078, 0
      %v2116 = vsel %vm356, %v2079, 0
      %v2119 = vsel %vm356, %v2080, 0
      %v2122 = vsel %vm356, %v2081, 0
      %v2125 = vsel %vm356, %v2082, 0
      %v2128 = vsel %vm356, %v2083, 0
      %v2131 = vsel %vm356, %v2084, 0
      %v2134 = vsel %vm405, %v2004, 0
      %2136 = vmatprep.subr.bf16.mxu0 0
      %2137 = vmatpush1.bf16.msra.mxu0 %v2134
      %2138 = vmatprep.subr.bf16.mxu0 0
      %2139 = vmatpush1.bf16.msra.mxu0 0
      %2140 = vmatprep.subr.bf16.mxu0 0
      %2141 = vmatpush1.bf16.msra.mxu0 0
      %2142 = vmatprep.subr.bf16.mxu0 0
      %2143 = vmatpush1.bf16.msra.mxu0 0
      %2144 = vmatprep.subr.bf16.mxu0 0
      %2145 = vmatpush1.bf16.msra.mxu0 0
      %2146 = vmatprep.subr.bf16.mxu0 0
      %2147 = vmatpush1.bf16.msra.mxu0 0
      %2148 = vmatprep.subr.bf16.mxu0 0
      %2149 = vmatpush1.bf16.msra.mxu0 0
      %2150 = vmatprep.subr.bf16.mxu0 0
      %2151 = vmatpush1.bf16.msra.mxu0 0
      %2152 = vmatprep.subr.bf16.mxu0 0
      %2153 = vmatpush1.bf16.msra.mxu0 0
      %2154 = vmatprep.subr.bf16.mxu0 0
      %2155 = vmatpush1.bf16.msra.mxu0 0
      %2156 = vmatprep.subr.bf16.mxu0 0
      %2157 = vmatpush1.bf16.msra.mxu0 0
      %2158 = vmatprep.subr.bf16.mxu0 0
      %2159 = vmatpush1.bf16.msra.mxu0 0
      %2160 = vmatprep.subr.bf16.mxu0 0
      %2161 = vmatpush1.bf16.msra.mxu0 0
      %2162 = vmatprep.subr.bf16.mxu0 0
      %2163 = vmatpush1.bf16.msra.mxu0 0
      %2164 = vmatprep.subr.bf16.mxu0 0
      %2165 = vmatpush1.bf16.msra.mxu0 0
      %2166 = vmatprep.subr.bf16.mxu0 0
      %2167 = vmatpush1.bf16.msra.mxu0 0
      %2168 = vmatprep.mubr.bf16.mxu0 0
      %2169 = vmatmul.mubr.bf16.gmra.mrb[0].mxu0 %v2086
      %v2170 = vpop.f32.mrb[0].mxu0
      %v2171 = vadd.f32 0.0, %v2170
      %v2172 = vpop.f32.mrb[0].mxu0
      %v2173 = vpop.f32.mrb[0].mxu0
      %v2174 = vadd.f32 0.0, %v2173
      %v2175 = vpop.f32.mrb[0].mxu0
      %2176 = vmatprep.mubr.bf16.mxu0 0
      %2177 = vmatmul.mubr.bf16.gmra.mrb[0].mxu0 %v2089
      %v2178 = vpop.f32.mrb[0].mxu0
      %v2179 = vadd.f32 0.0, %v2178
      %v2180 = vpop.f32.mrb[0].mxu0
      %v2181 = vpop.f32.mrb[0].mxu0
      %v2182 = vadd.f32 0.0, %v2181
      %v2183 = vpop.f32.mrb[0].mxu0
      %2184 = vmatprep.mubr.bf16.mxu0 0
      %2185 = vmatmul.mubr.bf16.gmra.mrb[0].mxu0 %v2092
      %v2186 = vpop.f32.mrb[0].mxu0
      %v2187 = vadd.f32 0.0, %v2186
      %v2188 = vpop.f32.mrb[0].mxu0
      %v2189 = vpop.f32.mrb[0].mxu0
      %v2190 = vadd.f32 0.0, %v2189
      %v2191 = vpop.f32.mrb[0].mxu0
      %2192 = vmatprep.mubr.bf16.mxu0 0
      %2193 = vmatmul.mubr.bf16.gmra.mrb[0].mxu0 %v2095
      %v2194 = vpop.f32.mrb[0].mxu0
      %v2195 = vadd.f32 0.0, %v2194
      %v2196 = vpop.f32.mrb[0].mxu0
      %v2197 = vpop.f32.mrb[0].mxu0
      %v2198 = vadd.f32 0.0, %v2197
      %v2199 = vpop.f32.mrb[0].mxu0
      %2200 = vmatprep.mubr.bf16.mxu0 0
      %2201 = vmatmul.mubr.bf16.gmra.mrb[0].mxu0 %v2098
      %v2202 = vpop.f32.mrb[0].mxu0
      %v2203 = vadd.f32 0.0, %v2202
      %v2204 = vpop.f32.mrb[0].mxu0
      %v2205 = vpop.f32.mrb[0].mxu0
      %v2206 = vadd.f32 0.0, %v2205
      %v2207 = vpop.f32.mrb[0].mxu0
      %2208 = vmatprep.mubr.bf16.mxu0 0
      %2209 = vmatmul.mubr.bf16.gmra.mrb[0].mxu0 %v2101
      %v2210 = vpop.f32.mrb[0].mxu0
      %v2211 = vadd.f32 0.0, %v2210
      %v2212 = vpop.f32.mrb[0].mxu0
      %v2213 = vpop.f32.mrb[0].mxu0
      %v2214 = vadd.f32 0.0, %v2213
      %v2215 = vpop.f32.mrb[0].mxu0
      %2216 = vmatprep.mubr.bf16.mxu0 0
      %2217 = vmatmul.mubr.bf16.gmra.mrb[0].mxu0 %v2104
      %v2218 = vpop.f32.mrb[0].mxu0
      %v2219 = vadd.f32 0.0, %v2218
      %v2220 = vpop.f32.mrb[0].mxu0
      %v2221 = vpop.f32.mrb[0].mxu0
      %v2222 = vadd.f32 0.0, %v2221
      %v2223 = vpop.f32.mrb[0].mxu0
      %2224 = vmatprep.mubr.bf16.mxu0 0
      %2225 = vmatmul.mubr.bf16.gmra.mrb[0].mxu0 %v2107
      %v2226 = vpop.f32.mrb[0].mxu0
      %v2227 = vadd.f32 0.0, %v2226
      %v2228 = vpop.f32.mrb[0].mxu0
      %v2229 = vpop.f32.mrb[0].mxu0
      %v2230 = vadd.f32 0.0, %v2229
      %v2231 = vpop.f32.mrb[0].mxu0
      %2232 = vmatprep.mubr.bf16.mxu0 0
      %2233 = vmatmul.mubr.bf16.gmra.mrb[0].mxu0 %v2110
      %v2234 = vpop.f32.mrb[0].mxu0
      %v2235 = vadd.f32 0.0, %v2234
      %v2236 = vpop.f32.mrb[0].mxu0
      %v2237 = vpop.f32.mrb[0].mxu0
      %v2238 = vadd.f32 0.0, %v2237
      %v2239 = vpop.f32.mrb[0].mxu0
      %2240 = vmatprep.mubr.bf16.mxu0 0
      %2241 = vmatmul.mubr.bf16.gmra.mrb[0].mxu0 %v2113
      %v2242 = vpop.f32.mrb[0].mxu0
      %v2243 = vadd.f32 0.0, %v2242
      %v2244 = vpop.f32.mrb[0].mxu0
      %v2245 = vpop.f32.mrb[0].mxu0
      %v2246 = vadd.f32 0.0, %v2245
      %v2247 = vpop.f32.mrb[0].mxu0
      %2248 = vmatprep.mubr.bf16.mxu0 0
      %2249 = vmatmul.mubr.bf16.gmra.mrb[0].mxu0 %v2116
      %v2250 = vpop.f32.mrb[0].mxu0
      %v2251 = vadd.f32 0.0, %v2250
      %v2252 = vpop.f32.mrb[0].mxu0
      %v2253 = vpop.f32.mrb[0].mxu0
      %v2254 = vadd.f32 0.0, %v2253
      %v2255 = vpop.f32.mrb[0].mxu0
      %2256 = vmatprep.mubr.bf16.mxu0 0
      %2257 = vmatmul.mubr.bf16.gmra.mrb[0].mxu0 %v2119
      %v2258 = vpop.f32.mrb[0].mxu0
      %v2259 = vadd.f32 0.0, %v2258
      %v2260 = vpop.f32.mrb[0].mxu0
      %v2261 = vpop.f32.mrb[0].mxu0
      %v2262 = vadd.f32 0.0, %v2261
      %v2263 = vpop.f32.mrb[0].mxu0
      %2264 = vmatprep.mubr.bf16.mxu0 0
      %2265 = vmatmul.mubr.bf16.gmra.mrb[0].mxu0 %v2122
      %v2266 = vpop.f32.mrb[0].mxu0
      %v2267 = vadd.f32 0.0, %v2266
      %v2268 = vpop.f32.mrb[0].mxu0
      %v2269 = vpop.f32.mrb[0].mxu0
      %v2270 = vadd.f32 0.0, %v2269
      %v2271 = vpop.f32.mrb[0].mxu0
      %2272 = vmatprep.mubr.bf16.mxu0 0
      %2273 = vmatmul.mubr.bf16.gmra.mrb[0].mxu0 %v2125
      %v2274 = vpop.f32.mrb[0].mxu0
      %v2275 = vadd.f32 0.0, %v2274
      %v2276 = vpop.f32.mrb[0].mxu0
      %v2277 = vpop.f32.mrb[0].mxu0
      %v2278 = vadd.f32 0.0, %v2277
      %v2279 = vpop.f32.mrb[0].mxu0
      %2280 = vmatprep.mubr.bf16.mxu0 0
      %2281 = vmatmul.mubr.bf16.gmra.mrb[0].mxu0 %v2128
      %v2282 = vpop.f32.mrb[0].mxu0
      %v2283 = vadd.f32 0.0, %v2282
      %v2284 = vpop.f32.mrb[0].mxu0
      %v2285 = vpop.f32.mrb[0].mxu0
      %v2286 = vadd.f32 0.0, %v2285
      %v2287 = vpop.f32.mrb[0].mxu0
      %2288 = vmatprep.mubr.bf16.mxu0 0
      %2289 = vmatmul.mubr.bf16.gmra.mrb[0].mxu0 %v2131
      %v2290 = vpop.f32.mrb[0].mxu0
      %v2291 = vadd.f32 0.0, %v2290
      %v2292 = vpop.f32.mrb[0].mxu0
      %v2293 = vpop.f32.mrb[0].mxu0
      %v2294 = vadd.f32 0.0, %v2293
      %v2295 = vpop.f32.mrb[0].mxu0
      %2296 = vdwg.mxu0
      %v2297 = vld [vmem:[%s2] sm:$0xff]
      %v2298 = vld [vmem:[%s2 + $0x8] sm:$0xff]
      %v2299 = vld [vmem:[%s2 + $0x10] sm:$0xff]
      %v2300 = vld [vmem:[%s2 + $0x18] sm:$0xff]
      %v2301 = vld [vmem:[%s2 + $0x20] sm:$0xff]
      %v2302 = vld [vmem:[%s2 + $0x28] sm:$0xff]
      %v2303 = vld [vmem:[%s2 + $0x30] sm:$0xff]
      %v2304 = vld [vmem:[%s2 + $0x38] sm:$0xff]
      %v2305 = vld [vmem:[%s2 + $0x40] sm:$0xff]
      %v2306 = vld [vmem:[%s2 + $0x48] sm:$0xff]
      %v2307 = vld [vmem:[%s2 + $0x50] sm:$0xff]
      %v2308 = vld [vmem:[%s2 + $0x58] sm:$0xff]
      %v2309 = vld [vmem:[%s2 + $0x60] sm:$0xff]
      %v2310 = vld [vmem:[%s2 + $0x68] sm:$0xff]
      %v2311 = vld [vmem:[%s2 + $0x70] sm:$0xff]
      %v2312 = vld [vmem:[%s2 + $0x78] sm:$0xff]
      %v2313 = vld [vmem:[%s2 + $0x80] sm:$0xff]
      %v2314 = vld [vmem:[%s2 + $0x88] sm:$0xff]
      %v2315 = vld [vmem:[%s2 + $0x90] sm:$0xff]
      %v2316 = vld [vmem:[%s2 + $0x98] sm:$0xff]
      %v2317 = vld [vmem:[%s2 + $0xa0] sm:$0xff]
      %v2318 = vld [vmem:[%s2 + $0xa8] sm:$0xff]
      %v2319 = vld [vmem:[%s2 + $0xb0] sm:$0xff]
      %v2320 = vld [vmem:[%s2 + $0xb8] sm:$0xff]
      %v2321 = vld [vmem:[%s2 + $0xc0] sm:$0xff]
      %v2322 = vld [vmem:[%s2 + $0xc8] sm:$0xff]
      %v2323 = vld [vmem:[%s2 + $0xd0] sm:$0xff]
      %v2324 = vld [vmem:[%s2 + $0xd8] sm:$0xff]
      %v2325 = vld [vmem:[%s2 + $0xe0] sm:$0xff]
      %v2326 = vld [vmem:[%s2 + $0xe8] sm:$0xff]
      %v2327 = vld [vmem:[%s2 + $0xf0] sm:$0xff]
      %v2328 = vld [vmem:[%s2 + $0xf8] sm:$0xff]
      %2330 = vset.pattern.permute.xlu0 0
      %2331 = vperm.xlu0 %2330, %v2297
      %v2332 = vpop.permute.xlu0 %2331
      %2335 = vset.pattern.permute.xlu0 0
      %2336 = vperm.xlu0 %2335, %v2298
      %v2337 = vpop.permute.xlu0 %2336
      %2340 = vset.pattern.permute.xlu0 0
      %2341 = vperm.xlu0 %2340, %v2299
      %v2342 = vpop.permute.xlu0 %2341
      %2345 = vset.pattern.permute.xlu0 0
      %2346 = vperm.xlu0 %2345, %v2300
      %v2347 = vpop.permute.xlu0 %2346
      %2350 = vset.pattern.permute.xlu0 0
      %2351 = vperm.xlu0 %2350, %v2301
      %v2352 = vpop.permute.xlu0 %2351
      %2355 = vset.pattern.permute.xlu0 0
      %2356 = vperm.xlu0 %2355, %v2302
      %v2357 = vpop.permute.xlu0 %2356
      %2360 = vset.pattern.permute.xlu0 0
      %2361 = vperm.xlu0 %2360, %v2303
      %v2362 = vpop.permute.xlu0 %2361
      %2365 = vset.pattern.permute.xlu0 0
      %2366 = vperm.xlu0 %2365, %v2304
      %v2367 = vpop.permute.xlu0 %2366
      %2370 = vset.pattern.permute.xlu0 0
      %2371 = vperm.xlu0 %2370, %v2305
      %v2372 = vpop.permute.xlu0 %2371
      %2375 = vset.pattern.permute.xlu0 0
      %2376 = vperm.xlu0 %2375, %v2306
      %v2377 = vpop.permute.xlu0 %2376
      %2380 = vset.pattern.permute.xlu0 0
      %2381 = vperm.xlu0 %2380, %v2307
      %v2382 = vpop.permute.xlu0 %2381
      %2385 = vset.pattern.permute.xlu0 0
      %2386 = vperm.xlu0 %2385, %v2308
      %v2387 = vpop.permute.xlu0 %2386
      %2390 = vset.pattern.permute.xlu0 0
      %2391 = vperm.xlu0 %2390, %v2309
      %v2392 = vpop.permute.xlu0 %2391
      %2395 = vset.pattern.permute.xlu0 0
      %2396 = vperm.xlu0 %2395, %v2310
      %v2397 = vpop.permute.xlu0 %2396
      %2400 = vset.pattern.permute.xlu0 0
      %2401 = vperm.xlu0 %2400, %v2311
      %v2402 = vpop.permute.xlu0 %2401
      %2405 = vset.pattern.permute.xlu0 0
      %2406 = vperm.xlu0 %2405, %v2312
      %v2407 = vpop.permute.xlu0 %2406
      %2410 = vset.pattern.permute.xlu0 0
      %2411 = vperm.xlu0 %2410, %v2313
      %v2412 = vpop.permute.xlu0 %2411
      %2415 = vset.pattern.permute.xlu0 0
      %2416 = vperm.xlu0 %2415, %v2314
      %v2417 = vpop.permute.xlu0 %2416
      %2420 = vset.pattern.permute.xlu0 0
      %2421 = vperm.xlu0 %2420, %v2315
      %v2422 = vpop.permute.xlu0 %2421
      %2425 = vset.pattern.permute.xlu0 0
      %2426 = vperm.xlu0 %2425, %v2316
      %v2427 = vpop.permute.xlu0 %2426
      %2430 = vset.pattern.permute.xlu0 0
      %2431 = vperm.xlu0 %2430, %v2317
      %v2432 = vpop.permute.xlu0 %2431
      %2435 = vset.pattern.permute.xlu0 0
      %2436 = vperm.xlu0 %2435, %v2318
      %v2437 = vpop.permute.xlu0 %2436
      %2440 = vset.pattern.permute.xlu0 0
      %2441 = vperm.xlu0 %2440, %v2319
      %v2442 = vpop.permute.xlu0 %2441
      %2445 = vset.pattern.permute.xlu0 0
      %2446 = vperm.xlu0 %2445, %v2320
      %v2447 = vpop.permute.xlu0 %2446
      %2450 = vset.pattern.permute.xlu0 0
      %2451 = vperm.xlu0 %2450, %v2321
      %v2452 = vpop.permute.xlu0 %2451
      %2455 = vset.pattern.permute.xlu0 0
      %2456 = vperm.xlu0 %2455, %v2322
      %v2457 = vpop.permute.xlu0 %2456
      %2460 = vset.pattern.permute.xlu0 0
      %2461 = vperm.xlu0 %2460, %v2323
      %v2462 = vpop.permute.xlu0 %2461
      %2465 = vset.pattern.permute.xlu0 0
      %2466 = vperm.xlu0 %2465, %v2324
      %v2467 = vpop.permute.xlu0 %2466
      %2470 = vset.pattern.permute.xlu0 0
      %2471 = vperm.xlu0 %2470, %v2325
      %v2472 = vpop.permute.xlu0 %2471
      %2475 = vset.pattern.permute.xlu0 0
      %2476 = vperm.xlu0 %2475, %v2326
      %v2477 = vpop.permute.xlu0 %2476
      %2480 = vset.pattern.permute.xlu0 0
      %2481 = vperm.xlu0 %2480, %v2327
      %v2482 = vpop.permute.xlu0 %2481
      %2485 = vset.pattern.permute.xlu0 0
      %2486 = vperm.xlu0 %2485, %v2328
      %v2487 = vpop.permute.xlu0 %2486
      %v2489 = vmul.f32 %v2171, %v2332
      %v2490 = vmul.f32 %v2174, %v2337
      %v2491 = vmul.f32 %v2179, %v2342
      %v2492 = vmul.f32 %v2182, %v2347
      %v2493 = vmul.f32 %v2187, %v2352
      %v2494 = vmul.f32 %v2190, %v2357
      %v2495 = vmul.f32 %v2195, %v2362
      %v2496 = vmul.f32 %v2198, %v2367
      %v2497 = vmul.f32 %v2203, %v2372
      %v2498 = vmul.f32 %v2206, %v2377
      %v2499 = vmul.f32 %v2211, %v2382
      %v2500 = vmul.f32 %v2214, %v2387
      %v2501 = vmul.f32 %v2219, %v2392
      %v2502 = vmul.f32 %v2222, %v2397
      %v2503 = vmul.f32 %v2227, %v2402
      %v2504 = vmul.f32 %v2230, %v2407
      %v2505 = vmul.f32 %v2235, %v2412
      %v2506 = vmul.f32 %v2238, %v2417
      %v2507 = vmul.f32 %v2243, %v2422
      %v2508 = vmul.f32 %v2246, %v2427
      %v2509 = vmul.f32 %v2251, %v2432
      %v2510 = vmul.f32 %v2254, %v2437
      %v2511 = vmul.f32 %v2259, %v2442
      %v2512 = vmul.f32 %v2262, %v2447
      %v2513 = vmul.f32 %v2267, %v2452
      %v2514 = vmul.f32 %v2270, %v2457
      %v2515 = vmul.f32 %v2275, %v2462
      %v2516 = vmul.f32 %v2278, %v2467
      %v2517 = vmul.f32 %v2283, %v2472
      %v2518 = vmul.f32 %v2286, %v2477
      %v2519 = vmul.f32 %v2291, %v2482
      %v2520 = vmul.f32 %v2294, %v2487
      %v2521 = vld [vmem:[#allocation2] sm:$0xff]
      %v2522 = vld [vmem:[#allocation2 + $0x8] sm:$0xff]
      %v2523 = vld [vmem:[#allocation2 + $0x10] sm:$0xff]
      %v2524 = vld [vmem:[#allocation2 + $0x18] sm:$0xff]
      %v2525 = vld [vmem:[#allocation2 + $0x20] sm:$0xff]
      %v2526 = vld [vmem:[#allocation2 + $0x28] sm:$0xff]
      %v2527 = vld [vmem:[#allocation2 + $0x30] sm:$0xff]
      %v2528 = vld [vmem:[#allocation2 + $0x38] sm:$0xff]
      %v2529 = vld [vmem:[#allocation2 + $0x40] sm:$0xff]
      %v2530 = vld [vmem:[#allocation2 + $0x48] sm:$0xff]
      %v2531 = vld [vmem:[#allocation2 + $0x50] sm:$0xff]
      %v2532 = vld [vmem:[#allocation2 + $0x58] sm:$0xff]
      %v2533 = vld [vmem:[#allocation2 + $0x60] sm:$0xff]
      %v2534 = vld [vmem:[#allocation2 + $0x68] sm:$0xff]
      %v2535 = vld [vmem:[#allocation2 + $0x70] sm:$0xff]
      %v2536 = vld [vmem:[#allocation2 + $0x78] sm:$0xff]
      %v2537 = vld [vmem:[#allocation2 + $0x80] sm:$0xff]
      %v2538 = vld [vmem:[#allocation2 + $0x88] sm:$0xff]
      %v2539 = vld [vmem:[#allocation2 + $0x90] sm:$0xff]
      %v2540 = vld [vmem:[#allocation2 + $0x98] sm:$0xff]
      %v2541 = vld [vmem:[#allocation2 + $0xa0] sm:$0xff]
      %v2542 = vld [vmem:[#allocation2 + $0xa8] sm:$0xff]
      %v2543 = vld [vmem:[#allocation2 + $0xb0] sm:$0xff]
      %v2544 = vld [vmem:[#allocation2 + $0xb8] sm:$0xff]
      %v2545 = vld [vmem:[#allocation2 + $0xc0] sm:$0xff]
      %v2546 = vld [vmem:[#allocation2 + $0xc8] sm:$0xff]
      %v2547 = vld [vmem:[#allocation2 + $0xd0] sm:$0xff]
      %v2548 = vld [vmem:[#allocation2 + $0xd8] sm:$0xff]
      %v2549 = vld [vmem:[#allocation2 + $0xe0] sm:$0xff]
      %v2550 = vld [vmem:[#allocation2 + $0xe8] sm:$0xff]
      %v2551 = vld [vmem:[#allocation2 + $0xf0] sm:$0xff]
      %v2552 = vld [vmem:[#allocation2 + $0xf8] sm:$0xff]
      %v2553 = vadd.f32 %v2521, %v2489
      %v2554 = vadd.f32 %v2522, %v2490
      %v2555 = vadd.f32 %v2523, %v2491
      %v2556 = vadd.f32 %v2524, %v2492
      %v2557 = vadd.f32 %v2525, %v2493
      %v2558 = vadd.f32 %v2526, %v2494
      %v2559 = vadd.f32 %v2527, %v2495
      %v2560 = vadd.f32 %v2528, %v2496
      %v2561 = vadd.f32 %v2529, %v2497
      %v2562 = vadd.f32 %v2530, %v2498
      %v2563 = vadd.f32 %v2531, %v2499
      %v2564 = vadd.f32 %v2532, %v2500
      %v2565 = vadd.f32 %v2533, %v2501
      %v2566 = vadd.f32 %v2534, %v2502
      %v2567 = vadd.f32 %v2535, %v2503
      %v2568 = vadd.f32 %v2536, %v2504
      %v2569 = vadd.f32 %v2537, %v2505
      %v2570 = vadd.f32 %v2538, %v2506
      %v2571 = vadd.f32 %v2539, %v2507
      %v2572 = vadd.f32 %v2540, %v2508
      %v2573 = vadd.f32 %v2541, %v2509
      %v2574 = vadd.f32 %v2542, %v2510
      %v2575 = vadd.f32 %v2543, %v2511
      %v2576 = vadd.f32 %v2544, %v2512
      %v2577 = vadd.f32 %v2545, %v2513
      %v2578 = vadd.f32 %v2546, %v2514
      %v2579 = vadd.f32 %v2547, %v2515
      %v2580 = vadd.f32 %v2548, %v2516
      %v2581 = vadd.f32 %v2549, %v2517
      %v2582 = vadd.f32 %v2550, %v2518
      %v2583 = vadd.f32 %v2551, %v2519
      %v2584 = vadd.f32 %v2552, %v2520
      %2585 = vst [vmem:[#allocation2] sm:$0xff] %v2553
      %2586 = vst [vmem:[#allocation2 + $0x8] sm:$0xff] %v2554
      %2587 = vst [vmem:[#allocation2 + $0x10] sm:$0xff] %v2555
      %2588 = vst [vmem:[#allocation2 + $0x18] sm:$0xff] %v2556
      %2589 = vst [vmem:[#allocation2 + $0x20] sm:$0xff] %v2557
      %2590 = vst [vmem:[#allocation2 + $0x28] sm:$0xff] %v2558
      %2591 = vst [vmem:[#allocation2 + $0x30] sm:$0xff] %v2559
      %2592 = vst [vmem:[#allocation2 + $0x38] sm:$0xff] %v2560
      %2593 = vst [vmem:[#allocation2 + $0x40] sm:$0xff] %v2561
      %2594 = vst [vmem:[#allocation2 + $0x48] sm:$0xff] %v2562
      %2595 = vst [vmem:[#allocation2 + $0x50] sm:$0xff] %v2563
      %2596 = vst [vmem:[#allocation2 + $0x58] sm:$0xff] %v2564
      %2597 = vst [vmem:[#allocation2 + $0x60] sm:$0xff] %v2565
      %2598 = vst [vmem:[#allocation2 + $0x68] sm:$0xff] %v2566
      %2599 = vst [vmem:[#allocation2 + $0x70] sm:$0xff] %v2567
      %2600 = vst [vmem:[#allocation2 + $0x78] sm:$0xff] %v2568
      %2601 = vst [vmem:[#allocation2 + $0x80] sm:$0xff] %v2569
      %2602 = vst [vmem:[#allocation2 + $0x88] sm:$0xff] %v2570
      %2603 = vst [vmem:[#allocation2 + $0x90] sm:$0xff] %v2571
      %2604 = vst [vmem:[#allocation2 + $0x98] sm:$0xff] %v2572
      %2605 = vst [vmem:[#allocation2 + $0xa0] sm:$0xff] %v2573
      %2606 = vst [vmem:[#allocation2 + $0xa8] sm:$0xff] %v2574
      %2607 = vst [vmem:[#allocation2 + $0xb0] sm:$0xff] %v2575
      %2608 = vst [vmem:[#allocation2 + $0xb8] sm:$0xff] %v2576
      %2609 = vst [vmem:[#allocation2 + $0xc0] sm:$0xff] %v2577
      %2610 = vst [vmem:[#allocation2 + $0xc8] sm:$0xff] %v2578
      %2611 = vst [vmem:[#allocation2 + $0xd0] sm:$0xff] %v2579
      %2612 = vst [vmem:[#allocation2 + $0xd8] sm:$0xff] %v2580
      %2613 = vst [vmem:[#allocation2 + $0xe0] sm:$0xff] %v2581
      %2614 = vst [vmem:[#allocation2 + $0xe8] sm:$0xff] %v2582
      %2615 = vst [vmem:[#allocation2 + $0xf0] sm:$0xff] %v2583
      %2616 = vst [vmem:[#allocation2 + $0xf8] sm:$0xff] %v2584
      %v2617 = vld [vmem:[%s230 + $0x10] sm:$0xe]
      %v2618 = vld [vmem:[%s230 + $0x14] sm:$0xf]
      %v2619 = vld [vmem:[%s230 + $0x18] sm:$0xf]
      %v2620 = vld [vmem:[%s230 + $0x1c] sm:$0xf]
      %v2621 = vld [vmem:[%s230 + $0x20] sm:$0xf]
      %v2622 = vld [vmem:[%s230 + $0x24] sm:$0xf]
      %v2623 = vld [vmem:[%s230 + $0x28] sm:$0xf]
      %v2624 = vld [vmem:[%s230 + $0x2c] sm:$0xf]
      %v2625 = vld [vmem:[%s230 + $0x30] sm:$0xf]
      %v2626 = vld [vmem:[%s230 + $0x34] sm:$0xf]
      %v2627 = vld [vmem:[%s230 + $0x38] sm:$0xf]
      %v2628 = vld [vmem:[%s230 + $0x3c] sm:$0xf]
      %v2629 = vld [vmem:[%s230 + $0x40] sm:$0xf]
      %v2630 = vld [vmem:[%s230 + $0x44] sm:$0xf]
      %v2631 = vld [vmem:[%s230 + $0x48] sm:$0xf]
      %v2632 = vld [vmem:[%s230 + $0x4c] sm:$0xf]
      %v2633 = vld [vmem:[%s230 + $0x50] sm:$0xf]
      %v2634 = vld [vmem:[%s230 + $0x54] sm:$0xf]
      %v2635 = vld [vmem:[%s230 + $0x58] sm:$0xf]
      %v2636 = vld [vmem:[%s230 + $0x5c] sm:$0xf]
      %v2637 = vld [vmem:[%s230 + $0x60] sm:$0xf]
      %v2638 = vld [vmem:[%s230 + $0x64] sm:$0xf]
      %v2639 = vld [vmem:[%s230 + $0x68] sm:$0xf]
      %v2640 = vld [vmem:[%s230 + $0x6c] sm:$0xf]
      %v2641 = vld [vmem:[%s230 + $0x70] sm:$0xf]
      %v2642 = vld [vmem:[%s230 + $0x74] sm:$0xf]
      %v2643 = vld [vmem:[%s230 + $0x78] sm:$0xf]
      %v2644 = vld [vmem:[%s230 + $0x7c] sm:$0xf]
      %v2645 = vld [vmem:[%s230 + $0x80] sm:$0xf]
      %v2646 = vld [vmem:[%s230 + $0x84] sm:$0xf]
      %v2647 = vld [vmem:[%s230 + $0x88] sm:$0xf]
      %v2648 = vld [vmem:[%s230 + $0x8c] sm:$0xf]
      %v2649 = vld [vmem:[%s230 + $0x90] sm:$0x1]
      %s2650 = scalar_lea.vmem %s1, 8
      %v2651 = vld [vmem:[%s2650] sm:$0x3]
      %v2685 = vunpack.c.l.b16 %v2617
      %v2686 = vunpack.c.l.b16 %v2618
      %v2687 = vunpack.c.l.b16 %v2619
      %v2688 = vunpack.c.l.b16 %v2620
      %v2689 = vunpack.c.l.b16 %v2621
      %v2690 = vunpack.c.l.b16 %v2622
      %v2691 = vunpack.c.l.b16 %v2623
      %v2692 = vunpack.c.l.b16 %v2624
      %v2693 = vunpack.c.l.b16 %v2625
      %v2694 = vunpack.c.l.b16 %v2626
      %v2695 = vunpack.c.l.b16 %v2627
      %v2696 = vunpack.c.l.b16 %v2628
      %v2697 = vunpack.c.l.b16 %v2629
      %v2698 = vunpack.c.l.b16 %v2630
      %v2699 = vunpack.c.l.b16 %v2631
      %v2700 = vunpack.c.l.b16 %v2632
      %v2701 = vunpack.c.l.b16 %v2633
      %v2702 = vunpack.c.l.b16 %v2634
      %v2703 = vunpack.c.l.b16 %v2635
      %v2704 = vunpack.c.l.b16 %v2636
      %v2705 = vunpack.c.l.b16 %v2637
      %v2706 = vunpack.c.l.b16 %v2638
      %v2707 = vunpack.c.l.b16 %v2639
      %v2708 = vunpack.c.l.b16 %v2640
      %v2709 = vunpack.c.l.b16 %v2641
      %v2710 = vunpack.c.l.b16 %v2642
      %v2711 = vunpack.c.l.b16 %v2643
      %v2712 = vunpack.c.l.b16 %v2644
      %v2713 = vunpack.c.l.b16 %v2645
      %v2714 = vunpack.c.l.b16 %v2646
      %v2715 = vunpack.c.l.b16 %v2647
      %v2716 = vunpack.c.l.b16 %v2648
      %v2717 = vunpack.c.l.b16 %v2649
      %v2718 = vpack.c.b16 %v2686, %v2685
      %v2719 = vpack.c.b16 %v2688, %v2687
      %v2720 = vpack.c.b16 %v2690, %v2689
      %v2721 = vpack.c.b16 %v2692, %v2691
      %v2722 = vpack.c.b16 %v2694, %v2693
      %v2723 = vpack.c.b16 %v2696, %v2695
      %v2724 = vpack.c.b16 %v2698, %v2697
      %v2725 = vpack.c.b16 %v2700, %v2699
      %v2726 = vpack.c.b16 %v2702, %v2701
      %v2727 = vpack.c.b16 %v2704, %v2703
      %v2728 = vpack.c.b16 %v2706, %v2705
      %v2729 = vpack.c.b16 %v2708, %v2707
      %v2730 = vpack.c.b16 %v2710, %v2709
      %v2731 = vpack.c.b16 %v2712, %v2711
      %v2732 = vpack.c.b16 %v2714, %v2713
      %v2733 = vpack.c.b16 %v2716, %v2715
      %v2734 = vpack.c.b16 %v2717, %v2717
      %v2735 = vrot.slane %v2718, 1
      %v2736 = vrot.slane %v2719, 1
      %v2737 = vsel %vm944, %v2735, %v2736
      %v2738 = vrot.slane %v2720, 1
      %v2739 = vsel %vm944, %v2736, %v2738
      %v2740 = vrot.slane %v2721, 1
      %v2741 = vsel %vm944, %v2738, %v2740
      %v2742 = vrot.slane %v2722, 1
      %v2743 = vsel %vm944, %v2740, %v2742
      %v2744 = vrot.slane %v2723, 1
      %v2745 = vsel %vm944, %v2742, %v2744
      %v2746 = vrot.slane %v2724, 1
      %v2747 = vsel %vm944, %v2744, %v2746
      %v2748 = vrot.slane %v2725, 1
      %v2749 = vsel %vm944, %v2746, %v2748
      %v2750 = vrot.slane %v2726, 1
      %v2751 = vsel %vm944, %v2748, %v2750
      %v2752 = vrot.slane %v2727, 1
      %v2753 = vsel %vm944, %v2750, %v2752
      %v2754 = vrot.slane %v2728, 1
      %v2755 = vsel %vm944, %v2752, %v2754
      %v2756 = vrot.slane %v2729, 1
      %v2757 = vsel %vm944, %v2754, %v2756
      %v2758 = vrot.slane %v2730, 1
      %v2759 = vsel %vm944, %v2756, %v2758
      %v2760 = vrot.slane %v2731, 1
      %v2761 = vsel %vm944, %v2758, %v2760
      %v2762 = vrot.slane %v2732, 1
      %v2763 = vsel %vm944, %v2760, %v2762
      %v2764 = vrot.slane %v2733, 1
      %v2765 = vsel %vm944, %v2762, %v2764
      %v2766 = vrot.slane %v2734, 1
      %v2767 = vsel %vm944, %v2764, %v2766
      %v2769 = vsel %vm356, %v2737, 0
      %v2772 = vsel %vm356, %v2739, 0
      %v2775 = vsel %vm356, %v2741, 0
      %v2778 = vsel %vm356, %v2743, 0
      %v2781 = vsel %vm356, %v2745, 0
      %v2784 = vsel %vm356, %v2747, 0
      %v2787 = vsel %vm356, %v2749, 0
      %v2790 = vsel %vm356, %v2751, 0
      %v2793 = vsel %vm356, %v2753, 0
      %v2796 = vsel %vm356, %v2755, 0
      %v2799 = vsel %vm356, %v2757, 0
      %v2802 = vsel %vm356, %v2759, 0
      %v2805 = vsel %vm356, %v2761, 0
      %v2808 = vsel %vm356, %v2763, 0
      %v2811 = vsel %vm356, %v2765, 0
      %v2814 = vsel %vm356, %v2767, 0
      %v2817 = vsel %vm405, %v2651, 0
      %2819 = vmatprep.subr.bf16.mxu0 0
      %2820 = vmatpush1.bf16.msra.mxu0 %v2817
      %2821 = vmatprep.subr.bf16.mxu0 0
      %2822 = vmatpush1.bf16.msra.mxu0 0
      %2823 = vmatprep.subr.bf16.mxu0 0
      %2824 = vmatpush1.bf16.msra.mxu0 0
      %2825 = vmatprep.subr.bf16.mxu0 0
      %2826 = vmatpush1.bf16.msra.mxu0 0
      %2827 = vmatprep.subr.bf16.mxu0 0
      %2828 = vmatpush1.bf16.msra.mxu0 0
      %2829 = vmatprep.subr.bf16.mxu0 0
      %2830 = vmatpush1.bf16.msra.mxu0 0
      %2831 = vmatprep.subr.bf16.mxu0 0
      %2832 = vmatpush1.bf16.msra.mxu0 0
      %2833 = vmatprep.subr.bf16.mxu0 0
      %2834 = vmatpush1.bf16.msra.mxu0 0
      %2835 = vmatprep.subr.bf16.mxu0 0
      %2836 = vmatpush1.bf16.msra.mxu0 0
      %2837 = vmatprep.subr.bf16.mxu0 0
      %2838 = vmatpush1.bf16.msra.mxu0 0
      %2839 = vmatprep.subr.bf16.mxu0 0
      %2840 = vmatpush1.bf16.msra.mxu0 0
      %2841 = vmatprep.subr.bf16.mxu0 0
      %2842 = vmatpush1.bf16.msra.mxu0 0
      %2843 = vmatprep.subr.bf16.mxu0 0
      %2844 = vmatpush1.bf16.msra.mxu0 0
      %2845 = vmatprep.subr.bf16.mxu0 0
      %2846 = vmatpush1.bf16.msra.mxu0 0
      %2847 = vmatprep.subr.bf16.mxu0 0
      %2848 = vmatpush1.bf16.msra.mxu0 0
      %2849 = vmatprep.subr.bf16.mxu0 0
      %2850 = vmatpush1.bf16.msra.mxu0 0
      %2851 = vmatprep.mubr.bf16.mxu0 0
      %2852 = vmatmul.mubr.bf16.gmra.mrb[0].mxu0 %v2769
      %v2853 = vpop.f32.mrb[0].mxu0
      %v2854 = vadd.f32 0.0, %v2853
      %v2855 = vpop.f32.mrb[0].mxu0
      %v2856 = vpop.f32.mrb[0].mxu0
      %v2857 = vadd.f32 0.0, %v2856
      %v2858 = vpop.f32.mrb[0].mxu0
      %2859 = vmatprep.mubr.bf16.mxu0 0
      %2860 = vmatmul.mubr.bf16.gmra.mrb[0].mxu0 %v2772
      %v2861 = vpop.f32.mrb[0].mxu0
      %v2862 = vadd.f32 0.0, %v2861
      %v2863 = vpop.f32.mrb[0].mxu0
      %v2864 = vpop.f32.mrb[0].mxu0
      %v2865 = vadd.f32 0.0, %v2864
      %v2866 = vpop.f32.mrb[0].mxu0
      %2867 = vmatprep.mubr.bf16.mxu0 0
      %2868 = vmatmul.mubr.bf16.gmra.mrb[0].mxu0 %v2775
      %v2869 = vpop.f32.mrb[0].mxu0
      %v2870 = vadd.f32 0.0, %v2869
      %v2871 = vpop.f32.mrb[0].mxu0
      %v2872 = vpop.f32.mrb[0].mxu0
      %v2873 = vadd.f32 0.0, %v2872
      %v2874 = vpop.f32.mrb[0].mxu0
      %2875 = vmatprep.mubr.bf16.mxu0 0
      %2876 = vmatmul.mubr.bf16.gmra.mrb[0].mxu0 %v2778
      %v2877 = vpop.f32.mrb[0].mxu0
      %v2878 = vadd.f32 0.0, %v2877
      %v2879 = vpop.f32.mrb[0].mxu0
      %v2880 = vpop.f32.mrb[0].mxu0
      %v2881 = vadd.f32 0.0, %v2880
      %v2882 = vpop.f32.mrb[0].mxu0
      %2883 = vmatprep.mubr.bf16.mxu0 0
      %2884 = vmatmul.mubr.bf16.gmra.mrb[0].mxu0 %v2781
      %v2885 = vpop.f32.mrb[0].mxu0
      %v2886 = vadd.f32 0.0, %v2885
      %v2887 = vpop.f32.mrb[0].mxu0
      %v2888 = vpop.f32.mrb[0].mxu0
      %v2889 = vadd.f32 0.0, %v2888
      %v2890 = vpop.f32.mrb[0].mxu0
      %2891 = vmatprep.mubr.bf16.mxu0 0
      %2892 = vmatmul.mubr.bf16.gmra.mrb[0].mxu0 %v2784
      %v2893 = vpop.f32.mrb[0].mxu0
      %v2894 = vadd.f32 0.0, %v2893
      %v2895 = vpop.f32.mrb[0].mxu0
      %v2896 = vpop.f32.mrb[0].mxu0
      %v2897 = vadd.f32 0.0, %v2896
      %v2898 = vpop.f32.mrb[0].mxu0
      %2899 = vmatprep.mubr.bf16.mxu0 0
      %2900 = vmatmul.mubr.bf16.gmra.mrb[0].mxu0 %v2787
      %v2901 = vpop.f32.mrb[0].mxu0
      %v2902 = vadd.f32 0.0, %v2901
      %v2903 = vpop.f32.mrb[0].mxu0
      %v2904 = vpop.f32.mrb[0].mxu0
      %v2905 = vadd.f32 0.0, %v2904
      %v2906 = vpop.f32.mrb[0].mxu0
      %2907 = vmatprep.mubr.bf16.mxu0 0
      %2908 = vmatmul.mubr.bf16.gmra.mrb[0].mxu0 %v2790
      %v2909 = vpop.f32.mrb[0].mxu0
      %v2910 = vadd.f32 0.0, %v2909
      %v2911 = vpop.f32.mrb[0].mxu0
      %v2912 = vpop.f32.mrb[0].mxu0
      %v2913 = vadd.f32 0.0, %v2912
      %v2914 = vpop.f32.mrb[0].mxu0
      %2915 = vmatprep.mubr.bf16.mxu0 0
      %2916 = vmatmul.mubr.bf16.gmra.mrb[0].mxu0 %v2793
      %v2917 = vpop.f32.mrb[0].mxu0
      %v2918 = vadd.f32 0.0, %v2917
      %v2919 = vpop.f32.mrb[0].mxu0
      %v2920 = vpop.f32.mrb[0].mxu0
      %v2921 = vadd.f32 0.0, %v2920
      %v2922 = vpop.f32.mrb[0].mxu0
      %2923 = vmatprep.mubr.bf16.mxu0 0
      %2924 = vmatmul.mubr.bf16.gmra.mrb[0].mxu0 %v2796
      %v2925 = vpop.f32.mrb[0].mxu0
      %v2926 = vadd.f32 0.0, %v2925
      %v2927 = vpop.f32.mrb[0].mxu0
      %v2928 = vpop.f32.mrb[0].mxu0
      %v2929 = vadd.f32 0.0, %v2928
      %v2930 = vpop.f32.mrb[0].mxu0
      %2931 = vmatprep.mubr.bf16.mxu0 0
      %2932 = vmatmul.mubr.bf16.gmra.mrb[0].mxu0 %v2799
      %v2933 = vpop.f32.mrb[0].mxu0
      %v2934 = vadd.f32 0.0, %v2933
      %v2935 = vpop.f32.mrb[0].mxu0
      %v2936 = vpop.f32.mrb[0].mxu0
      %v2937 = vadd.f32 0.0, %v2936
      %v2938 = vpop.f32.mrb[0].mxu0
      %2939 = vmatprep.mubr.bf16.mxu0 0
      %2940 = vmatmul.mubr.bf16.gmra.mrb[0].mxu0 %v2802
      %v2941 = vpop.f32.mrb[0].mxu0
      %v2942 = vadd.f32 0.0, %v2941
      %v2943 = vpop.f32.mrb[0].mxu0
      %v2944 = vpop.f32.mrb[0].mxu0
      %v2945 = vadd.f32 0.0, %v2944
      %v2946 = vpop.f32.mrb[0].mxu0
      %2947 = vmatprep.mubr.bf16.mxu0 0
      %2948 = vmatmul.mubr.bf16.gmra.mrb[0].mxu0 %v2805
      %v2949 = vpop.f32.mrb[0].mxu0
      %v2950 = vadd.f32 0.0, %v2949
      %v2951 = vpop.f32.mrb[0].mxu0
      %v2952 = vpop.f32.mrb[0].mxu0
      %v2953 = vadd.f32 0.0, %v2952
      %v2954 = vpop.f32.mrb[0].mxu0
      %2955 = vmatprep.mubr.bf16.mxu0 0
      %2956 = vmatmul.mubr.bf16.gmra.mrb[0].mxu0 %v2808
      %v2957 = vpop.f32.mrb[0].mxu0
      %v2958 = vadd.f32 0.0, %v2957
      %v2959 = vpop.f32.mrb[0].mxu0
      %v2960 = vpop.f32.mrb[0].mxu0
      %v2961 = vadd.f32 0.0, %v2960
      %v2962 = vpop.f32.mrb[0].mxu0
      %2963 = vmatprep.mubr.bf16.mxu0 0
      %2964 = vmatmul.mubr.bf16.gmra.mrb[0].mxu0 %v2811
      %v2965 = vpop.f32.mrb[0].mxu0
      %v2966 = vadd.f32 0.0, %v2965
      %v2967 = vpop.f32.mrb[0].mxu0
      %v2968 = vpop.f32.mrb[0].mxu0
      %v2969 = vadd.f32 0.0, %v2968
      %v2970 = vpop.f32.mrb[0].mxu0
      %2971 = vmatprep.mubr.bf16.mxu0 0
      %2972 = vmatmul.mubr.bf16.gmra.mrb[0].mxu0 %v2814
      %v2973 = vpop.f32.mrb[0].mxu0
      %v2974 = vadd.f32 0.0, %v2973
      %v2975 = vpop.f32.mrb[0].mxu0
      %v2976 = vpop.f32.mrb[0].mxu0
      %v2977 = vadd.f32 0.0, %v2976
      %v2978 = vpop.f32.mrb[0].mxu0
      %2979 = vdwg.mxu0
      %v2980 = vld [vmem:[#allocation2] sm:$0xff]
      %v2981 = vld [vmem:[#allocation2 + $0x8] sm:$0xff]
      %v2982 = vld [vmem:[#allocation2 + $0x10] sm:$0xff]
      %v2983 = vld [vmem:[#allocation2 + $0x18] sm:$0xff]
      %v2984 = vld [vmem:[#allocation2 + $0x20] sm:$0xff]
      %v2985 = vld [vmem:[#allocation2 + $0x28] sm:$0xff]
      %v2986 = vld [vmem:[#allocation2 + $0x30] sm:$0xff]
      %v2987 = vld [vmem:[#allocation2 + $0x38] sm:$0xff]
      %v2988 = vld [vmem:[#allocation2 + $0x40] sm:$0xff]
      %v2989 = vld [vmem:[#allocation2 + $0x48] sm:$0xff]
      %v2990 = vld [vmem:[#allocation2 + $0x50] sm:$0xff]
      %v2991 = vld [vmem:[#allocation2 + $0x58] sm:$0xff]
      %v2992 = vld [vmem:[#allocation2 + $0x60] sm:$0xff]
      %v2993 = vld [vmem:[#allocation2 + $0x68] sm:$0xff]
      %v2994 = vld [vmem:[#allocation2 + $0x70] sm:$0xff]
      %v2995 = vld [vmem:[#allocation2 + $0x78] sm:$0xff]
      %v2996 = vld [vmem:[#allocation2 + $0x80] sm:$0xff]
      %v2997 = vld [vmem:[#allocation2 + $0x88] sm:$0xff]
      %v2998 = vld [vmem:[#allocation2 + $0x90] sm:$0xff]
      %v2999 = vld [vmem:[#allocation2 + $0x98] sm:$0xff]
      %v3000 = vld [vmem:[#allocation2 + $0xa0] sm:$0xff]
      %v3001 = vld [vmem:[#allocation2 + $0xa8] sm:$0xff]
      %v3002 = vld [vmem:[#allocation2 + $0xb0] sm:$0xff]
      %v3003 = vld [vmem:[#allocation2 + $0xb8] sm:$0xff]
      %v3004 = vld [vmem:[#allocation2 + $0xc0] sm:$0xff]
      %v3005 = vld [vmem:[#allocation2 + $0xc8] sm:$0xff]
      %v3006 = vld [vmem:[#allocation2 + $0xd0] sm:$0xff]
      %v3007 = vld [vmem:[#allocation2 + $0xd8] sm:$0xff]
      %v3008 = vld [vmem:[#allocation2 + $0xe0] sm:$0xff]
      %v3009 = vld [vmem:[#allocation2 + $0xe8] sm:$0xff]
      %v3010 = vld [vmem:[#allocation2 + $0xf0] sm:$0xff]
      %v3011 = vld [vmem:[#allocation2 + $0xf8] sm:$0xff]
      %v3012 = vadd.f32 %v2980, %v2854
      %v3013 = vadd.f32 %v2981, %v2857
      %v3014 = vadd.f32 %v2982, %v2862
      %v3015 = vadd.f32 %v2983, %v2865
      %v3016 = vadd.f32 %v2984, %v2870
      %v3017 = vadd.f32 %v2985, %v2873
      %v3018 = vadd.f32 %v2986, %v2878
      %v3019 = vadd.f32 %v2987, %v2881
      %v3020 = vadd.f32 %v2988, %v2886
      %v3021 = vadd.f32 %v2989, %v2889
      %v3022 = vadd.f32 %v2990, %v2894
      %v3023 = vadd.f32 %v2991, %v2897
      %v3024 = vadd.f32 %v2992, %v2902
      %v3025 = vadd.f32 %v2993, %v2905
      %v3026 = vadd.f32 %v2994, %v2910
      %v3027 = vadd.f32 %v2995, %v2913
      %v3028 = vadd.f32 %v2996, %v2918
      %v3029 = vadd.f32 %v2997, %v2921
      %v3030 = vadd.f32 %v2998, %v2926
      %v3031 = vadd.f32 %v2999, %v2929
      %v3032 = vadd.f32 %v3000, %v2934
      %v3033 = vadd.f32 %v3001, %v2937
      %v3034 = vadd.f32 %v3002, %v2942
      %v3035 = vadd.f32 %v3003, %v2945
      %v3036 = vadd.f32 %v3004, %v2950
      %v3037 = vadd.f32 %v3005, %v2953
      %v3038 = vadd.f32 %v3006, %v2958
      %v3039 = vadd.f32 %v3007, %v2961
      %v3040 = vadd.f32 %v3008, %v2966
      %v3041 = vadd.f32 %v3009, %v2969
      %v3042 = vadd.f32 %v3010, %v2974
      %v3043 = vadd.f32 %v3011, %v2977
      %3044 = vst [vmem:[#allocation2] sm:$0xff] %v3012
      %3045 = vst [vmem:[#allocation2 + $0x8] sm:$0xff] %v3013
      %3046 = vst [vmem:[#allocation2 + $0x10] sm:$0xff] %v3014
      %3047 = vst [vmem:[#allocation2 + $0x18] sm:$0xff] %v3015
      %3048 = vst [vmem:[#allocation2 + $0x20] sm:$0xff] %v3016
      %3049 = vst [vmem:[#allocation2 + $0x28] sm:$0xff] %v3017
      %3050 = vst [vmem:[#allocation2 + $0x30] sm:$0xff] %v3018
      %3051 = vst [vmem:[#allocation2 + $0x38] sm:$0xff] %v3019
      %3052 = vst [vmem:[#allocation2 + $0x40] sm:$0xff] %v3020
      %3053 = vst [vmem:[#allocation2 + $0x48] sm:$0xff] %v3021
      %3054 = vst [vmem:[#allocation2 + $0x50] sm:$0xff] %v3022
      %3055 = vst [vmem:[#allocation2 + $0x58] sm:$0xff] %v3023
      %3056 = vst [vmem:[#allocation2 + $0x60] sm:$0xff] %v3024
      %3057 = vst [vmem:[#allocation2 + $0x68] sm:$0xff] %v3025
      %3058 = vst [vmem:[#allocation2 + $0x70] sm:$0xff] %v3026
      %3059 = vst [vmem:[#allocation2 + $0x78] sm:$0xff] %v3027
      %3060 = vst [vmem:[#allocation2 + $0x80] sm:$0xff] %v3028
      %3061 = vst [vmem:[#allocation2 + $0x88] sm:$0xff] %v3029
      %3062 = vst [vmem:[#allocation2 + $0x90] sm:$0xff] %v3030
      %3063 = vst [vmem:[#allocation2 + $0x98] sm:$0xff] %v3031
      %3064 = vst [vmem:[#allocation2 + $0xa0] sm:$0xff] %v3032
      %3065 = vst [vmem:[#allocation2 + $0xa8] sm:$0xff] %v3033
      %3066 = vst [vmem:[#allocation2 + $0xb0] sm:$0xff] %v3034
      %3067 = vst [vmem:[#allocation2 + $0xb8] sm:$0xff] %v3035
      %3068 = vst [vmem:[#allocation2 + $0xc0] sm:$0xff] %v3036
      %3069 = vst [vmem:[#allocation2 + $0xc8] sm:$0xff] %v3037
      %3070 = vst [vmem:[#allocation2 + $0xd0] sm:$0xff] %v3038
      %3071 = vst [vmem:[#allocation2 + $0xd8] sm:$0xff] %v3039
      %3072 = vst [vmem:[#allocation2 + $0xe0] sm:$0xff] %v3040
      %3073 = vst [vmem:[#allocation2 + $0xe8] sm:$0xff] %v3041
      %3074 = vst [vmem:[#allocation2 + $0xf0] sm:$0xff] %v3042
      %3075 = vst [vmem:[#allocation2 + $0xf8] sm:$0xff] %v3043
      %v3076 = vld [vmem:[%s230 + $0x10] sm:$0xc]
      %v3077 = vld [vmem:[%s230 + $0x14] sm:$0xf]
      %v3078 = vld [vmem:[%s230 + $0x18] sm:$0xf]
      %v3079 = vld [vmem:[%s230 + $0x1c] sm:$0xf]
      %v3080 = vld [vmem:[%s230 + $0x20] sm:$0xf]
      %v3081 = vld [vmem:[%s230 + $0x24] sm:$0xf]
      %v3082 = vld [vmem:[%s230 + $0x28] sm:$0xf]
      %v3083 = vld [vmem:[%s230 + $0x2c] sm:$0xf]
      %v3084 = vld [vmem:[%s230 + $0x30] sm:$0xf]
      %v3085 = vld [vmem:[%s230 + $0x34] sm:$0xf]
      %v3086 = vld [vmem:[%s230 + $0x38] sm:$0xf]
      %v3087 = vld [vmem:[%s230 + $0x3c] sm:$0xf]
      %v3088 = vld [vmem:[%s230 + $0x40] sm:$0xf]
      %v3089 = vld [vmem:[%s230 + $0x44] sm:$0xf]
      %v3090 = vld [vmem:[%s230 + $0x48] sm:$0xf]
      %v3091 = vld [vmem:[%s230 + $0x4c] sm:$0xf]
      %v3092 = vld [vmem:[%s230 + $0x50] sm:$0xf]
      %v3093 = vld [vmem:[%s230 + $0x54] sm:$0xf]
      %v3094 = vld [vmem:[%s230 + $0x58] sm:$0xf]
      %v3095 = vld [vmem:[%s230 + $0x5c] sm:$0xf]
      %v3096 = vld [vmem:[%s230 + $0x60] sm:$0xf]
      %v3097 = vld [vmem:[%s230 + $0x64] sm:$0xf]
      %v3098 = vld [vmem:[%s230 + $0x68] sm:$0xf]
      %v3099 = vld [vmem:[%s230 + $0x6c] sm:$0xf]
      %v3100 = vld [vmem:[%s230 + $0x70] sm:$0xf]
      %v3101 = vld [vmem:[%s230 + $0x74] sm:$0xf]
      %v3102 = vld [vmem:[%s230 + $0x78] sm:$0xf]
      %v3103 = vld [vmem:[%s230 + $0x7c] sm:$0xf]
      %v3104 = vld [vmem:[%s230 + $0x80] sm:$0xf]
      %v3105 = vld [vmem:[%s230 + $0x84] sm:$0xf]
      %v3106 = vld [vmem:[%s230 + $0x88] sm:$0xf]
      %v3107 = vld [vmem:[%s230 + $0x8c] sm:$0xf]
      %v3108 = vld [vmem:[%s230 + $0x90] sm:$0x3]
      %s3109 = scalar_lea.vmem %s1, 10
      %v3110 = vld [vmem:[%s3109] sm:$0x3]
      %v3144 = vunpack.c.l.b16 %v3076
      %v3145 = vunpack.c.l.b16 %v3077
      %v3146 = vunpack.c.l.b16 %v3078
      %v3147 = vunpack.c.l.b16 %v3079
      %v3148 = vunpack.c.l.b16 %v3080
      %v3149 = vunpack.c.l.b16 %v3081
      %v3150 = vunpack.c.l.b16 %v3082
      %v3151 = vunpack.c.l.b16 %v3083
      %v3152 = vunpack.c.l.b16 %v3084
      %v3153 = vunpack.c.l.b16 %v3085
      %v3154 = vunpack.c.l.b16 %v3086
      %v3155 = vunpack.c.l.b16 %v3087
      %v3156 = vunpack.c.l.b16 %v3088
      %v3157 = vunpack.c.l.b16 %v3089
      %v3158 = vunpack.c.l.b16 %v3090
      %v3159 = vunpack.c.l.b16 %v3091
      %v3160 = vunpack.c.l.b16 %v3092
      %v3161 = vunpack.c.l.b16 %v3093
      %v3162 = vunpack.c.l.b16 %v3094
      %v3163 = vunpack.c.l.b16 %v3095
      %v3164 = vunpack.c.l.b16 %v3096
      %v3165 = vunpack.c.l.b16 %v3097
      %v3166 = vunpack.c.l.b16 %v3098
      %v3167 = vunpack.c.l.b16 %v3099
      %v3168 = vunpack.c.l.b16 %v3100
      %v3169 = vunpack.c.l.b16 %v3101
      %v3170 = vunpack.c.l.b16 %v3102
      %v3171 = vunpack.c.l.b16 %v3103
      %v3172 = vunpack.c.l.b16 %v3104
      %v3173 = vunpack.c.l.b16 %v3105
      %v3174 = vunpack.c.l.b16 %v3106
      %v3175 = vunpack.c.l.b16 %v3107
      %v3176 = vunpack.c.l.b16 %v3108
      %v3177 = vpack.c.b16 %v3145, %v3144
      %v3178 = vpack.c.b16 %v3147, %v3146
      %v3179 = vpack.c.b16 %v3149, %v3148
      %v3180 = vpack.c.b16 %v3151, %v3150
      %v3181 = vpack.c.b16 %v3153, %v3152
      %v3182 = vpack.c.b16 %v3155, %v3154
      %v3183 = vpack.c.b16 %v3157, %v3156
      %v3184 = vpack.c.b16 %v3159, %v3158
      %v3185 = vpack.c.b16 %v3161, %v3160
      %v3186 = vpack.c.b16 %v3163, %v3162
      %v3187 = vpack.c.b16 %v3165, %v3164
      %v3188 = vpack.c.b16 %v3167, %v3166
      %v3189 = vpack.c.b16 %v3169, %v3168
      %v3190 = vpack.c.b16 %v3171, %v3170
      %v3191 = vpack.c.b16 %v3173, %v3172
      %v3192 = vpack.c.b16 %v3175, %v3174
      %v3193 = vpack.c.b16 %v3176, %v3176
      %v3194 = vrot.slane %v3177, 2
      %v3195 = vrot.slane %v3178, 2
      %v3196 = vsel %vm1404, %v3194, %v3195
      %v3197 = vrot.slane %v3179, 2
      %v3198 = vsel %vm1404, %v3195, %v3197
      %v3199 = vrot.slane %v3180, 2
      %v3200 = vsel %vm1404, %v3197, %v3199
      %v3201 = vrot.slane %v3181, 2
      %v3202 = vsel %vm1404, %v3199, %v3201
      %v3203 = vrot.slane %v3182, 2
      %v3204 = vsel %vm1404, %v3201, %v3203
      %v3205 = vrot.slane %v3183, 2
      %v3206 = vsel %vm1404, %v3203, %v3205
      %v3207 = vrot.slane %v3184, 2
      %v3208 = vsel %vm1404, %v3205, %v3207
      %v3209 = vrot.slane %v3185, 2
      %v3210 = vsel %vm1404, %v3207, %v3209
      %v3211 = vrot.slane %v3186, 2
      %v3212 = vsel %vm1404, %v3209, %v3211
      %v3213 = vrot.slane %v3187, 2
      %v3214 = vsel %vm1404, %v3211, %v3213
      %v3215 = vrot.slane %v3188, 2
      %v3216 = vsel %vm1404, %v3213, %v3215
      %v3217 = vrot.slane %v3189, 2
      %v3218 = vsel %vm1404, %v3215, %v3217
      %v3219 = vrot.slane %v3190, 2
      %v3220 = vsel %vm1404, %v3217, %v3219
      %v3221 = vrot.slane %v3191, 2
      %v3222 = vsel %vm1404, %v3219, %v3221
      %v3223 = vrot.slane %v3192, 2
      %v3224 = vsel %vm1404, %v3221, %v3223
      %v3225 = vrot.slane %v3193, 2
      %v3226 = vsel %vm1404, %v3223, %v3225
      %v3228 = vsel %vm356, %v3196, 0
      %v3231 = vsel %vm356, %v3198, 0
      %v3234 = vsel %vm356, %v3200, 0
      %v3237 = vsel %vm356, %v3202, 0
      %v3240 = vsel %vm356, %v3204, 0
      %v3243 = vsel %vm356, %v3206, 0
      %v3246 = vsel %vm356, %v3208, 0
      %v3249 = vsel %vm356, %v3210, 0
      %v3252 = vsel %vm356, %v3212, 0
      %v3255 = vsel %vm356, %v3214, 0
      %v3258 = vsel %vm356, %v3216, 0
      %v3261 = vsel %vm356, %v3218, 0
      %v3264 = vsel %vm356, %v3220, 0
      %v3267 = vsel %vm356, %v3222, 0
      %v3270 = vsel %vm356, %v3224, 0
      %v3273 = vsel %vm356, %v3226, 0
      %v3276 = vsel %vm405, %v3110, 0
      %3278 = vmatprep.subr.bf16.mxu0 0
      %3279 = vmatpush1.bf16.msra.mxu0 %v3276
      %3280 = vmatprep.subr.bf16.mxu0 0
      %3281 = vmatpush1.bf16.msra.mxu0 0
      %3282 = vmatprep.subr.bf16.mxu0 0
      %3283 = vmatpush1.bf16.msra.mxu0 0
      %3284 = vmatprep.subr.bf16.mxu0 0
      %3285 = vmatpush1.bf16.msra.mxu0 0
      %3286 = vmatprep.subr.bf16.mxu0 0
      %3287 = vmatpush1.bf16.msra.mxu0 0
      %3288 = vmatprep.subr.bf16.mxu0 0
      %3289 = vmatpush1.bf16.msra.mxu0 0
      %3290 = vmatprep.subr.bf16.mxu0 0
      %3291 = vmatpush1.bf16.msra.mxu0 0
      %3292 = vmatprep.subr.bf16.mxu0 0
      %3293 = vmatpush1.bf16.msra.mxu0 0
      %3294 = vmatprep.subr.bf16.mxu0 0
      %3295 = vmatpush1.bf16.msra.mxu0 0
      %3296 = vmatprep.subr.bf16.mxu0 0
      %3297 = vmatpush1.bf16.msra.mxu0 0
      %3298 = vmatprep.subr.bf16.mxu0 0
      %3299 = vmatpush1.bf16.msra.mxu0 0
      %3300 = vmatprep.subr.bf16.mxu0 0
      %3301 = vmatpush1.bf16.msra.mxu0 0
      %3302 = vmatprep.subr.bf16.mxu0 0
      %3303 = vmatpush1.bf16.msra.mxu0 0
      %3304 = vmatprep.subr.bf16.mxu0 0
      %3305 = vmatpush1.bf16.msra.mxu0 0
      %3306 = vmatprep.subr.bf16.mxu0 0
      %3307 = vmatpush1.bf16.msra.mxu0 0
      %3308 = vmatprep.subr.bf16.mxu0 0
      %3309 = vmatpush1.bf16.msra.mxu0 0
      %3310 = vmatprep.mubr.bf16.mxu0 0
      %3311 = vmatmul.mubr.bf16.gmra.mrb[0].mxu0 %v3228
      %v3312 = vpop.f32.mrb[0].mxu0
      %v3313 = vadd.f32 0.0, %v3312
      %v3314 = vpop.f32.mrb[0].mxu0
      %v3315 = vpop.f32.mrb[0].mxu0
      %v3316 = vadd.f32 0.0, %v3315
      %v3317 = vpop.f32.mrb[0].mxu0
      %3318 = vmatprep.mubr.bf16.mxu0 0
      %3319 = vmatmul.mubr.bf16.gmra.mrb[0].mxu0 %v3231
      %v3320 = vpop.f32.mrb[0].mxu0
      %v3321 = vadd.f32 0.0, %v3320
      %v3322 = vpop.f32.mrb[0].mxu0
      %v3323 = vpop.f32.mrb[0].mxu0
      %v3324 = vadd.f32 0.0, %v3323
      %v3325 = vpop.f32.mrb[0].mxu0
      %3326 = vmatprep.mubr.bf16.mxu0 0
      %3327 = vmatmul.mubr.bf16.gmra.mrb[0].mxu0 %v3234
      %v3328 = vpop.f32.mrb[0].mxu0
      %v3329 = vadd.f32 0.0, %v3328
      %v3330 = vpop.f32.mrb[0].mxu0
      %v3331 = vpop.f32.mrb[0].mxu0
      %v3332 = vadd.f32 0.0, %v3331
      %v3333 = vpop.f32.mrb[0].mxu0
      %3334 = vmatprep.mubr.bf16.mxu0 0
      %3335 = vmatmul.mubr.bf16.gmra.mrb[0].mxu0 %v3237
      %v3336 = vpop.f32.mrb[0].mxu0
      %v3337 = vadd.f32 0.0, %v3336
      %v3338 = vpop.f32.mrb[0].mxu0
      %v3339 = vpop.f32.mrb[0].mxu0
      %v3340 = vadd.f32 0.0, %v3339
      %v3341 = vpop.f32.mrb[0].mxu0
      %3342 = vmatprep.mubr.bf16.mxu0 0
      %3343 = vmatmul.mubr.bf16.gmra.mrb[0].mxu0 %v3240
      %v3344 = vpop.f32.mrb[0].mxu0
      %v3345 = vadd.f32 0.0, %v3344
      %v3346 = vpop.f32.mrb[0].mxu0
      %v3347 = vpop.f32.mrb[0].mxu0
      %v3348 = vadd.f32 0.0, %v3347
      %v3349 = vpop.f32.mrb[0].mxu0
      %3350 = vmatprep.mubr.bf16.mxu0 0
      %3351 = vmatmul.mubr.bf16.gmra.mrb[0].mxu0 %v3243
      %v3352 = vpop.f32.mrb[0].mxu0
      %v3353 = vadd.f32 0.0, %v3352
      %v3354 = vpop.f32.mrb[0].mxu0
      %v3355 = vpop.f32.mrb[0].mxu0
      %v3356 = vadd.f32 0.0, %v3355
      %v3357 = vpop.f32.mrb[0].mxu0
      %3358 = vmatprep.mubr.bf16.mxu0 0
      %3359 = vmatmul.mubr.bf16.gmra.mrb[0].mxu0 %v3246
      %v3360 = vpop.f32.mrb[0].mxu0
      %v3361 = vadd.f32 0.0, %v3360
      %v3362 = vpop.f32.mrb[0].mxu0
      %v3363 = vpop.f32.mrb[0].mxu0
      %v3364 = vadd.f32 0.0, %v3363
      %v3365 = vpop.f32.mrb[0].mxu0
      %3366 = vmatprep.mubr.bf16.mxu0 0
      %3367 = vmatmul.mubr.bf16.gmra.mrb[0].mxu0 %v3249
      %v3368 = vpop.f32.mrb[0].mxu0
      %v3369 = vadd.f32 0.0, %v3368
      %v3370 = vpop.f32.mrb[0].mxu0
      %v3371 = vpop.f32.mrb[0].mxu0
      %v3372 = vadd.f32 0.0, %v3371
      %v3373 = vpop.f32.mrb[0].mxu0
      %3374 = vmatprep.mubr.bf16.mxu0 0
      %3375 = vmatmul.mubr.bf16.gmra.mrb[0].mxu0 %v3252
      %v3376 = vpop.f32.mrb[0].mxu0
      %v3377 = vadd.f32 0.0, %v3376
      %v3378 = vpop.f32.mrb[0].mxu0
      %v3379 = vpop.f32.mrb[0].mxu0
      %v3380 = vadd.f32 0.0, %v3379
      %v3381 = vpop.f32.mrb[0].mxu0
      %3382 = vmatprep.mubr.bf16.mxu0 0
      %3383 = vmatmul.mubr.bf16.gmra.mrb[0].mxu0 %v3255
      %v3384 = vpop.f32.mrb[0].mxu0
      %v3385 = vadd.f32 0.0, %v3384
      %v3386 = vpop.f32.mrb[0].mxu0
      %v3387 = vpop.f32.mrb[0].mxu0
      %v3388 = vadd.f32 0.0, %v3387
      %v3389 = vpop.f32.mrb[0].mxu0
      %3390 = vmatprep.mubr.bf16.mxu0 0
      %3391 = vmatmul.mubr.bf16.gmra.mrb[0].mxu0 %v3258
      %v3392 = vpop.f32.mrb[0].mxu0
      %v3393 = vadd.f32 0.0, %v3392
      %v3394 = vpop.f32.mrb[0].mxu0
      %v3395 = vpop.f32.mrb[0].mxu0
      %v3396 = vadd.f32 0.0, %v3395
      %v3397 = vpop.f32.mrb[0].mxu0
      %3398 = vmatprep.mubr.bf16.mxu0 0
      %3399 = vmatmul.mubr.bf16.gmra.mrb[0].mxu0 %v3261
      %v3400 = vpop.f32.mrb[0].mxu0
      %v3401 = vadd.f32 0.0, %v3400
      %v3402 = vpop.f32.mrb[0].mxu0
      %v3403 = vpop.f32.mrb[0].mxu0
      %v3404 = vadd.f32 0.0, %v3403
      %v3405 = vpop.f32.mrb[0].mxu0
      %3406 = vmatprep.mubr.bf16.mxu0 0
      %3407 = vmatmul.mubr.bf16.gmra.mrb[0].mxu0 %v3264
      %v3408 = vpop.f32.mrb[0].mxu0
      %v3409 = vadd.f32 0.0, %v3408
      %v3410 = vpop.f32.mrb[0].mxu0
      %v3411 = vpop.f32.mrb[0].mxu0
      %v3412 = vadd.f32 0.0, %v3411
      %v3413 = vpop.f32.mrb[0].mxu0
      %3414 = vmatprep.mubr.bf16.mxu0 0
      %3415 = vmatmul.mubr.bf16.gmra.mrb[0].mxu0 %v3267
      %v3416 = vpop.f32.mrb[0].mxu0
      %v3417 = vadd.f32 0.0, %v3416
      %v3418 = vpop.f32.mrb[0].mxu0
      %v3419 = vpop.f32.mrb[0].mxu0
      %v3420 = vadd.f32 0.0, %v3419
      %v3421 = vpop.f32.mrb[0].mxu0
      %3422 = vmatprep.mubr.bf16.mxu0 0
      %3423 = vmatmul.mubr.bf16.gmra.mrb[0].mxu0 %v3270
      %v3424 = vpop.f32.mrb[0].mxu0
      %v3425 = vadd.f32 0.0, %v3424
      %v3426 = vpop.f32.mrb[0].mxu0
      %v3427 = vpop.f32.mrb[0].mxu0
      %v3428 = vadd.f32 0.0, %v3427
      %v3429 = vpop.f32.mrb[0].mxu0
      %3430 = vmatprep.mubr.bf16.mxu0 0
      %3431 = vmatmul.mubr.bf16.gmra.mrb[0].mxu0 %v3273
      %v3432 = vpop.f32.mrb[0].mxu0
      %v3433 = vadd.f32 0.0, %v3432
      %v3434 = vpop.f32.mrb[0].mxu0
      %v3435 = vpop.f32.mrb[0].mxu0
      %v3436 = vadd.f32 0.0, %v3435
      %v3437 = vpop.f32.mrb[0].mxu0
      %3438 = vdwg.mxu0
      %v3439 = vld [vmem:[%s1650] sm:$0xff]
      %v3440 = vld [vmem:[%s1650 + $0x8] sm:$0xff]
      %v3441 = vld [vmem:[%s1650 + $0x10] sm:$0xff]
      %v3442 = vld [vmem:[%s1650 + $0x18] sm:$0xff]
      %v3443 = vld [vmem:[%s1650 + $0x20] sm:$0xff]
      %v3444 = vld [vmem:[%s1650 + $0x28] sm:$0xff]
      %v3445 = vld [vmem:[%s1650 + $0x30] sm:$0xff]
      %v3446 = vld [vmem:[%s1650 + $0x38] sm:$0xff]
      %v3447 = vld [vmem:[%s1650 + $0x40] sm:$0xff]
      %v3448 = vld [vmem:[%s1650 + $0x48] sm:$0xff]
      %v3449 = vld [vmem:[%s1650 + $0x50] sm:$0xff]
      %v3450 = vld [vmem:[%s1650 + $0x58] sm:$0xff]
      %v3451 = vld [vmem:[%s1650 + $0x60] sm:$0xff]
      %v3452 = vld [vmem:[%s1650 + $0x68] sm:$0xff]
      %v3453 = vld [vmem:[%s1650 + $0x70] sm:$0xff]
      %v3454 = vld [vmem:[%s1650 + $0x78] sm:$0xff]
      %v3455 = vld [vmem:[%s1650 + $0x80] sm:$0xff]
      %v3456 = vld [vmem:[%s1650 + $0x88] sm:$0xff]
      %v3457 = vld [vmem:[%s1650 + $0x90] sm:$0xff]
      %v3458 = vld [vmem:[%s1650 + $0x98] sm:$0xff]
      %v3459 = vld [vmem:[%s1650 + $0xa0] sm:$0xff]
      %v3460 = vld [vmem:[%s1650 + $0xa8] sm:$0xff]
      %v3461 = vld [vmem:[%s1650 + $0xb0] sm:$0xff]
      %v3462 = vld [vmem:[%s1650 + $0xb8] sm:$0xff]
      %v3463 = vld [vmem:[%s1650 + $0xc0] sm:$0xff]
      %v3464 = vld [vmem:[%s1650 + $0xc8] sm:$0xff]
      %v3465 = vld [vmem:[%s1650 + $0xd0] sm:$0xff]
      %v3466 = vld [vmem:[%s1650 + $0xd8] sm:$0xff]
      %v3467 = vld [vmem:[%s1650 + $0xe0] sm:$0xff]
      %v3468 = vld [vmem:[%s1650 + $0xe8] sm:$0xff]
      %v3469 = vld [vmem:[%s1650 + $0xf0] sm:$0xff]
      %v3470 = vld [vmem:[%s1650 + $0xf8] sm:$0xff]
      %3472 = vset.pattern.permute.xlu0 0
      %3473 = vperm.xlu0 %3472, %v3439
      %v3474 = vpop.permute.xlu0 %3473
      %3477 = vset.pattern.permute.xlu0 0
      %3478 = vperm.xlu0 %3477, %v3440
      %v3479 = vpop.permute.xlu0 %3478
      %3482 = vset.pattern.permute.xlu0 0
      %3483 = vperm.xlu0 %3482, %v3441
      %v3484 = vpop.permute.xlu0 %3483
      %3487 = vset.pattern.permute.xlu0 0
      %3488 = vperm.xlu0 %3487, %v3442
      %v3489 = vpop.permute.xlu0 %3488
      %3492 = vset.pattern.permute.xlu0 0
      %3493 = vperm.xlu0 %3492, %v3443
      %v3494 = vpop.permute.xlu0 %3493
      %3497 = vset.pattern.permute.xlu0 0
      %3498 = vperm.xlu0 %3497, %v3444
      %v3499 = vpop.permute.xlu0 %3498
      %3502 = vset.pattern.permute.xlu0 0
      %3503 = vperm.xlu0 %3502, %v3445
      %v3504 = vpop.permute.xlu0 %3503
      %3507 = vset.pattern.permute.xlu0 0
      %3508 = vperm.xlu0 %3507, %v3446
      %v3509 = vpop.permute.xlu0 %3508
      %3512 = vset.pattern.permute.xlu0 0
      %3513 = vperm.xlu0 %3512, %v3447
      %v3514 = vpop.permute.xlu0 %3513
      %3517 = vset.pattern.permute.xlu0 0
      %3518 = vperm.xlu0 %3517, %v3448
      %v3519 = vpop.permute.xlu0 %3518
      %3522 = vset.pattern.permute.xlu0 0
      %3523 = vperm.xlu0 %3522, %v3449
      %v3524 = vpop.permute.xlu0 %3523
      %3527 = vset.pattern.permute.xlu0 0
      %3528 = vperm.xlu0 %3527, %v3450
      %v3529 = vpop.permute.xlu0 %3528
      %3532 = vset.pattern.permute.xlu0 0
      %3533 = vperm.xlu0 %3532, %v3451
      %v3534 = vpop.permute.xlu0 %3533
      %3537 = vset.pattern.permute.xlu0 0
      %3538 = vperm.xlu0 %3537, %v3452
      %v3539 = vpop.permute.xlu0 %3538
      %3542 = vset.pattern.permute.xlu0 0
      %3543 = vperm.xlu0 %3542, %v3453
      %v3544 = vpop.permute.xlu0 %3543
      %3547 = vset.pattern.permute.xlu0 0
      %3548 = vperm.xlu0 %3547, %v3454
      %v3549 = vpop.permute.xlu0 %3548
      %3552 = vset.pattern.permute.xlu0 0
      %3553 = vperm.xlu0 %3552, %v3455
      %v3554 = vpop.permute.xlu0 %3553
      %3557 = vset.pattern.permute.xlu0 0
      %3558 = vperm.xlu0 %3557, %v3456
      %v3559 = vpop.permute.xlu0 %3558
      %3562 = vset.pattern.permute.xlu0 0
      %3563 = vperm.xlu0 %3562, %v3457
      %v3564 = vpop.permute.xlu0 %3563
      %3567 = vset.pattern.permute.xlu0 0
      %3568 = vperm.xlu0 %3567, %v3458
      %v3569 = vpop.permute.xlu0 %3568
      %3572 = vset.pattern.permute.xlu0 0
      %3573 = vperm.xlu0 %3572, %v3459
      %v3574 = vpop.permute.xlu0 %3573
      %3577 = vset.pattern.permute.xlu0 0
      %3578 = vperm.xlu0 %3577, %v3460
      %v3579 = vpop.permute.xlu0 %3578
      %3582 = vset.pattern.permute.xlu0 0
      %3583 = vperm.xlu0 %3582, %v3461
      %v3584 = vpop.permute.xlu0 %3583
      %3587 = vset.pattern.permute.xlu0 0
      %3588 = vperm.xlu0 %3587, %v3462
      %v3589 = vpop.permute.xlu0 %3588
      %3592 = vset.pattern.permute.xlu0 0
      %3593 = vperm.xlu0 %3592, %v3463
      %v3594 = vpop.permute.xlu0 %3593
      %3597 = vset.pattern.permute.xlu0 0
      %3598 = vperm.xlu0 %3597, %v3464
      %v3599 = vpop.permute.xlu0 %3598
      %3602 = vset.pattern.permute.xlu0 0
      %3603 = vperm.xlu0 %3602, %v3465
      %v3604 = vpop.permute.xlu0 %3603
      %3607 = vset.pattern.permute.xlu0 0
      %3608 = vperm.xlu0 %3607, %v3466
      %v3609 = vpop.permute.xlu0 %3608
      %3612 = vset.pattern.permute.xlu0 0
      %3613 = vperm.xlu0 %3612, %v3467
      %v3614 = vpop.permute.xlu0 %3613
      %3617 = vset.pattern.permute.xlu0 0
      %3618 = vperm.xlu0 %3617, %v3468
      %v3619 = vpop.permute.xlu0 %3618
      %3622 = vset.pattern.permute.xlu0 0
      %3623 = vperm.xlu0 %3622, %v3469
      %v3624 = vpop.permute.xlu0 %3623
      %3627 = vset.pattern.permute.xlu0 0
      %3628 = vperm.xlu0 %3627, %v3470
      %v3629 = vpop.permute.xlu0 %3628
      %v3631 = vmul.f32 %v3313, %v3474
      %v3632 = vmul.f32 %v3316, %v3479
      %v3633 = vmul.f32 %v3321, %v3484
      %v3634 = vmul.f32 %v3324, %v3489
      %v3635 = vmul.f32 %v3329, %v3494
      %v3636 = vmul.f32 %v3332, %v3499
      %v3637 = vmul.f32 %v3337, %v3504
      %v3638 = vmul.f32 %v3340, %v3509
      %v3639 = vmul.f32 %v3345, %v3514
      %v3640 = vmul.f32 %v3348, %v3519
      %v3641 = vmul.f32 %v3353, %v3524
      %v3642 = vmul.f32 %v3356, %v3529
      %v3643 = vmul.f32 %v3361, %v3534
      %v3644 = vmul.f32 %v3364, %v3539
      %v3645 = vmul.f32 %v3369, %v3544
      %v3646 = vmul.f32 %v3372, %v3549
      %v3647 = vmul.f32 %v3377, %v3554
      %v3648 = vmul.f32 %v3380, %v3559
      %v3649 = vmul.f32 %v3385, %v3564
      %v3650 = vmul.f32 %v3388, %v3569
      %v3651 = vmul.f32 %v3393, %v3574
      %v3652 = vmul.f32 %v3396, %v3579
      %v3653 = vmul.f32 %v3401, %v3584
      %v3654 = vmul.f32 %v3404, %v3589
      %v3655 = vmul.f32 %v3409, %v3594
      %v3656 = vmul.f32 %v3412, %v3599
      %v3657 = vmul.f32 %v3417, %v3604
      %v3658 = vmul.f32 %v3420, %v3609
      %v3659 = vmul.f32 %v3425, %v3614
      %v3660 = vmul.f32 %v3428, %v3619
      %v3661 = vmul.f32 %v3433, %v3624
      %v3662 = vmul.f32 %v3436, %v3629
      %v3663 = vld [vmem:[#allocation2] sm:$0xff]
      %v3664 = vld [vmem:[#allocation2 + $0x8] sm:$0xff]
      %v3665 = vld [vmem:[#allocation2 + $0x10] sm:$0xff]
      %v3666 = vld [vmem:[#allocation2 + $0x18] sm:$0xff]
      %v3667 = vld [vmem:[#allocation2 + $0x20] sm:$0xff]
      %v3668 = vld [vmem:[#allocation2 + $0x28] sm:$0xff]
      %v3669 = vld [vmem:[#allocation2 + $0x30] sm:$0xff]
      %v3670 = vld [vmem:[#allocation2 + $0x38] sm:$0xff]
      %v3671 = vld [vmem:[#allocation2 + $0x40] sm:$0xff]
      %v3672 = vld [vmem:[#allocation2 + $0x48] sm:$0xff]
      %v3673 = vld [vmem:[#allocation2 + $0x50] sm:$0xff]
      %v3674 = vld [vmem:[#allocation2 + $0x58] sm:$0xff]
      %v3675 = vld [vmem:[#allocation2 + $0x60] sm:$0xff]
      %v3676 = vld [vmem:[#allocation2 + $0x68] sm:$0xff]
      %v3677 = vld [vmem:[#allocation2 + $0x70] sm:$0xff]
      %v3678 = vld [vmem:[#allocation2 + $0x78] sm:$0xff]
      %v3679 = vld [vmem:[#allocation2 + $0x80] sm:$0xff]
      %v3680 = vld [vmem:[#allocation2 + $0x88] sm:$0xff]
      %v3681 = vld [vmem:[#allocation2 + $0x90] sm:$0xff]
      %v3682 = vld [vmem:[#allocation2 + $0x98] sm:$0xff]
      %v3683 = vld [vmem:[#allocation2 + $0xa0] sm:$0xff]
      %v3684 = vld [vmem:[#allocation2 + $0xa8] sm:$0xff]
      %v3685 = vld [vmem:[#allocation2 + $0xb0] sm:$0xff]
      %v3686 = vld [vmem:[#allocation2 + $0xb8] sm:$0xff]
      %v3687 = vld [vmem:[#allocation2 + $0xc0] sm:$0xff]
      %v3688 = vld [vmem:[#allocation2 + $0xc8] sm:$0xff]
      %v3689 = vld [vmem:[#allocation2 + $0xd0] sm:$0xff]
      %v3690 = vld [vmem:[#allocation2 + $0xd8] sm:$0xff]
      %v3691 = vld [vmem:[#allocation2 + $0xe0] sm:$0xff]
      %v3692 = vld [vmem:[#allocation2 + $0xe8] sm:$0xff]
      %v3693 = vld [vmem:[#allocation2 + $0xf0] sm:$0xff]
      %v3694 = vld [vmem:[#allocation2 + $0xf8] sm:$0xff]
      %v3695 = vadd.f32 %v3663, %v3631
      %v3696 = vadd.f32 %v3664, %v3632
      %v3697 = vadd.f32 %v3665, %v3633
      %v3698 = vadd.f32 %v3666, %v3634
      %v3699 = vadd.f32 %v3667, %v3635
      %v3700 = vadd.f32 %v3668, %v3636
      %v3701 = vadd.f32 %v3669, %v3637
      %v3702 = vadd.f32 %v3670, %v3638
      %v3703 = vadd.f32 %v3671, %v3639
      %v3704 = vadd.f32 %v3672, %v3640
      %v3705 = vadd.f32 %v3673, %v3641
      %v3706 = vadd.f32 %v3674, %v3642
      %v3707 = vadd.f32 %v3675, %v3643
      %v3708 = vadd.f32 %v3676, %v3644
      %v3709 = vadd.f32 %v3677, %v3645
      %v3710 = vadd.f32 %v3678, %v3646
      %v3711 = vadd.f32 %v3679, %v3647
      %v3712 = vadd.f32 %v3680, %v3648
      %v3713 = vadd.f32 %v3681, %v3649
      %v3714 = vadd.f32 %v3682, %v3650
      %v3715 = vadd.f32 %v3683, %v3651
      %v3716 = vadd.f32 %v3684, %v3652
      %v3717 = vadd.f32 %v3685, %v3653
      %v3718 = vadd.f32 %v3686, %v3654
      %v3719 = vadd.f32 %v3687, %v3655
      %v3720 = vadd.f32 %v3688, %v3656
      %v3721 = vadd.f32 %v3689, %v3657
      %v3722 = vadd.f32 %v3690, %v3658
      %v3723 = vadd.f32 %v3691, %v3659
      %v3724 = vadd.f32 %v3692, %v3660
      %v3725 = vadd.f32 %v3693, %v3661
      %v3726 = vadd.f32 %v3694, %v3662
      %3727 = vst [vmem:[#allocation2] sm:$0xff] %v3695
      %3728 = vst [vmem:[#allocation2 + $0x8] sm:$0xff] %v3696
      %3729 = vst [vmem:[#allocation2 + $0x10] sm:$0xff] %v3697
      %3730 = vst [vmem:[#allocation2 + $0x18] sm:$0xff] %v3698
      %3731 = vst [vmem:[#allocation2 + $0x20] sm:$0xff] %v3699
      %3732 = vst [vmem:[#allocation2 + $0x28] sm:$0xff] %v3700
      %3733 = vst [vmem:[#allocation2 + $0x30] sm:$0xff] %v3701
      %3734 = vst [vmem:[#allocation2 + $0x38] sm:$0xff] %v3702
      %3735 = vst [vmem:[#allocation2 + $0x40] sm:$0xff] %v3703
      %3736 = vst [vmem:[#allocation2 + $0x48] sm:$0xff] %v3704
      %3737 = vst [vmem:[#allocation2 + $0x50] sm:$0xff] %v3705
      %3738 = vst [vmem:[#allocation2 + $0x58] sm:$0xff] %v3706
      %3739 = vst [vmem:[#allocation2 + $0x60] sm:$0xff] %v3707
      %3740 = vst [vmem:[#allocation2 + $0x68] sm:$0xff] %v3708
      %3741 = vst [vmem:[#allocation2 + $0x70] sm:$0xff] %v3709
      %3742 = vst [vmem:[#allocation2 + $0x78] sm:$0xff] %v3710
      %3743 = vst [vmem:[#allocation2 + $0x80] sm:$0xff] %v3711
      %3744 = vst [vmem:[#allocation2 + $0x88] sm:$0xff] %v3712
      %3745 = vst [vmem:[#allocation2 + $0x90] sm:$0xff] %v3713
      %3746 = vst [vmem:[#allocation2 + $0x98] sm:$0xff] %v3714
      %3747 = vst [vmem:[#allocation2 + $0xa0] sm:$0xff] %v3715
      %3748 = vst [vmem:[#allocation2 + $0xa8] sm:$0xff] %v3716
      %3749 = vst [vmem:[#allocation2 + $0xb0] sm:$0xff] %v3717
      %3750 = vst [vmem:[#allocation2 + $0xb8] sm:$0xff] %v3718
      %3751 = vst [vmem:[#allocation2 + $0xc0] sm:$0xff] %v3719
      %3752 = vst [vmem:[#allocation2 + $0xc8] sm:$0xff] %v3720
      %3753 = vst [vmem:[#allocation2 + $0xd0] sm:$0xff] %v3721
      %3754 = vst [vmem:[#allocation2 + $0xd8] sm:$0xff] %v3722
      %3755 = vst [vmem:[#allocation2 + $0xe0] sm:$0xff] %v3723
      %3756 = vst [vmem:[#allocation2 + $0xe8] sm:$0xff] %v3724
      %3757 = vst [vmem:[#allocation2 + $0xf0] sm:$0xff] %v3725
      %3758 = vst [vmem:[#allocation2 + $0xf8] sm:$0xff] %v3726
      %v3759 = vld [vmem:[%s230 + $0x20] sm:$0xf]
      %v3760 = vld [vmem:[%s230 + $0x24] sm:$0xf]
      %v3761 = vld [vmem:[%s230 + $0x28] sm:$0xf]
      %v3762 = vld [vmem:[%s230 + $0x2c] sm:$0xf]
      %v3763 = vld [vmem:[%s230 + $0x30] sm:$0xf]
      %v3764 = vld [vmem:[%s230 + $0x34] sm:$0xf]
      %v3765 = vld [vmem:[%s230 + $0x38] sm:$0xf]
      %v3766 = vld [vmem:[%s230 + $0x3c] sm:$0xf]
      %v3767 = vld [vmem:[%s230 + $0x40] sm:$0xf]
      %v3768 = vld [vmem:[%s230 + $0x44] sm:$0xf]
      %v3769 = vld [vmem:[%s230 + $0x48] sm:$0xf]
      %v3770 = vld [vmem:[%s230 + $0x4c] sm:$0xf]
      %v3771 = vld [vmem:[%s230 + $0x50] sm:$0xf]
      %v3772 = vld [vmem:[%s230 + $0x54] sm:$0xf]
      %v3773 = vld [vmem:[%s230 + $0x58] sm:$0xf]
      %v3774 = vld [vmem:[%s230 + $0x5c] sm:$0xf]
      %v3775 = vld [vmem:[%s230 + $0x60] sm:$0xf]
      %v3776 = vld [vmem:[%s230 + $0x64] sm:$0xf]
      %v3777 = vld [vmem:[%s230 + $0x68] sm:$0xf]
      %v3778 = vld [vmem:[%s230 + $0x6c] sm:$0xf]
      %v3779 = vld [vmem:[%s230 + $0x70] sm:$0xf]
      %v3780 = vld [vmem:[%s230 + $0x74] sm:$0xf]
      %v3781 = vld [vmem:[%s230 + $0x78] sm:$0xf]
      %v3782 = vld [vmem:[%s230 + $0x7c] sm:$0xf]
      %v3783 = vld [vmem:[%s230 + $0x80] sm:$0xf]
      %v3784 = vld [vmem:[%s230 + $0x84] sm:$0xf]
      %v3785 = vld [vmem:[%s230 + $0x88] sm:$0xf]
      %v3786 = vld [vmem:[%s230 + $0x8c] sm:$0xf]
      %v3787 = vld [vmem:[%s230 + $0x90] sm:$0xf]
      %v3788 = vld [vmem:[%s230 + $0x94] sm:$0xf]
      %v3789 = vld [vmem:[%s230 + $0x98] sm:$0xf]
      %v3790 = vld [vmem:[%s230 + $0x9c] sm:$0xf]
      %s3791 = scalar_lea.vmem %s1, 12
      %v3792 = vld [vmem:[%s3791] sm:$0x3]
      %v3825 = vunpack.c.l.b16 %v3759
      %v3826 = vunpack.c.l.b16 %v3760
      %v3827 = vunpack.c.l.b16 %v3761
      %v3828 = vunpack.c.l.b16 %v3762
      %v3829 = vunpack.c.l.b16 %v3763
      %v3830 = vunpack.c.l.b16 %v3764
      %v3831 = vunpack.c.l.b16 %v3765
      %v3832 = vunpack.c.l.b16 %v3766
      %v3833 = vunpack.c.l.b16 %v3767
      %v3834 = vunpack.c.l.b16 %v3768
      %v3835 = vunpack.c.l.b16 %v3769
      %v3836 = vunpack.c.l.b16 %v3770
      %v3837 = vunpack.c.l.b16 %v3771
      %v3838 = vunpack.c.l.b16 %v3772
      %v3839 = vunpack.c.l.b16 %v3773
      %v3840 = vunpack.c.l.b16 %v3774
      %v3841 = vunpack.c.l.b16 %v3775
      %v3842 = vunpack.c.l.b16 %v3776
      %v3843 = vunpack.c.l.b16 %v3777
      %v3844 = vunpack.c.l.b16 %v3778
      %v3845 = vunpack.c.l.b16 %v3779
      %v3846 = vunpack.c.l.b16 %v3780
      %v3847 = vunpack.c.l.b16 %v3781
      %v3848 = vunpack.c.l.b16 %v3782
      %v3849 = vunpack.c.l.b16 %v3783
      %v3850 = vunpack.c.l.b16 %v3784
      %v3851 = vunpack.c.l.b16 %v3785
      %v3852 = vunpack.c.l.b16 %v3786
      %v3853 = vunpack.c.l.b16 %v3787
      %v3854 = vunpack.c.l.b16 %v3788
      %v3855 = vunpack.c.l.b16 %v3789
      %v3856 = vunpack.c.l.b16 %v3790
      %v3857 = vpack.c.b16 %v3826, %v3825
      %v3858 = vpack.c.b16 %v3828, %v3827
      %v3859 = vpack.c.b16 %v3830, %v3829
      %v3860 = vpack.c.b16 %v3832, %v3831
      %v3861 = vpack.c.b16 %v3834, %v3833
      %v3862 = vpack.c.b16 %v3836, %v3835
      %v3863 = vpack.c.b16 %v3838, %v3837
      %v3864 = vpack.c.b16 %v3840, %v3839
      %v3865 = vpack.c.b16 %v3842, %v3841
      %v3866 = vpack.c.b16 %v3844, %v3843
      %v3867 = vpack.c.b16 %v3846, %v3845
      %v3868 = vpack.c.b16 %v3848, %v3847
      %v3869 = vpack.c.b16 %v3850, %v3849
      %v3870 = vpack.c.b16 %v3852, %v3851
      %v3871 = vpack.c.b16 %v3854, %v3853
      %v3872 = vpack.c.b16 %v3856, %v3855
      %v3874 = vsel %vm356, %v3857, 0
      %v3877 = vsel %vm356, %v3858, 0
      %v3880 = vsel %vm356, %v3859, 0
      %v3883 = vsel %vm356, %v3860, 0
      %v3886 = vsel %vm356, %v3861, 0
      %v3889 = vsel %vm356, %v3862, 0
      %v3892 = vsel %vm356, %v3863, 0
      %v3895 = vsel %vm356, %v3864, 0
      %v3898 = vsel %vm356, %v3865, 0
      %v3901 = vsel %vm356, %v3866, 0
      %v3904 = vsel %vm356, %v3867, 0
      %v3907 = vsel %vm356, %v3868, 0
      %v3910 = vsel %vm356, %v3869, 0
      %v3913 = vsel %vm356, %v3870, 0
      %v3916 = vsel %vm356, %v3871, 0
      %v3919 = vsel %vm356, %v3872, 0
      %v3922 = vsel %vm405, %v3792, 0
      %3924 = vmatprep.subr.bf16.mxu0 0
      %3925 = vmatpush1.bf16.msra.mxu0 %v3922
      %3926 = vmatprep.subr.bf16.mxu0 0
      %3927 = vmatpush1.bf16.msra.mxu0 0
      %3928 = vmatprep.subr.bf16.mxu0 0
      %3929 = vmatpush1.bf16.msra.mxu0 0
      %3930 = vmatprep.subr.bf16.mxu0 0
      %3931 = vmatpush1.bf16.msra.mxu0 0
      %3932 = vmatprep.subr.bf16.mxu0 0
      %3933 = vmatpush1.bf16.msra.mxu0 0
      %3934 = vmatprep.subr.bf16.mxu0 0
      %3935 = vmatpush1.bf16.msra.mxu0 0
      %3936 = vmatprep.subr.bf16.mxu0 0
      %3937 = vmatpush1.bf16.msra.mxu0 0
      %3938 = vmatprep.subr.bf16.mxu0 0
      %3939 = vmatpush1.bf16.msra.mxu0 0
      %3940 = vmatprep.subr.bf16.mxu0 0
      %3941 = vmatpush1.bf16.msra.mxu0 0
      %3942 = vmatprep.subr.bf16.mxu0 0
      %3943 = vmatpush1.bf16.msra.mxu0 0
      %3944 = vmatprep.subr.bf16.mxu0 0
      %3945 = vmatpush1.bf16.msra.mxu0 0
      %3946 = vmatprep.subr.bf16.mxu0 0
      %3947 = vmatpush1.bf16.msra.mxu0 0
      %3948 = vmatprep.subr.bf16.mxu0 0
      %3949 = vmatpush1.bf16.msra.mxu0 0
      %3950 = vmatprep.subr.bf16.mxu0 0
      %3951 = vmatpush1.bf16.msra.mxu0 0
      %3952 = vmatprep.subr.bf16.mxu0 0
      %3953 = vmatpush1.bf16.msra.mxu0 0
      %3954 = vmatprep.subr.bf16.mxu0 0
      %3955 = vmatpush1.bf16.msra.mxu0 0
      %3956 = vmatprep.mubr.bf16.mxu0 0
      %3957 = vmatmul.mubr.bf16.gmra.mrb[0].mxu0 %v3874
      %v3958 = vpop.f32.mrb[0].mxu0
      %v3959 = vadd.f32 0.0, %v3958
      %v3960 = vpop.f32.mrb[0].mxu0
      %v3961 = vpop.f32.mrb[0].mxu0
      %v3962 = vadd.f32 0.0, %v3961
      %v3963 = vpop.f32.mrb[0].mxu0
      %3964 = vmatprep.mubr.bf16.mxu0 0
      %3965 = vmatmul.mubr.bf16.gmra.mrb[0].mxu0 %v3877
      %v3966 = vpop.f32.mrb[0].mxu0
      %v3967 = vadd.f32 0.0, %v3966
      %v3968 = vpop.f32.mrb[0].mxu0
      %v3969 = vpop.f32.mrb[0].mxu0
      %v3970 = vadd.f32 0.0, %v3969
      %v3971 = vpop.f32.mrb[0].mxu0
      %3972 = vmatprep.mubr.bf16.mxu0 0
      %3973 = vmatmul.mubr.bf16.gmra.mrb[0].mxu0 %v3880
      %v3974 = vpop.f32.mrb[0].mxu0
      %v3975 = vadd.f32 0.0, %v3974
      %v3976 = vpop.f32.mrb[0].mxu0
      %v3977 = vpop.f32.mrb[0].mxu0
      %v3978 = vadd.f32 0.0, %v3977
      %v3979 = vpop.f32.mrb[0].mxu0
      %3980 = vmatprep.mubr.bf16.mxu0 0
      %3981 = vmatmul.mubr.bf16.gmra.mrb[0].mxu0 %v3883
      %v3982 = vpop.f32.mrb[0].mxu0
      %v3983 = vadd.f32 0.0, %v3982
      %v3984 = vpop.f32.mrb[0].mxu0
      %v3985 = vpop.f32.mrb[0].mxu0
      %v3986 = vadd.f32 0.0, %v3985
      %v3987 = vpop.f32.mrb[0].mxu0
      %3988 = vmatprep.mubr.bf16.mxu0 0
      %3989 = vmatmul.mubr.bf16.gmra.mrb[0].mxu0 %v3886
      %v3990 = vpop.f32.mrb[0].mxu0
      %v3991 = vadd.f32 0.0, %v3990
      %v3992 = vpop.f32.mrb[0].mxu0
      %v3993 = vpop.f32.mrb[0].mxu0
      %v3994 = vadd.f32 0.0, %v3993
      %v3995 = vpop.f32.mrb[0].mxu0
      %3996 = vmatprep.mubr.bf16.mxu0 0
      %3997 = vmatmul.mubr.bf16.gmra.mrb[0].mxu0 %v3889
      %v3998 = vpop.f32.mrb[0].mxu0
      %v3999 = vadd.f32 0.0, %v3998
      %v4000 = vpop.f32.mrb[0].mxu0
      %v4001 = vpop.f32.mrb[0].mxu0
      %v4002 = vadd.f32 0.0, %v4001
      %v4003 = vpop.f32.mrb[0].mxu0
      %4004 = vmatprep.mubr.bf16.mxu0 0
      %4005 = vmatmul.mubr.bf16.gmra.mrb[0].mxu0 %v3892
      %v4006 = vpop.f32.mrb[0].mxu0
      %v4007 = vadd.f32 0.0, %v4006
      %v4008 = vpop.f32.mrb[0].mxu0
      %v4009 = vpop.f32.mrb[0].mxu0
      %v4010 = vadd.f32 0.0, %v4009
      %v4011 = vpop.f32.mrb[0].mxu0
      %4012 = vmatprep.mubr.bf16.mxu0 0
      %4013 = vmatmul.mubr.bf16.gmra.mrb[0].mxu0 %v3895
      %v4014 = vpop.f32.mrb[0].mxu0
      %v4015 = vadd.f32 0.0, %v4014
      %v4016 = vpop.f32.mrb[0].mxu0
      %v4017 = vpop.f32.mrb[0].mxu0
      %v4018 = vadd.f32 0.0, %v4017
      %v4019 = vpop.f32.mrb[0].mxu0
      %4020 = vmatprep.mubr.bf16.mxu0 0
      %4021 = vmatmul.mubr.bf16.gmra.mrb[0].mxu0 %v3898
      %v4022 = vpop.f32.mrb[0].mxu0
      %v4023 = vadd.f32 0.0, %v4022
      %v4024 = vpop.f32.mrb[0].mxu0
      %v4025 = vpop.f32.mrb[0].mxu0
      %v4026 = vadd.f32 0.0, %v4025
      %v4027 = vpop.f32.mrb[0].mxu0
      %4028 = vmatprep.mubr.bf16.mxu0 0
      %4029 = vmatmul.mubr.bf16.gmra.mrb[0].mxu0 %v3901
      %v4030 = vpop.f32.mrb[0].mxu0
      %v4031 = vadd.f32 0.0, %v4030
      %v4032 = vpop.f32.mrb[0].mxu0
      %v4033 = vpop.f32.mrb[0].mxu0
      %v4034 = vadd.f32 0.0, %v4033
      %v4035 = vpop.f32.mrb[0].mxu0
      %4036 = vmatprep.mubr.bf16.mxu0 0
      %4037 = vmatmul.mubr.bf16.gmra.mrb[0].mxu0 %v3904
      %v4038 = vpop.f32.mrb[0].mxu0
      %v4039 = vadd.f32 0.0, %v4038
      %v4040 = vpop.f32.mrb[0].mxu0
      %v4041 = vpop.f32.mrb[0].mxu0
      %v4042 = vadd.f32 0.0, %v4041
      %v4043 = vpop.f32.mrb[0].mxu0
      %4044 = vmatprep.mubr.bf16.mxu0 0
      %4045 = vmatmul.mubr.bf16.gmra.mrb[0].mxu0 %v3907
      %v4046 = vpop.f32.mrb[0].mxu0
      %v4047 = vadd.f32 0.0, %v4046
      %v4048 = vpop.f32.mrb[0].mxu0
      %v4049 = vpop.f32.mrb[0].mxu0
      %v4050 = vadd.f32 0.0, %v4049
      %v4051 = vpop.f32.mrb[0].mxu0
      %4052 = vmatprep.mubr.bf16.mxu0 0
      %4053 = vmatmul.mubr.bf16.gmra.mrb[0].mxu0 %v3910
      %v4054 = vpop.f32.mrb[0].mxu0
      %v4055 = vadd.f32 0.0, %v4054
      %v4056 = vpop.f32.mrb[0].mxu0
      %v4057 = vpop.f32.mrb[0].mxu0
      %v4058 = vadd.f32 0.0, %v4057
      %v4059 = vpop.f32.mrb[0].mxu0
      %4060 = vmatprep.mubr.bf16.mxu0 0
      %4061 = vmatmul.mubr.bf16.gmra.mrb[0].mxu0 %v3913
      %v4062 = vpop.f32.mrb[0].mxu0
      %v4063 = vadd.f32 0.0, %v4062
      %v4064 = vpop.f32.mrb[0].mxu0
      %v4065 = vpop.f32.mrb[0].mxu0
      %v4066 = vadd.f32 0.0, %v4065
      %v4067 = vpop.f32.mrb[0].mxu0
      %4068 = vmatprep.mubr.bf16.mxu0 0
      %4069 = vmatmul.mubr.bf16.gmra.mrb[0].mxu0 %v3916
      %v4070 = vpop.f32.mrb[0].mxu0
      %v4071 = vadd.f32 0.0, %v4070
      %v4072 = vpop.f32.mrb[0].mxu0
      %v4073 = vpop.f32.mrb[0].mxu0
      %v4074 = vadd.f32 0.0, %v4073
      %v4075 = vpop.f32.mrb[0].mxu0
      %4076 = vmatprep.mubr.bf16.mxu0 0
      %4077 = vmatmul.mubr.bf16.gmra.mrb[0].mxu0 %v3919
      %v4078 = vpop.f32.mrb[0].mxu0
      %v4079 = vadd.f32 0.0, %v4078
      %v4080 = vpop.f32.mrb[0].mxu0
      %v4081 = vpop.f32.mrb[0].mxu0
      %v4082 = vadd.f32 0.0, %v4081
      %v4083 = vpop.f32.mrb[0].mxu0
      %4084 = vdwg.mxu0
      %v4085 = vld [vmem:[%s2] sm:$0xff]
      %v4086 = vld [vmem:[%s2 + $0x8] sm:$0xff]
      %v4087 = vld [vmem:[%s2 + $0x10] sm:$0xff]
      %v4088 = vld [vmem:[%s2 + $0x18] sm:$0xff]
      %v4089 = vld [vmem:[%s2 + $0x20] sm:$0xff]
      %v4090 = vld [vmem:[%s2 + $0x28] sm:$0xff]
      %v4091 = vld [vmem:[%s2 + $0x30] sm:$0xff]
      %v4092 = vld [vmem:[%s2 + $0x38] sm:$0xff]
      %v4093 = vld [vmem:[%s2 + $0x40] sm:$0xff]
      %v4094 = vld [vmem:[%s2 + $0x48] sm:$0xff]
      %v4095 = vld [vmem:[%s2 + $0x50] sm:$0xff]
      %v4096 = vld [vmem:[%s2 + $0x58] sm:$0xff]
      %v4097 = vld [vmem:[%s2 + $0x60] sm:$0xff]
      %v4098 = vld [vmem:[%s2 + $0x68] sm:$0xff]
      %v4099 = vld [vmem:[%s2 + $0x70] sm:$0xff]
      %v4100 = vld [vmem:[%s2 + $0x78] sm:$0xff]
      %v4101 = vld [vmem:[%s2 + $0x80] sm:$0xff]
      %v4102 = vld [vmem:[%s2 + $0x88] sm:$0xff]
      %v4103 = vld [vmem:[%s2 + $0x90] sm:$0xff]
      %v4104 = vld [vmem:[%s2 + $0x98] sm:$0xff]
      %v4105 = vld [vmem:[%s2 + $0xa0] sm:$0xff]
      %v4106 = vld [vmem:[%s2 + $0xa8] sm:$0xff]
      %v4107 = vld [vmem:[%s2 + $0xb0] sm:$0xff]
      %v4108 = vld [vmem:[%s2 + $0xb8] sm:$0xff]
      %v4109 = vld [vmem:[%s2 + $0xc0] sm:$0xff]
      %v4110 = vld [vmem:[%s2 + $0xc8] sm:$0xff]
      %v4111 = vld [vmem:[%s2 + $0xd0] sm:$0xff]
      %v4112 = vld [vmem:[%s2 + $0xd8] sm:$0xff]
      %v4113 = vld [vmem:[%s2 + $0xe0] sm:$0xff]
      %v4114 = vld [vmem:[%s2 + $0xe8] sm:$0xff]
      %v4115 = vld [vmem:[%s2 + $0xf0] sm:$0xff]
      %v4116 = vld [vmem:[%s2 + $0xf8] sm:$0xff]
      %4118 = vset.pattern.permute.xlu0 0
      %4119 = vperm.xlu0 %4118, %v4085
      %v4120 = vpop.permute.xlu0 %4119
      %4123 = vset.pattern.permute.xlu0 0
      %4124 = vperm.xlu0 %4123, %v4086
      %v4125 = vpop.permute.xlu0 %4124
      %4128 = vset.pattern.permute.xlu0 0
      %4129 = vperm.xlu0 %4128, %v4087
      %v4130 = vpop.permute.xlu0 %4129
      %4133 = vset.pattern.permute.xlu0 0
      %4134 = vperm.xlu0 %4133, %v4088
      %v4135 = vpop.permute.xlu0 %4134
      %4138 = vset.pattern.permute.xlu0 0
      %4139 = vperm.xlu0 %4138, %v4089
      %v4140 = vpop.permute.xlu0 %4139
      %4143 = vset.pattern.permute.xlu0 0
      %4144 = vperm.xlu0 %4143, %v4090
      %v4145 = vpop.permute.xlu0 %4144
      %4148 = vset.pattern.permute.xlu0 0
      %4149 = vperm.xlu0 %4148, %v4091
      %v4150 = vpop.permute.xlu0 %4149
      %4153 = vset.pattern.permute.xlu0 0
      %4154 = vperm.xlu0 %4153, %v4092
      %v4155 = vpop.permute.xlu0 %4154
      %4158 = vset.pattern.permute.xlu0 0
      %4159 = vperm.xlu0 %4158, %v4093
      %v4160 = vpop.permute.xlu0 %4159
      %4163 = vset.pattern.permute.xlu0 0
      %4164 = vperm.xlu0 %4163, %v4094
      %v4165 = vpop.permute.xlu0 %4164
      %4168 = vset.pattern.permute.xlu0 0
      %4169 = vperm.xlu0 %4168, %v4095
      %v4170 = vpop.permute.xlu0 %4169
      %4173 = vset.pattern.permute.xlu0 0
      %4174 = vperm.xlu0 %4173, %v4096
      %v4175 = vpop.permute.xlu0 %4174
      %4178 = vset.pattern.permute.xlu0 0
      %4179 = vperm.xlu0 %4178, %v4097
      %v4180 = vpop.permute.xlu0 %4179
      %4183 = vset.pattern.permute.xlu0 0
      %4184 = vperm.xlu0 %4183, %v4098
      %v4185 = vpop.permute.xlu0 %4184
      %4188 = vset.pattern.permute.xlu0 0
      %4189 = vperm.xlu0 %4188, %v4099
      %v4190 = vpop.permute.xlu0 %4189
      %4193 = vset.pattern.permute.xlu0 0
      %4194 = vperm.xlu0 %4193, %v4100
      %v4195 = vpop.permute.xlu0 %4194
      %4198 = vset.pattern.permute.xlu0 0
      %4199 = vperm.xlu0 %4198, %v4101
      %v4200 = vpop.permute.xlu0 %4199
      %4203 = vset.pattern.permute.xlu0 0
      %4204 = vperm.xlu0 %4203, %v4102
      %v4205 = vpop.permute.xlu0 %4204
      %4208 = vset.pattern.permute.xlu0 0
      %4209 = vperm.xlu0 %4208, %v4103
      %v4210 = vpop.permute.xlu0 %4209
      %4213 = vset.pattern.permute.xlu0 0
      %4214 = vperm.xlu0 %4213, %v4104
      %v4215 = vpop.permute.xlu0 %4214
      %4218 = vset.pattern.permute.xlu0 0
      %4219 = vperm.xlu0 %4218, %v4105
      %v4220 = vpop.permute.xlu0 %4219
      %4223 = vset.pattern.permute.xlu0 0
      %4224 = vperm.xlu0 %4223, %v4106
      %v4225 = vpop.permute.xlu0 %4224
      %4228 = vset.pattern.permute.xlu0 0
      %4229 = vperm.xlu0 %4228, %v4107
      %v4230 = vpop.permute.xlu0 %4229
      %4233 = vset.pattern.permute.xlu0 0
      %4234 = vperm.xlu0 %4233, %v4108
      %v4235 = vpop.permute.xlu0 %4234
      %4238 = vset.pattern.permute.xlu0 0
      %4239 = vperm.xlu0 %4238, %v4109
      %v4240 = vpop.permute.xlu0 %4239
      %4243 = vset.pattern.permute.xlu0 0
      %4244 = vperm.xlu0 %4243, %v4110
      %v4245 = vpop.permute.xlu0 %4244
      %4248 = vset.pattern.permute.xlu0 0
      %4249 = vperm.xlu0 %4248, %v4111
      %v4250 = vpop.permute.xlu0 %4249
      %4253 = vset.pattern.permute.xlu0 0
      %4254 = vperm.xlu0 %4253, %v4112
      %v4255 = vpop.permute.xlu0 %4254
      %4258 = vset.pattern.permute.xlu0 0
      %4259 = vperm.xlu0 %4258, %v4113
      %v4260 = vpop.permute.xlu0 %4259
      %4263 = vset.pattern.permute.xlu0 0
      %4264 = vperm.xlu0 %4263, %v4114
      %v4265 = vpop.permute.xlu0 %4264
      %4268 = vset.pattern.permute.xlu0 0
      %4269 = vperm.xlu0 %4268, %v4115
      %v4270 = vpop.permute.xlu0 %4269
      %4273 = vset.pattern.permute.xlu0 0
      %4274 = vperm.xlu0 %4273, %v4116
      %v4275 = vpop.permute.xlu0 %4274
      %v4277 = vmul.f32 %v3959, %v4120
      %v4278 = vmul.f32 %v3962, %v4125
      %v4279 = vmul.f32 %v3967, %v4130
      %v4280 = vmul.f32 %v3970, %v4135
      %v4281 = vmul.f32 %v3975, %v4140
      %v4282 = vmul.f32 %v3978, %v4145
      %v4283 = vmul.f32 %v3983, %v4150
      %v4284 = vmul.f32 %v3986, %v4155
      %v4285 = vmul.f32 %v3991, %v4160
      %v4286 = vmul.f32 %v3994, %v4165
      %v4287 = vmul.f32 %v3999, %v4170
      %v4288 = vmul.f32 %v4002, %v4175
      %v4289 = vmul.f32 %v4007, %v4180
      %v4290 = vmul.f32 %v4010, %v4185
      %v4291 = vmul.f32 %v4015, %v4190
      %v4292 = vmul.f32 %v4018, %v4195
      %v4293 = vmul.f32 %v4023, %v4200
      %v4294 = vmul.f32 %v4026, %v4205
      %v4295 = vmul.f32 %v4031, %v4210
      %v4296 = vmul.f32 %v4034, %v4215
      %v4297 = vmul.f32 %v4039, %v4220
      %v4298 = vmul.f32 %v4042, %v4225
      %v4299 = vmul.f32 %v4047, %v4230
      %v4300 = vmul.f32 %v4050, %v4235
      %v4301 = vmul.f32 %v4055, %v4240
      %v4302 = vmul.f32 %v4058, %v4245
      %v4303 = vmul.f32 %v4063, %v4250
      %v4304 = vmul.f32 %v4066, %v4255
      %v4305 = vmul.f32 %v4071, %v4260
      %v4306 = vmul.f32 %v4074, %v4265
      %v4307 = vmul.f32 %v4079, %v4270
      %v4308 = vmul.f32 %v4082, %v4275
      %v4309 = vld [vmem:[#allocation2] sm:$0xff]
      %v4310 = vld [vmem:[#allocation2 + $0x8] sm:$0xff]
      %v4311 = vld [vmem:[#allocation2 + $0x10] sm:$0xff]
      %v4312 = vld [vmem:[#allocation2 + $0x18] sm:$0xff]
      %v4313 = vld [vmem:[#allocation2 + $0x20] sm:$0xff]
      %v4314 = vld [vmem:[#allocation2 + $0x28] sm:$0xff]
      %v4315 = vld [vmem:[#allocation2 + $0x30] sm:$0xff]
      %v4316 = vld [vmem:[#allocation2 + $0x38] sm:$0xff]
      %v4317 = vld [vmem:[#allocation2 + $0x40] sm:$0xff]
      %v4318 = vld [vmem:[#allocation2 + $0x48] sm:$0xff]
      %v4319 = vld [vmem:[#allocation2 + $0x50] sm:$0xff]
      %v4320 = vld [vmem:[#allocation2 + $0x58] sm:$0xff]
      %v4321 = vld [vmem:[#allocation2 + $0x60] sm:$0xff]
      %v4322 = vld [vmem:[#allocation2 + $0x68] sm:$0xff]
      %v4323 = vld [vmem:[#allocation2 + $0x70] sm:$0xff]
      %v4324 = vld [vmem:[#allocation2 + $0x78] sm:$0xff]
      %v4325 = vld [vmem:[#allocation2 + $0x80] sm:$0xff]
      %v4326 = vld [vmem:[#allocation2 + $0x88] sm:$0xff]
      %v4327 = vld [vmem:[#allocation2 + $0x90] sm:$0xff]
      %v4328 = vld [vmem:[#allocation2 + $0x98] sm:$0xff]
      %v4329 = vld [vmem:[#allocation2 + $0xa0] sm:$0xff]
      %v4330 = vld [vmem:[#allocation2 + $0xa8] sm:$0xff]
      %v4331 = vld [vmem:[#allocation2 + $0xb0] sm:$0xff]
      %v4332 = vld [vmem:[#allocation2 + $0xb8] sm:$0xff]
      %v4333 = vld [vmem:[#allocation2 + $0xc0] sm:$0xff]
      %v4334 = vld [vmem:[#allocation2 + $0xc8] sm:$0xff]
      %v4335 = vld [vmem:[#allocation2 + $0xd0] sm:$0xff]
      %v4336 = vld [vmem:[#allocation2 + $0xd8] sm:$0xff]
      %v4337 = vld [vmem:[#allocation2 + $0xe0] sm:$0xff]
      %v4338 = vld [vmem:[#allocation2 + $0xe8] sm:$0xff]
      %v4339 = vld [vmem:[#allocation2 + $0xf0] sm:$0xff]
      %v4340 = vld [vmem:[#allocation2 + $0xf8] sm:$0xff]
      %v4341 = vadd.f32 %v4309, %v4277
      %v4342 = vadd.f32 %v4310, %v4278
      %v4343 = vadd.f32 %v4311, %v4279
      %v4344 = vadd.f32 %v4312, %v4280
      %v4345 = vadd.f32 %v4313, %v4281
      %v4346 = vadd.f32 %v4314, %v4282
      %v4347 = vadd.f32 %v4315, %v4283
      %v4348 = vadd.f32 %v4316, %v4284
      %v4349 = vadd.f32 %v4317, %v4285
      %v4350 = vadd.f32 %v4318, %v4286
      %v4351 = vadd.f32 %v4319, %v4287
      %v4352 = vadd.f32 %v4320, %v4288
      %v4353 = vadd.f32 %v4321, %v4289
      %v4354 = vadd.f32 %v4322, %v4290
      %v4355 = vadd.f32 %v4323, %v4291
      %v4356 = vadd.f32 %v4324, %v4292
      %v4357 = vadd.f32 %v4325, %v4293
      %v4358 = vadd.f32 %v4326, %v4294
      %v4359 = vadd.f32 %v4327, %v4295
      %v4360 = vadd.f32 %v4328, %v4296
      %v4361 = vadd.f32 %v4329, %v4297
      %v4362 = vadd.f32 %v4330, %v4298
      %v4363 = vadd.f32 %v4331, %v4299
      %v4364 = vadd.f32 %v4332, %v4300
      %v4365 = vadd.f32 %v4333, %v4301
      %v4366 = vadd.f32 %v4334, %v4302
      %v4367 = vadd.f32 %v4335, %v4303
      %v4368 = vadd.f32 %v4336, %v4304
      %v4369 = vadd.f32 %v4337, %v4305
      %v4370 = vadd.f32 %v4338, %v4306
      %v4371 = vadd.f32 %v4339, %v4307
      %v4372 = vadd.f32 %v4340, %v4308
      %4373 = vst [vmem:[#allocation2] sm:$0xff] %v4341
      %4374 = vst [vmem:[#allocation2 + $0x8] sm:$0xff] %v4342
      %4375 = vst [vmem:[#allocation2 + $0x10] sm:$0xff] %v4343
      %4376 = vst [vmem:[#allocation2 + $0x18] sm:$0xff] %v4344
      %4377 = vst [vmem:[#allocation2 + $0x20] sm:$0xff] %v4345
      %4378 = vst [vmem:[#allocation2 + $0x28] sm:$0xff] %v4346
      %4379 = vst [vmem:[#allocation2 + $0x30] sm:$0xff] %v4347
      %4380 = vst [vmem:[#allocation2 + $0x38] sm:$0xff] %v4348
      %4381 = vst [vmem:[#allocation2 + $0x40] sm:$0xff] %v4349
      %4382 = vst [vmem:[#allocation2 + $0x48] sm:$0xff] %v4350
      %4383 = vst [vmem:[#allocation2 + $0x50] sm:$0xff] %v4351
      %4384 = vst [vmem:[#allocation2 + $0x58] sm:$0xff] %v4352
      %4385 = vst [vmem:[#allocation2 + $0x60] sm:$0xff] %v4353
      %4386 = vst [vmem:[#allocation2 + $0x68] sm:$0xff] %v4354
      %4387 = vst [vmem:[#allocation2 + $0x70] sm:$0xff] %v4355
      %4388 = vst [vmem:[#allocation2 + $0x78] sm:$0xff] %v4356
      %4389 = vst [vmem:[#allocation2 + $0x80] sm:$0xff] %v4357
      %4390 = vst [vmem:[#allocation2 + $0x88] sm:$0xff] %v4358
      %4391 = vst [vmem:[#allocation2 + $0x90] sm:$0xff] %v4359
      %4392 = vst [vmem:[#allocation2 + $0x98] sm:$0xff] %v4360
      %4393 = vst [vmem:[#allocation2 + $0xa0] sm:$0xff] %v4361
      %4394 = vst [vmem:[#allocation2 + $0xa8] sm:$0xff] %v4362
      %4395 = vst [vmem:[#allocation2 + $0xb0] sm:$0xff] %v4363
      %4396 = vst [vmem:[#allocation2 + $0xb8] sm:$0xff] %v4364
      %4397 = vst [vmem:[#allocation2 + $0xc0] sm:$0xff] %v4365
      %4398 = vst [vmem:[#allocation2 + $0xc8] sm:$0xff] %v4366
      %4399 = vst [vmem:[#allocation2 + $0xd0] sm:$0xff] %v4367
      %4400 = vst [vmem:[#allocation2 + $0xd8] sm:$0xff] %v4368
      %4401 = vst [vmem:[#allocation2 + $0xe0] sm:$0xff] %v4369
      %4402 = vst [vmem:[#allocation2 + $0xe8] sm:$0xff] %v4370
      %4403 = vst [vmem:[#allocation2 + $0xf0] sm:$0xff] %v4371
      %4404 = vst [vmem:[#allocation2 + $0xf8] sm:$0xff] %v4372
      %v4405 = vld [vmem:[%s230 + $0x20] sm:$0xe]
      %v4406 = vld [vmem:[%s230 + $0x24] sm:$0xf]
      %v4407 = vld [vmem:[%s230 + $0x28] sm:$0xf]
      %v4408 = vld [vmem:[%s230 + $0x2c] sm:$0xf]
      %v4409 = vld [vmem:[%s230 + $0x30] sm:$0xf]
      %v4410 = vld [vmem:[%s230 + $0x34] sm:$0xf]
      %v4411 = vld [vmem:[%s230 + $0x38] sm:$0xf]
      %v4412 = vld [vmem:[%s230 + $0x3c] sm:$0xf]
      %v4413 = vld [vmem:[%s230 + $0x40] sm:$0xf]
      %v4414 = vld [vmem:[%s230 + $0x44] sm:$0xf]
      %v4415 = vld [vmem:[%s230 + $0x48] sm:$0xf]
      %v4416 = vld [vmem:[%s230 + $0x4c] sm:$0xf]
      %v4417 = vld [vmem:[%s230 + $0x50] sm:$0xf]
      %v4418 = vld [vmem:[%s230 + $0x54] sm:$0xf]
      %v4419 = vld [vmem:[%s230 + $0x58] sm:$0xf]
      %v4420 = vld [vmem:[%s230 + $0x5c] sm:$0xf]
      %v4421 = vld [vmem:[%s230 + $0x60] sm:$0xf]
      %v4422 = vld [vmem:[%s230 + $0x64] sm:$0xf]
      %v4423 = vld [vmem:[%s230 + $0x68] sm:$0xf]
      %v4424 = vld [vmem:[%s230 + $0x6c] sm:$0xf]
      %v4425 = vld [vmem:[%s230 + $0x70] sm:$0xf]
      %v4426 = vld [vmem:[%s230 + $0x74] sm:$0xf]
      %v4427 = vld [vmem:[%s230 + $0x78] sm:$0xf]
      %v4428 = vld [vmem:[%s230 + $0x7c] sm:$0xf]
      %v4429 = vld [vmem:[%s230 + $0x80] sm:$0xf]
      %v4430 = vld [vmem:[%s230 + $0x84] sm:$0xf]
      %v4431 = vld [vmem:[%s230 + $0x88] sm:$0xf]
      %v4432 = vld [vmem:[%s230 + $0x8c] sm:$0xf]
      %v4433 = vld [vmem:[%s230 + $0x90] sm:$0xf]
      %v4434 = vld [vmem:[%s230 + $0x94] sm:$0xf]
      %v4435 = vld [vmem:[%s230 + $0x98] sm:$0xf]
      %v4436 = vld [vmem:[%s230 + $0x9c] sm:$0xf]
      %v4437 = vld [vmem:[%s230 + $0xa0] sm:$0x1]
      %s4438 = scalar_lea.vmem %s1, 14
      %v4439 = vld [vmem:[%s4438] sm:$0x3]
      %v4473 = vunpack.c.l.b16 %v4405
      %v4474 = vunpack.c.l.b16 %v4406
      %v4475 = vunpack.c.l.b16 %v4407
      %v4476 = vunpack.c.l.b16 %v4408
      %v4477 = vunpack.c.l.b16 %v4409
      %v4478 = vunpack.c.l.b16 %v4410
      %v4479 = vunpack.c.l.b16 %v4411
      %v4480 = vunpack.c.l.b16 %v4412
      %v4481 = vunpack.c.l.b16 %v4413
      %v4482 = vunpack.c.l.b16 %v4414
      %v4483 = vunpack.c.l.b16 %v4415
      %v4484 = vunpack.c.l.b16 %v4416
      %v4485 = vunpack.c.l.b16 %v4417
      %v4486 = vunpack.c.l.b16 %v4418
      %v4487 = vunpack.c.l.b16 %v4419
      %v4488 = vunpack.c.l.b16 %v4420
      %v4489 = vunpack.c.l.b16 %v4421
      %v4490 = vunpack.c.l.b16 %v4422
      %v4491 = vunpack.c.l.b16 %v4423
      %v4492 = vunpack.c.l.b16 %v4424
      %v4493 = vunpack.c.l.b16 %v4425
      %v4494 = vunpack.c.l.b16 %v4426
      %v4495 = vunpack.c.l.b16 %v4427
      %v4496 = vunpack.c.l.b16 %v4428
      %v4497 = vunpack.c.l.b16 %v4429
      %v4498 = vunpack.c.l.b16 %v4430
      %v4499 = vunpack.c.l.b16 %v4431
      %v4500 = vunpack.c.l.b16 %v4432
      %v4501 = vunpack.c.l.b16 %v4433
      %v4502 = vunpack.c.l.b16 %v4434
      %v4503 = vunpack.c.l.b16 %v4435
      %v4504 = vunpack.c.l.b16 %v4436
      %v4505 = vunpack.c.l.b16 %v4437
      %v4506 = vpack.c.b16 %v4474, %v4473
      %v4507 = vpack.c.b16 %v4476, %v4475
      %v4508 = vpack.c.b16 %v4478, %v4477
      %v4509 = vpack.c.b16 %v4480, %v4479
      %v4510 = vpack.c.b16 %v4482, %v4481
      %v4511 = vpack.c.b16 %v4484, %v4483
      %v4512 = vpack.c.b16 %v4486, %v4485
      %v4513 = vpack.c.b16 %v4488, %v4487
      %v4514 = vpack.c.b16 %v4490, %v4489
      %v4515 = vpack.c.b16 %v4492, %v4491
      %v4516 = vpack.c.b16 %v4494, %v4493
      %v4517 = vpack.c.b16 %v4496, %v4495
      %v4518 = vpack.c.b16 %v4498, %v4497
      %v4519 = vpack.c.b16 %v4500, %v4499
      %v4520 = vpack.c.b16 %v4502, %v4501
      %v4521 = vpack.c.b16 %v4504, %v4503
      %v4522 = vpack.c.b16 %v4505, %v4505
      %v4523 = vrot.slane %v4506, 1
      %v4524 = vrot.slane %v4507, 1
      %v4525 = vsel %vm944, %v4523, %v4524
      %v4526 = vrot.slane %v4508, 1
      %v4527 = vsel %vm944, %v4524, %v4526
      %v4528 = vrot.slane %v4509, 1
      %v4529 = vsel %vm944, %v4526, %v4528
      %v4530 = vrot.slane %v4510, 1
      %v4531 = vsel %vm944, %v4528, %v4530
      %v4532 = vrot.slane %v4511, 1
      %v4533 = vsel %vm944, %v4530, %v4532
      %v4534 = vrot.slane %v4512, 1
      %v4535 = vsel %vm944, %v4532, %v4534
      %v4536 = vrot.slane %v4513, 1
      %v4537 = vsel %vm944, %v4534, %v4536
      %v4538 = vrot.slane %v4514, 1
      %v4539 = vsel %vm944, %v4536, %v4538
      %v4540 = vrot.slane %v4515, 1
      %v4541 = vsel %vm944, %v4538, %v4540
      %v4542 = vrot.slane %v4516, 1
      %v4543 = vsel %vm944, %v4540, %v4542
      %v4544 = vrot.slane %v4517, 1
      %v4545 = vsel %vm944, %v4542, %v4544
      %v4546 = vrot.slane %v4518, 1
      %v4547 = vsel %vm944, %v4544, %v4546
      %v4548 = vrot.slane %v4519, 1
      %v4549 = vsel %vm944, %v4546, %v4548
      %v4550 = vrot.slane %v4520, 1
      %v4551 = vsel %vm944, %v4548, %v4550
      %v4552 = vrot.slane %v4521, 1
      %v4553 = vsel %vm944, %v4550, %v4552
      %v4554 = vrot.slane %v4522, 1
      %v4555 = vsel %vm944, %v4552, %v4554
      %v4557 = vsel %vm356, %v4525, 0
      %v4560 = vsel %vm356, %v4527, 0
      %v4563 = vsel %vm356, %v4529, 0
      %v4566 = vsel %vm356, %v4531, 0
      %v4569 = vsel %vm356, %v4533, 0
      %v4572 = vsel %vm356, %v4535, 0
      %v4575 = vsel %vm356, %v4537, 0
      %v4578 = vsel %vm356, %v4539, 0
      %v4581 = vsel %vm356, %v4541, 0
      %v4584 = vsel %vm356, %v4543, 0
      %v4587 = vsel %vm356, %v4545, 0
      %v4590 = vsel %vm356, %v4547, 0
      %v4593 = vsel %vm356, %v4549, 0
      %v4596 = vsel %vm356, %v4551, 0
      %v4599 = vsel %vm356, %v4553, 0
      %v4602 = vsel %vm356, %v4555, 0
      %v4605 = vsel %vm405, %v4439, 0
      %4607 = vmatprep.subr.bf16.mxu0 0
      %4608 = vmatpush1.bf16.msra.mxu0 %v4605
      %4609 = vmatprep.subr.bf16.mxu0 0
      %4610 = vmatpush1.bf16.msra.mxu0 0
      %4611 = vmatprep.subr.bf16.mxu0 0
      %4612 = vmatpush1.bf16.msra.mxu0 0
      %4613 = vmatprep.subr.bf16.mxu0 0
      %4614 = vmatpush1.bf16.msra.mxu0 0
      %4615 = vmatprep.subr.bf16.mxu0 0
      %4616 = vmatpush1.bf16.msra.mxu0 0
      %4617 = vmatprep.subr.bf16.mxu0 0
      %4618 = vmatpush1.bf16.msra.mxu0 0
      %4619 = vmatprep.subr.bf16.mxu0 0
      %4620 = vmatpush1.bf16.msra.mxu0 0
      %4621 = vmatprep.subr.bf16.mxu0 0
      %4622 = vmatpush1.bf16.msra.mxu0 0
      %4623 = vmatprep.subr.bf16.mxu0 0
      %4624 = vmatpush1.bf16.msra.mxu0 0
      %4625 = vmatprep.subr.bf16.mxu0 0
      %4626 = vmatpush1.bf16.msra.mxu0 0
      %4627 = vmatprep.subr.bf16.mxu0 0
      %4628 = vmatpush1.bf16.msra.mxu0 0
      %4629 = vmatprep.subr.bf16.mxu0 0
      %4630 = vmatpush1.bf16.msra.mxu0 0
      %4631 = vmatprep.subr.bf16.mxu0 0
      %4632 = vmatpush1.bf16.msra.mxu0 0
      %4633 = vmatprep.subr.bf16.mxu0 0
      %4634 = vmatpush1.bf16.msra.mxu0 0
      %4635 = vmatprep.subr.bf16.mxu0 0
      %4636 = vmatpush1.bf16.msra.mxu0 0
      %4637 = vmatprep.subr.bf16.mxu0 0
      %4638 = vmatpush1.bf16.msra.mxu0 0
      %4639 = vmatprep.mubr.bf16.mxu0 0
      %4640 = vmatmul.mubr.bf16.gmra.mrb[0].mxu0 %v4557
      %v4641 = vpop.f32.mrb[0].mxu0
      %v4642 = vadd.f32 0.0, %v4641
      %v4643 = vpop.f32.mrb[0].mxu0
      %v4644 = vpop.f32.mrb[0].mxu0
      %v4645 = vadd.f32 0.0, %v4644
      %v4646 = vpop.f32.mrb[0].mxu0
      %4647 = vmatprep.mubr.bf16.mxu0 0
      %4648 = vmatmul.mubr.bf16.gmra.mrb[0].mxu0 %v4560
      %v4649 = vpop.f32.mrb[0].mxu0
      %v4650 = vadd.f32 0.0, %v4649
      %v4651 = vpop.f32.mrb[0].mxu0
      %v4652 = vpop.f32.mrb[0].mxu0
      %v4653 = vadd.f32 0.0, %v4652
      %v4654 = vpop.f32.mrb[0].mxu0
      %4655 = vmatprep.mubr.bf16.mxu0 0
      %4656 = vmatmul.mubr.bf16.gmra.mrb[0].mxu0 %v4563
      %v4657 = vpop.f32.mrb[0].mxu0
      %v4658 = vadd.f32 0.0, %v4657
      %v4659 = vpop.f32.mrb[0].mxu0
      %v4660 = vpop.f32.mrb[0].mxu0
      %v4661 = vadd.f32 0.0, %v4660
      %v4662 = vpop.f32.mrb[0].mxu0
      %4663 = vmatprep.mubr.bf16.mxu0 0
      %4664 = vmatmul.mubr.bf16.gmra.mrb[0].mxu0 %v4566
      %v4665 = vpop.f32.mrb[0].mxu0
      %v4666 = vadd.f32 0.0, %v4665
      %v4667 = vpop.f32.mrb[0].mxu0
      %v4668 = vpop.f32.mrb[0].mxu0
      %v4669 = vadd.f32 0.0, %v4668
      %v4670 = vpop.f32.mrb[0].mxu0
      %4671 = vmatprep.mubr.bf16.mxu0 0
      %4672 = vmatmul.mubr.bf16.gmra.mrb[0].mxu0 %v4569
      %v4673 = vpop.f32.mrb[0].mxu0
      %v4674 = vadd.f32 0.0, %v4673
      %v4675 = vpop.f32.mrb[0].mxu0
      %v4676 = vpop.f32.mrb[0].mxu0
      %v4677 = vadd.f32 0.0, %v4676
      %v4678 = vpop.f32.mrb[0].mxu0
      %4679 = vmatprep.mubr.bf16.mxu0 0
      %4680 = vmatmul.mubr.bf16.gmra.mrb[0].mxu0 %v4572
      %v4681 = vpop.f32.mrb[0].mxu0
      %v4682 = vadd.f32 0.0, %v4681
      %v4683 = vpop.f32.mrb[0].mxu0
      %v4684 = vpop.f32.mrb[0].mxu0
      %v4685 = vadd.f32 0.0, %v4684
      %v4686 = vpop.f32.mrb[0].mxu0
      %4687 = vmatprep.mubr.bf16.mxu0 0
      %4688 = vmatmul.mubr.bf16.gmra.mrb[0].mxu0 %v4575
      %v4689 = vpop.f32.mrb[0].mxu0
      %v4690 = vadd.f32 0.0, %v4689
      %v4691 = vpop.f32.mrb[0].mxu0
      %v4692 = vpop.f32.mrb[0].mxu0
      %v4693 = vadd.f32 0.0, %v4692
      %v4694 = vpop.f32.mrb[0].mxu0
      %4695 = vmatprep.mubr.bf16.mxu0 0
      %4696 = vmatmul.mubr.bf16.gmra.mrb[0].mxu0 %v4578
      %v4697 = vpop.f32.mrb[0].mxu0
      %v4698 = vadd.f32 0.0, %v4697
      %v4699 = vpop.f32.mrb[0].mxu0
      %v4700 = vpop.f32.mrb[0].mxu0
      %v4701 = vadd.f32 0.0, %v4700
      %v4702 = vpop.f32.mrb[0].mxu0
      %4703 = vmatprep.mubr.bf16.mxu0 0
      %4704 = vmatmul.mubr.bf16.gmra.mrb[0].mxu0 %v4581
      %v4705 = vpop.f32.mrb[0].mxu0
      %v4706 = vadd.f32 0.0, %v4705
      %v4707 = vpop.f32.mrb[0].mxu0
      %v4708 = vpop.f32.mrb[0].mxu0
      %v4709 = vadd.f32 0.0, %v4708
      %v4710 = vpop.f32.mrb[0].mxu0
      %4711 = vmatprep.mubr.bf16.mxu0 0
      %4712 = vmatmul.mubr.bf16.gmra.mrb[0].mxu0 %v4584
      %v4713 = vpop.f32.mrb[0].mxu0
      %v4714 = vadd.f32 0.0, %v4713
      %v4715 = vpop.f32.mrb[0].mxu0
      %v4716 = vpop.f32.mrb[0].mxu0
      %v4717 = vadd.f32 0.0, %v4716
      %v4718 = vpop.f32.mrb[0].mxu0
      %4719 = vmatprep.mubr.bf16.mxu0 0
      %4720 = vmatmul.mubr.bf16.gmra.mrb[0].mxu0 %v4587
      %v4721 = vpop.f32.mrb[0].mxu0
      %v4722 = vadd.f32 0.0, %v4721
      %v4723 = vpop.f32.mrb[0].mxu0
      %v4724 = vpop.f32.mrb[0].mxu0
      %v4725 = vadd.f32 0.0, %v4724
      %v4726 = vpop.f32.mrb[0].mxu0
      %4727 = vmatprep.mubr.bf16.mxu0 0
      %4728 = vmatmul.mubr.bf16.gmra.mrb[0].mxu0 %v4590
      %v4729 = vpop.f32.mrb[0].mxu0
      %v4730 = vadd.f32 0.0, %v4729
      %v4731 = vpop.f32.mrb[0].mxu0
      %v4732 = vpop.f32.mrb[0].mxu0
      %v4733 = vadd.f32 0.0, %v4732
      %v4734 = vpop.f32.mrb[0].mxu0
      %4735 = vmatprep.mubr.bf16.mxu0 0
      %4736 = vmatmul.mubr.bf16.gmra.mrb[0].mxu0 %v4593
      %v4737 = vpop.f32.mrb[0].mxu0
      %v4738 = vadd.f32 0.0, %v4737
      %v4739 = vpop.f32.mrb[0].mxu0
      %v4740 = vpop.f32.mrb[0].mxu0
      %v4741 = vadd.f32 0.0, %v4740
      %v4742 = vpop.f32.mrb[0].mxu0
      %4743 = vmatprep.mubr.bf16.mxu0 0
      %4744 = vmatmul.mubr.bf16.gmra.mrb[0].mxu0 %v4596
      %v4745 = vpop.f32.mrb[0].mxu0
      %v4746 = vadd.f32 0.0, %v4745
      %v4747 = vpop.f32.mrb[0].mxu0
      %v4748 = vpop.f32.mrb[0].mxu0
      %v4749 = vadd.f32 0.0, %v4748
      %v4750 = vpop.f32.mrb[0].mxu0
      %4751 = vmatprep.mubr.bf16.mxu0 0
      %4752 = vmatmul.mubr.bf16.gmra.mrb[0].mxu0 %v4599
      %v4753 = vpop.f32.mrb[0].mxu0
      %v4754 = vadd.f32 0.0, %v4753
      %v4755 = vpop.f32.mrb[0].mxu0
      %v4756 = vpop.f32.mrb[0].mxu0
      %v4757 = vadd.f32 0.0, %v4756
      %v4758 = vpop.f32.mrb[0].mxu0
      %4759 = vmatprep.mubr.bf16.mxu0 0
      %4760 = vmatmul.mubr.bf16.gmra.mrb[0].mxu0 %v4602
      %v4761 = vpop.f32.mrb[0].mxu0
      %v4762 = vadd.f32 0.0, %v4761
      %v4763 = vpop.f32.mrb[0].mxu0
      %v4764 = vpop.f32.mrb[0].mxu0
      %v4765 = vadd.f32 0.0, %v4764
      %v4766 = vpop.f32.mrb[0].mxu0
      %4767 = vdwg.mxu0
      %v4768 = vld [vmem:[#allocation2] sm:$0xff]
      %v4769 = vld [vmem:[#allocation2 + $0x8] sm:$0xff]
      %v4770 = vld [vmem:[#allocation2 + $0x10] sm:$0xff]
      %v4771 = vld [vmem:[#allocation2 + $0x18] sm:$0xff]
      %v4772 = vld [vmem:[#allocation2 + $0x20] sm:$0xff]
      %v4773 = vld [vmem:[#allocation2 + $0x28] sm:$0xff]
      %v4774 = vld [vmem:[#allocation2 + $0x30] sm:$0xff]
      %v4775 = vld [vmem:[#allocation2 + $0x38] sm:$0xff]
      %v4776 = vld [vmem:[#allocation2 + $0x40] sm:$0xff]
      %v4777 = vld [vmem:[#allocation2 + $0x48] sm:$0xff]
      %v4778 = vld [vmem:[#allocation2 + $0x50] sm:$0xff]
      %v4779 = vld [vmem:[#allocation2 + $0x58] sm:$0xff]
      %v4780 = vld [vmem:[#allocation2 + $0x60] sm:$0xff]
      %v4781 = vld [vmem:[#allocation2 + $0x68] sm:$0xff]
      %v4782 = vld [vmem:[#allocation2 + $0x70] sm:$0xff]
      %v4783 = vld [vmem:[#allocation2 + $0x78] sm:$0xff]
      %v4784 = vld [vmem:[#allocation2 + $0x80] sm:$0xff]
      %v4785 = vld [vmem:[#allocation2 + $0x88] sm:$0xff]
      %v4786 = vld [vmem:[#allocation2 + $0x90] sm:$0xff]
      %v4787 = vld [vmem:[#allocation2 + $0x98] sm:$0xff]
      %v4788 = vld [vmem:[#allocation2 + $0xa0] sm:$0xff]
      %v4789 = vld [vmem:[#allocation2 + $0xa8] sm:$0xff]
      %v4790 = vld [vmem:[#allocation2 + $0xb0] sm:$0xff]
      %v4791 = vld [vmem:[#allocation2 + $0xb8] sm:$0xff]
      %v4792 = vld [vmem:[#allocation2 + $0xc0] sm:$0xff]
      %v4793 = vld [vmem:[#allocation2 + $0xc8] sm:$0xff]
      %v4794 = vld [vmem:[#allocation2 + $0xd0] sm:$0xff]
      %v4795 = vld [vmem:[#allocation2 + $0xd8] sm:$0xff]
      %v4796 = vld [vmem:[#allocation2 + $0xe0] sm:$0xff]
      %v4797 = vld [vmem:[#allocation2 + $0xe8] sm:$0xff]
      %v4798 = vld [vmem:[#allocation2 + $0xf0] sm:$0xff]
      %v4799 = vld [vmem:[#allocation2 + $0xf8] sm:$0xff]
      %v4800 = vadd.f32 %v4768, %v4642
      %v4801 = vadd.f32 %v4769, %v4645
      %v4802 = vadd.f32 %v4770, %v4650
      %v4803 = vadd.f32 %v4771, %v4653
      %v4804 = vadd.f32 %v4772, %v4658
      %v4805 = vadd.f32 %v4773, %v4661
      %v4806 = vadd.f32 %v4774, %v4666
      %v4807 = vadd.f32 %v4775, %v4669
      %v4808 = vadd.f32 %v4776, %v4674
      %v4809 = vadd.f32 %v4777, %v4677
      %v4810 = vadd.f32 %v4778, %v4682
      %v4811 = vadd.f32 %v4779, %v4685
      %v4812 = vadd.f32 %v4780, %v4690
      %v4813 = vadd.f32 %v4781, %v4693
      %v4814 = vadd.f32 %v4782, %v4698
      %v4815 = vadd.f32 %v4783, %v4701
      %v4816 = vadd.f32 %v4784, %v4706
      %v4817 = vadd.f32 %v4785, %v4709
      %v4818 = vadd.f32 %v4786, %v4714
      %v4819 = vadd.f32 %v4787, %v4717
      %v4820 = vadd.f32 %v4788, %v4722
      %v4821 = vadd.f32 %v4789, %v4725
      %v4822 = vadd.f32 %v4790, %v4730
      %v4823 = vadd.f32 %v4791, %v4733
      %v4824 = vadd.f32 %v4792, %v4738
      %v4825 = vadd.f32 %v4793, %v4741
      %v4826 = vadd.f32 %v4794, %v4746
      %v4827 = vadd.f32 %v4795, %v4749
      %v4828 = vadd.f32 %v4796, %v4754
      %v4829 = vadd.f32 %v4797, %v4757
      %v4830 = vadd.f32 %v4798, %v4762
      %v4831 = vadd.f32 %v4799, %v4765
      %4832 = vst [vmem:[#allocation2] sm:$0xff] %v4800
      %4833 = vst [vmem:[#allocation2 + $0x8] sm:$0xff] %v4801
      %4834 = vst [vmem:[#allocation2 + $0x10] sm:$0xff] %v4802
      %4835 = vst [vmem:[#allocation2 + $0x18] sm:$0xff] %v4803
      %4836 = vst [vmem:[#allocation2 + $0x20] sm:$0xff] %v4804
      %4837 = vst [vmem:[#allocation2 + $0x28] sm:$0xff] %v4805
      %4838 = vst [vmem:[#allocation2 + $0x30] sm:$0xff] %v4806
      %4839 = vst [vmem:[#allocation2 + $0x38] sm:$0xff] %v4807
      %4840 = vst [vmem:[#allocation2 + $0x40] sm:$0xff] %v4808
      %4841 = vst [vmem:[#allocation2 + $0x48] sm:$0xff] %v4809
      %4842 = vst [vmem:[#allocation2 + $0x50] sm:$0xff] %v4810
      %4843 = vst [vmem:[#allocation2 + $0x58] sm:$0xff] %v4811
      %4844 = vst [vmem:[#allocation2 + $0x60] sm:$0xff] %v4812
      %4845 = vst [vmem:[#allocation2 + $0x68] sm:$0xff] %v4813
      %4846 = vst [vmem:[#allocation2 + $0x70] sm:$0xff] %v4814
      %4847 = vst [vmem:[#allocation2 + $0x78] sm:$0xff] %v4815
      %4848 = vst [vmem:[#allocation2 + $0x80] sm:$0xff] %v4816
      %4849 = vst [vmem:[#allocation2 + $0x88] sm:$0xff] %v4817
      %4850 = vst [vmem:[#allocation2 + $0x90] sm:$0xff] %v4818
      %4851 = vst [vmem:[#allocation2 + $0x98] sm:$0xff] %v4819
      %4852 = vst [vmem:[#allocation2 + $0xa0] sm:$0xff] %v4820
      %4853 = vst [vmem:[#allocation2 + $0xa8] sm:$0xff] %v4821
      %4854 = vst [vmem:[#allocation2 + $0xb0] sm:$0xff] %v4822
      %4855 = vst [vmem:[#allocation2 + $0xb8] sm:$0xff] %v4823
      %4856 = vst [vmem:[#allocation2 + $0xc0] sm:$0xff] %v4824
      %4857 = vst [vmem:[#allocation2 + $0xc8] sm:$0xff] %v4825
      %4858 = vst [vmem:[#allocation2 + $0xd0] sm:$0xff] %v4826
      %4859 = vst [vmem:[#allocation2 + $0xd8] sm:$0xff] %v4827
      %4860 = vst [vmem:[#allocation2 + $0xe0] sm:$0xff] %v4828
      %4861 = vst [vmem:[#allocation2 + $0xe8] sm:$0xff] %v4829
      %4862 = vst [vmem:[#allocation2 + $0xf0] sm:$0xff] %v4830
      %4863 = vst [vmem:[#allocation2 + $0xf8] sm:$0xff] %v4831
      %v4864 = vld [vmem:[%s230 + $0x20] sm:$0xc]
      %v4865 = vld [vmem:[%s230 + $0x24] sm:$0xf]
      %v4866 = vld [vmem:[%s230 + $0x28] sm:$0xf]
      %v4867 = vld [vmem:[%s230 + $0x2c] sm:$0xf]
      %v4868 = vld [vmem:[%s230 + $0x30] sm:$0xf]
      %v4869 = vld [vmem:[%s230 + $0x34] sm:$0xf]
      %v4870 = vld [vmem:[%s230 + $0x38] sm:$0xf]
      %v4871 = vld [vmem:[%s230 + $0x3c] sm:$0xf]
      %v4872 = vld [vmem:[%s230 + $0x40] sm:$0xf]
      %v4873 = vld [vmem:[%s230 + $0x44] sm:$0xf]
      %v4874 = vld [vmem:[%s230 + $0x48] sm:$0xf]
      %v4875 = vld [vmem:[%s230 + $0x4c] sm:$0xf]
      %v4876 = vld [vmem:[%s230 + $0x50] sm:$0xf]
      %v4877 = vld [vmem:[%s230 + $0x54] sm:$0xf]
      %v4878 = vld [vmem:[%s230 + $0x58] sm:$0xf]
      %v4879 = vld [vmem:[%s230 + $0x5c] sm:$0xf]
      %v4880 = vld [vmem:[%s230 + $0x60] sm:$0xf]
      %v4881 = vld [vmem:[%s230 + $0x64] sm:$0xf]
      %v4882 = vld [vmem:[%s230 + $0x68] sm:$0xf]
      %v4883 = vld [vmem:[%s230 + $0x6c] sm:$0xf]
      %v4884 = vld [vmem:[%s230 + $0x70] sm:$0xf]
      %v4885 = vld [vmem:[%s230 + $0x74] sm:$0xf]
      %v4886 = vld [vmem:[%s230 + $0x78] sm:$0xf]
      %v4887 = vld [vmem:[%s230 + $0x7c] sm:$0xf]
      %v4888 = vld [vmem:[%s230 + $0x80] sm:$0xf]
      %v4889 = vld [vmem:[%s230 + $0x84] sm:$0xf]
      %v4890 = vld [vmem:[%s230 + $0x88] sm:$0xf]
      %v4891 = vld [vmem:[%s230 + $0x8c] sm:$0xf]
      %v4892 = vld [vmem:[%s230 + $0x90] sm:$0xf]
      %v4893 = vld [vmem:[%s230 + $0x94] sm:$0xf]
      %v4894 = vld [vmem:[%s230 + $0x98] sm:$0xf]
      %v4895 = vld [vmem:[%s230 + $0x9c] sm:$0xf]
      %v4896 = vld [vmem:[%s230 + $0xa0] sm:$0x3]
      %s4897 = scalar_lea.vmem %s1, 16
      %v4898 = vld [vmem:[%s4897] sm:$0x3]
      %v4932 = vunpack.c.l.b16 %v4864
      %v4933 = vunpack.c.l.b16 %v4865
      %v4934 = vunpack.c.l.b16 %v4866
      %v4935 = vunpack.c.l.b16 %v4867
      %v4936 = vunpack.c.l.b16 %v4868
      %v4937 = vunpack.c.l.b16 %v4869
      %v4938 = vunpack.c.l.b16 %v4870
      %v4939 = vunpack.c.l.b16 %v4871
      %v4940 = vunpack.c.l.b16 %v4872
      %v4941 = vunpack.c.l.b16 %v4873
      %v4942 = vunpack.c.l.b16 %v4874
      %v4943 = vunpack.c.l.b16 %v4875
      %v4944 = vunpack.c.l.b16 %v4876
      %v4945 = vunpack.c.l.b16 %v4877
      %v4946 = vunpack.c.l.b16 %v4878
      %v4947 = vunpack.c.l.b16 %v4879
      %v4948 = vunpack.c.l.b16 %v4880
      %v4949 = vunpack.c.l.b16 %v4881
      %v4950 = vunpack.c.l.b16 %v4882
      %v4951 = vunpack.c.l.b16 %v4883
      %v4952 = vunpack.c.l.b16 %v4884
      %v4953 = vunpack.c.l.b16 %v4885
      %v4954 = vunpack.c.l.b16 %v4886
      %v4955 = vunpack.c.l.b16 %v4887
      %v4956 = vunpack.c.l.b16 %v4888
      %v4957 = vunpack.c.l.b16 %v4889
      %v4958 = vunpack.c.l.b16 %v4890
      %v4959 = vunpack.c.l.b16 %v4891
      %v4960 = vunpack.c.l.b16 %v4892
      %v4961 = vunpack.c.l.b16 %v4893
      %v4962 = vunpack.c.l.b16 %v4894
      %v4963 = vunpack.c.l.b16 %v4895
      %v4964 = vunpack.c.l.b16 %v4896
      %v4965 = vpack.c.b16 %v4933, %v4932
      %v4966 = vpack.c.b16 %v4935, %v4934
      %v4967 = vpack.c.b16 %v4937, %v4936
      %v4968 = vpack.c.b16 %v4939, %v4938
      %v4969 = vpack.c.b16 %v4941, %v4940
      %v4970 = vpack.c.b16 %v4943, %v4942
      %v4971 = vpack.c.b16 %v4945, %v4944
      %v4972 = vpack.c.b16 %v4947, %v4946
      %v4973 = vpack.c.b16 %v4949, %v4948
      %v4974 = vpack.c.b16 %v4951, %v4950
      %v4975 = vpack.c.b16 %v4953, %v4952
      %v4976 = vpack.c.b16 %v4955, %v4954
      %v4977 = vpack.c.b16 %v4957, %v4956
      %v4978 = vpack.c.b16 %v4959, %v4958
      %v4979 = vpack.c.b16 %v4961, %v4960
      %v4980 = vpack.c.b16 %v4963, %v4962
      %v4981 = vpack.c.b16 %v4964, %v4964
      %v4982 = vrot.slane %v4965, 2
      %v4983 = vrot.slane %v4966, 2
      %v4984 = vsel %vm1404, %v4982, %v4983
      %v4985 = vrot.slane %v4967, 2
      %v4986 = vsel %vm1404, %v4983, %v4985
      %v4987 = vrot.slane %v4968, 2
      %v4988 = vsel %vm1404, %v4985, %v4987
      %v4989 = vrot.slane %v4969, 2
      %v4990 = vsel %vm1404, %v4987, %v4989
      %v4991 = vrot.slane %v4970, 2
      %v4992 = vsel %vm1404, %v4989, %v4991
      %v4993 = vrot.slane %v4971, 2
      %v4994 = vsel %vm1404, %v4991, %v4993
      %v4995 = vrot.slane %v4972, 2
      %v4996 = vsel %vm1404, %v4993, %v4995
      %v4997 = vrot.slane %v4973, 2
      %v4998 = vsel %vm1404, %v4995, %v4997
      %v4999 = vrot.slane %v4974, 2
      %v5000 = vsel %vm1404, %v4997, %v4999
      %v5001 = vrot.slane %v4975, 2
      %v5002 = vsel %vm1404, %v4999, %v5001
      %v5003 = vrot.slane %v4976, 2
      %v5004 = vsel %vm1404, %v5001, %v5003
      %v5005 = vrot.slane %v4977, 2
      %v5006 = vsel %vm1404, %v5003, %v5005
      %v5007 = vrot.slane %v4978, 2
      %v5008 = vsel %vm1404, %v5005, %v5007
      %v5009 = vrot.slane %v4979, 2
      %v5010 = vsel %vm1404, %v5007, %v5009
      %v5011 = vrot.slane %v4980, 2
      %v5012 = vsel %vm1404, %v5009, %v5011
      %v5013 = vrot.slane %v4981, 2
      %v5014 = vsel %vm1404, %v5011, %v5013
      %v5016 = vsel %vm356, %v4984, 0
      %v5019 = vsel %vm356, %v4986, 0
      %v5022 = vsel %vm356, %v4988, 0
      %v5025 = vsel %vm356, %v4990, 0
      %v5028 = vsel %vm356, %v4992, 0
      %v5031 = vsel %vm356, %v4994, 0
      %v5034 = vsel %vm356, %v4996, 0
      %v5037 = vsel %vm356, %v4998, 0
      %v5040 = vsel %vm356, %v5000, 0
      %v5043 = vsel %vm356, %v5002, 0
      %v5046 = vsel %vm356, %v5004, 0
      %v5049 = vsel %vm356, %v5006, 0
      %v5052 = vsel %vm356, %v5008, 0
      %v5055 = vsel %vm356, %v5010, 0
      %v5058 = vsel %vm356, %v5012, 0
      %v5061 = vsel %vm356, %v5014, 0
      %v5064 = vsel %vm405, %v4898, 0
      %5066 = vmatprep.subr.bf16.mxu0 0
      %5067 = vmatpush1.bf16.msra.mxu0 %v5064
      %5068 = vmatprep.subr.bf16.mxu0 0
      %5069 = vmatpush1.bf16.msra.mxu0 0
      %5070 = vmatprep.subr.bf16.mxu0 0
      %5071 = vmatpush1.bf16.msra.mxu0 0
      %5072 = vmatprep.subr.bf16.mxu0 0
      %5073 = vmatpush1.bf16.msra.mxu0 0
      %5074 = vmatprep.subr.bf16.mxu0 0
      %5075 = vmatpush1.bf16.msra.mxu0 0
      %5076 = vmatprep.subr.bf16.mxu0 0
      %5077 = vmatpush1.bf16.msra.mxu0 0
      %5078 = vmatprep.subr.bf16.mxu0 0
      %5079 = vmatpush1.bf16.msra.mxu0 0
      %5080 = vmatprep.subr.bf16.mxu0 0
      %5081 = vmatpush1.bf16.msra.mxu0 0
      %5082 = vmatprep.subr.bf16.mxu0 0
      %5083 = vmatpush1.bf16.msra.mxu0 0
      %5084 = vmatprep.subr.bf16.mxu0 0
      %5085 = vmatpush1.bf16.msra.mxu0 0
      %5086 = vmatprep.subr.bf16.mxu0 0
      %5087 = vmatpush1.bf16.msra.mxu0 0
      %5088 = vmatprep.subr.bf16.mxu0 0
      %5089 = vmatpush1.bf16.msra.mxu0 0
      %5090 = vmatprep.subr.bf16.mxu0 0
      %5091 = vmatpush1.bf16.msra.mxu0 0
      %5092 = vmatprep.subr.bf16.mxu0 0
      %5093 = vmatpush1.bf16.msra.mxu0 0
      %5094 = vmatprep.subr.bf16.mxu0 0
      %5095 = vmatpush1.bf16.msra.mxu0 0
      %5096 = vmatprep.subr.bf16.mxu0 0
      %5097 = vmatpush1.bf16.msra.mxu0 0
      %5098 = vmatprep.mubr.bf16.mxu0 0
      %5099 = vmatmul.mubr.bf16.gmra.mrb[0].mxu0 %v5016
      %v5100 = vpop.f32.mrb[0].mxu0
      %v5101 = vadd.f32 0.0, %v5100
      %v5102 = vpop.f32.mrb[0].mxu0
      %v5103 = vpop.f32.mrb[0].mxu0
      %v5104 = vadd.f32 0.0, %v5103
      %v5105 = vpop.f32.mrb[0].mxu0
      %5106 = vmatprep.mubr.bf16.mxu0 0
      %5107 = vmatmul.mubr.bf16.gmra.mrb[0].mxu0 %v5019
      %v5108 = vpop.f32.mrb[0].mxu0
      %v5109 = vadd.f32 0.0, %v5108
      %v5110 = vpop.f32.mrb[0].mxu0
      %v5111 = vpop.f32.mrb[0].mxu0
      %v5112 = vadd.f32 0.0, %v5111
      %v5113 = vpop.f32.mrb[0].mxu0
      %5114 = vmatprep.mubr.bf16.mxu0 0
      %5115 = vmatmul.mubr.bf16.gmra.mrb[0].mxu0 %v5022
      %v5116 = vpop.f32.mrb[0].mxu0
      %v5117 = vadd.f32 0.0, %v5116
      %v5118 = vpop.f32.mrb[0].mxu0
      %v5119 = vpop.f32.mrb[0].mxu0
      %v5120 = vadd.f32 0.0, %v5119
      %v5121 = vpop.f32.mrb[0].mxu0
      %5122 = vmatprep.mubr.bf16.mxu0 0
      %5123 = vmatmul.mubr.bf16.gmra.mrb[0].mxu0 %v5025
      %v5124 = vpop.f32.mrb[0].mxu0
      %v5125 = vadd.f32 0.0, %v5124
      %v5126 = vpop.f32.mrb[0].mxu0
      %v5127 = vpop.f32.mrb[0].mxu0
      %v5128 = vadd.f32 0.0, %v5127
      %v5129 = vpop.f32.mrb[0].mxu0
      %5130 = vmatprep.mubr.bf16.mxu0 0
      %5131 = vmatmul.mubr.bf16.gmra.mrb[0].mxu0 %v5028
      %v5132 = vpop.f32.mrb[0].mxu0
      %v5133 = vadd.f32 0.0, %v5132
      %v5134 = vpop.f32.mrb[0].mxu0
      %v5135 = vpop.f32.mrb[0].mxu0
      %v5136 = vadd.f32 0.0, %v5135
      %v5137 = vpop.f32.mrb[0].mxu0
      %5138 = vmatprep.mubr.bf16.mxu0 0
      %5139 = vmatmul.mubr.bf16.gmra.mrb[0].mxu0 %v5031
      %v5140 = vpop.f32.mrb[0].mxu0
      %v5141 = vadd.f32 0.0, %v5140
      %v5142 = vpop.f32.mrb[0].mxu0
      %v5143 = vpop.f32.mrb[0].mxu0
      %v5144 = vadd.f32 0.0, %v5143
      %v5145 = vpop.f32.mrb[0].mxu0
      %5146 = vmatprep.mubr.bf16.mxu0 0
      %5147 = vmatmul.mubr.bf16.gmra.mrb[0].mxu0 %v5034
      %v5148 = vpop.f32.mrb[0].mxu0
      %v5149 = vadd.f32 0.0, %v5148
      %v5150 = vpop.f32.mrb[0].mxu0
      %v5151 = vpop.f32.mrb[0].mxu0
      %v5152 = vadd.f32 0.0, %v5151
      %v5153 = vpop.f32.mrb[0].mxu0
      %5154 = vmatprep.mubr.bf16.mxu0 0
      %5155 = vmatmul.mubr.bf16.gmra.mrb[0].mxu0 %v5037
      %v5156 = vpop.f32.mrb[0].mxu0
      %v5157 = vadd.f32 0.0, %v5156
      %v5158 = vpop.f32.mrb[0].mxu0
      %v5159 = vpop.f32.mrb[0].mxu0
      %v5160 = vadd.f32 0.0, %v5159
      %v5161 = vpop.f32.mrb[0].mxu0
      %5162 = vmatprep.mubr.bf16.mxu0 0
      %5163 = vmatmul.mubr.bf16.gmra.mrb[0].mxu0 %v5040
      %v5164 = vpop.f32.mrb[0].mxu0
      %v5165 = vadd.f32 0.0, %v5164
      %v5166 = vpop.f32.mrb[0].mxu0
      %v5167 = vpop.f32.mrb[0].mxu0
      %v5168 = vadd.f32 0.0, %v5167
      %v5169 = vpop.f32.mrb[0].mxu0
      %5170 = vmatprep.mubr.bf16.mxu0 0
      %5171 = vmatmul.mubr.bf16.gmra.mrb[0].mxu0 %v5043
      %v5172 = vpop.f32.mrb[0].mxu0
      %v5173 = vadd.f32 0.0, %v5172
      %v5174 = vpop.f32.mrb[0].mxu0
      %v5175 = vpop.f32.mrb[0].mxu0
      %v5176 = vadd.f32 0.0, %v5175
      %v5177 = vpop.f32.mrb[0].mxu0
      %5178 = vmatprep.mubr.bf16.mxu0 0
      %5179 = vmatmul.mubr.bf16.gmra.mrb[0].mxu0 %v5046
      %v5180 = vpop.f32.mrb[0].mxu0
      %v5181 = vadd.f32 0.0, %v5180
      %v5182 = vpop.f32.mrb[0].mxu0
      %v5183 = vpop.f32.mrb[0].mxu0
      %v5184 = vadd.f32 0.0, %v5183
      %v5185 = vpop.f32.mrb[0].mxu0
      %5186 = vmatprep.mubr.bf16.mxu0 0
      %5187 = vmatmul.mubr.bf16.gmra.mrb[0].mxu0 %v5049
      %v5188 = vpop.f32.mrb[0].mxu0
      %v5189 = vadd.f32 0.0, %v5188
      %v5190 = vpop.f32.mrb[0].mxu0
      %v5191 = vpop.f32.mrb[0].mxu0
      %v5192 = vadd.f32 0.0, %v5191
      %v5193 = vpop.f32.mrb[0].mxu0
      %5194 = vmatprep.mubr.bf16.mxu0 0
      %5195 = vmatmul.mubr.bf16.gmra.mrb[0].mxu0 %v5052
      %v5196 = vpop.f32.mrb[0].mxu0
      %v5197 = vadd.f32 0.0, %v5196
      %v5198 = vpop.f32.mrb[0].mxu0
      %v5199 = vpop.f32.mrb[0].mxu0
      %v5200 = vadd.f32 0.0, %v5199
      %v5201 = vpop.f32.mrb[0].mxu0
      %5202 = vmatprep.mubr.bf16.mxu0 0
      %5203 = vmatmul.mubr.bf16.gmra.mrb[0].mxu0 %v5055
      %v5204 = vpop.f32.mrb[0].mxu0
      %v5205 = vadd.f32 0.0, %v5204
      %v5206 = vpop.f32.mrb[0].mxu0
      %v5207 = vpop.f32.mrb[0].mxu0
      %v5208 = vadd.f32 0.0, %v5207
      %v5209 = vpop.f32.mrb[0].mxu0
      %5210 = vmatprep.mubr.bf16.mxu0 0
      %5211 = vmatmul.mubr.bf16.gmra.mrb[0].mxu0 %v5058
      %v5212 = vpop.f32.mrb[0].mxu0
      %v5213 = vadd.f32 0.0, %v5212
      %v5214 = vpop.f32.mrb[0].mxu0
      %v5215 = vpop.f32.mrb[0].mxu0
      %v5216 = vadd.f32 0.0, %v5215
      %v5217 = vpop.f32.mrb[0].mxu0
      %5218 = vmatprep.mubr.bf16.mxu0 0
      %5219 = vmatmul.mubr.bf16.gmra.mrb[0].mxu0 %v5061
      %v5220 = vpop.f32.mrb[0].mxu0
      %v5221 = vadd.f32 0.0, %v5220
      %v5222 = vpop.f32.mrb[0].mxu0
      %v5223 = vpop.f32.mrb[0].mxu0
      %v5224 = vadd.f32 0.0, %v5223
      %v5225 = vpop.f32.mrb[0].mxu0
      %5226 = vdwg.mxu0
      %v5227 = vld [vmem:[%s1650] sm:$0xff]
      %v5228 = vld [vmem:[%s1650 + $0x8] sm:$0xff]
      %v5229 = vld [vmem:[%s1650 + $0x10] sm:$0xff]
      %v5230 = vld [vmem:[%s1650 + $0x18] sm:$0xff]
      %v5231 = vld [vmem:[%s1650 + $0x20] sm:$0xff]
      %v5232 = vld [vmem:[%s1650 + $0x28] sm:$0xff]
      %v5233 = vld [vmem:[%s1650 + $0x30] sm:$0xff]
      %v5234 = vld [vmem:[%s1650 + $0x38] sm:$0xff]
      %v5235 = vld [vmem:[%s1650 + $0x40] sm:$0xff]
      %v5236 = vld [vmem:[%s1650 + $0x48] sm:$0xff]
      %v5237 = vld [vmem:[%s1650 + $0x50] sm:$0xff]
      %v5238 = vld [vmem:[%s1650 + $0x58] sm:$0xff]
      %v5239 = vld [vmem:[%s1650 + $0x60] sm:$0xff]
      %v5240 = vld [vmem:[%s1650 + $0x68] sm:$0xff]
      %v5241 = vld [vmem:[%s1650 + $0x70] sm:$0xff]
      %v5242 = vld [vmem:[%s1650 + $0x78] sm:$0xff]
      %v5243 = vld [vmem:[%s1650 + $0x80] sm:$0xff]
      %v5244 = vld [vmem:[%s1650 + $0x88] sm:$0xff]
      %v5245 = vld [vmem:[%s1650 + $0x90] sm:$0xff]
      %v5246 = vld [vmem:[%s1650 + $0x98] sm:$0xff]
      %v5247 = vld [vmem:[%s1650 + $0xa0] sm:$0xff]
      %v5248 = vld [vmem:[%s1650 + $0xa8] sm:$0xff]
      %v5249 = vld [vmem:[%s1650 + $0xb0] sm:$0xff]
      %v5250 = vld [vmem:[%s1650 + $0xb8] sm:$0xff]
      %v5251 = vld [vmem:[%s1650 + $0xc0] sm:$0xff]
      %v5252 = vld [vmem:[%s1650 + $0xc8] sm:$0xff]
      %v5253 = vld [vmem:[%s1650 + $0xd0] sm:$0xff]
      %v5254 = vld [vmem:[%s1650 + $0xd8] sm:$0xff]
      %v5255 = vld [vmem:[%s1650 + $0xe0] sm:$0xff]
      %v5256 = vld [vmem:[%s1650 + $0xe8] sm:$0xff]
      %v5257 = vld [vmem:[%s1650 + $0xf0] sm:$0xff]
      %v5258 = vld [vmem:[%s1650 + $0xf8] sm:$0xff]
      %5260 = vset.pattern.permute.xlu0 0
      %5261 = vperm.xlu0 %5260, %v5227
      %v5262 = vpop.permute.xlu0 %5261
      %5265 = vset.pattern.permute.xlu0 0
      %5266 = vperm.xlu0 %5265, %v5228
      %v5267 = vpop.permute.xlu0 %5266
      %5270 = vset.pattern.permute.xlu0 0
      %5271 = vperm.xlu0 %5270, %v5229
      %v5272 = vpop.permute.xlu0 %5271
      %5275 = vset.pattern.permute.xlu0 0
      %5276 = vperm.xlu0 %5275, %v5230
      %v5277 = vpop.permute.xlu0 %5276
      %5280 = vset.pattern.permute.xlu0 0
      %5281 = vperm.xlu0 %5280, %v5231
      %v5282 = vpop.permute.xlu0 %5281
      %5285 = vset.pattern.permute.xlu0 0
      %5286 = vperm.xlu0 %5285, %v5232
      %v5287 = vpop.permute.xlu0 %5286
      %5290 = vset.pattern.permute.xlu0 0
      %5291 = vperm.xlu0 %5290, %v5233
      %v5292 = vpop.permute.xlu0 %5291
      %5295 = vset.pattern.permute.xlu0 0
      %5296 = vperm.xlu0 %5295, %v5234
      %v5297 = vpop.permute.xlu0 %5296
      %5300 = vset.pattern.permute.xlu0 0
      %5301 = vperm.xlu0 %5300, %v5235
      %v5302 = vpop.permute.xlu0 %5301
      %5305 = vset.pattern.permute.xlu0 0
      %5306 = vperm.xlu0 %5305, %v5236
      %v5307 = vpop.permute.xlu0 %5306
      %5310 = vset.pattern.permute.xlu0 0
      %5311 = vperm.xlu0 %5310, %v5237
      %v5312 = vpop.permute.xlu0 %5311
      %5315 = vset.pattern.permute.xlu0 0
      %5316 = vperm.xlu0 %5315, %v5238
      %v5317 = vpop.permute.xlu0 %5316
      %5320 = vset.pattern.permute.xlu0 0
      %5321 = vperm.xlu0 %5320, %v5239
      %v5322 = vpop.permute.xlu0 %5321
      %5325 = vset.pattern.permute.xlu0 0
      %5326 = vperm.xlu0 %5325, %v5240
      %v5327 = vpop.permute.xlu0 %5326
      %5330 = vset.pattern.permute.xlu0 0
      %5331 = vperm.xlu0 %5330, %v5241
      %v5332 = vpop.permute.xlu0 %5331
      %5335 = vset.pattern.permute.xlu0 0
      %5336 = vperm.xlu0 %5335, %v5242
      %v5337 = vpop.permute.xlu0 %5336
      %5340 = vset.pattern.permute.xlu0 0
      %5341 = vperm.xlu0 %5340, %v5243
      %v5342 = vpop.permute.xlu0 %5341
      %5345 = vset.pattern.permute.xlu0 0
      %5346 = vperm.xlu0 %5345, %v5244
      %v5347 = vpop.permute.xlu0 %5346
      %5350 = vset.pattern.permute.xlu0 0
      %5351 = vperm.xlu0 %5350, %v5245
      %v5352 = vpop.permute.xlu0 %5351
      %5355 = vset.pattern.permute.xlu0 0
      %5356 = vperm.xlu0 %5355, %v5246
      %v5357 = vpop.permute.xlu0 %5356
      %5360 = vset.pattern.permute.xlu0 0
      %5361 = vperm.xlu0 %5360, %v5247
      %v5362 = vpop.permute.xlu0 %5361
      %5365 = vset.pattern.permute.xlu0 0
      %5366 = vperm.xlu0 %5365, %v5248
      %v5367 = vpop.permute.xlu0 %5366
      %5370 = vset.pattern.permute.xlu0 0
      %5371 = vperm.xlu0 %5370, %v5249
      %v5372 = vpop.permute.xlu0 %5371
      %5375 = vset.pattern.permute.xlu0 0
      %5376 = vperm.xlu0 %5375, %v5250
      %v5377 = vpop.permute.xlu0 %5376
      %5380 = vset.pattern.permute.xlu0 0
      %5381 = vperm.xlu0 %5380, %v5251
      %v5382 = vpop.permute.xlu0 %5381
      %5385 = vset.pattern.permute.xlu0 0
      %5386 = vperm.xlu0 %5385, %v5252
      %v5387 = vpop.permute.xlu0 %5386
      %5390 = vset.pattern.permute.xlu0 0
      %5391 = vperm.xlu0 %5390, %v5253
      %v5392 = vpop.permute.xlu0 %5391
      %5395 = vset.pattern.permute.xlu0 0
      %5396 = vperm.xlu0 %5395, %v5254
      %v5397 = vpop.permute.xlu0 %5396
      %5400 = vset.pattern.permute.xlu0 0
      %5401 = vperm.xlu0 %5400, %v5255
      %v5402 = vpop.permute.xlu0 %5401
      %5405 = vset.pattern.permute.xlu0 0
      %5406 = vperm.xlu0 %5405, %v5256
      %v5407 = vpop.permute.xlu0 %5406
      %5410 = vset.pattern.permute.xlu0 0
      %5411 = vperm.xlu0 %5410, %v5257
      %v5412 = vpop.permute.xlu0 %5411
      %5415 = vset.pattern.permute.xlu0 0
      %5416 = vperm.xlu0 %5415, %v5258
      %v5417 = vpop.permute.xlu0 %5416
      %v5419 = vmul.f32 %v5101, %v5262
      %v5420 = vmul.f32 %v5104, %v5267
      %v5421 = vmul.f32 %v5109, %v5272
      %v5422 = vmul.f32 %v5112, %v5277
      %v5423 = vmul.f32 %v5117, %v5282
      %v5424 = vmul.f32 %v5120, %v5287
      %v5425 = vmul.f32 %v5125, %v5292
      %v5426 = vmul.f32 %v5128, %v5297
      %v5427 = vmul.f32 %v5133, %v5302
      %v5428 = vmul.f32 %v5136, %v5307
      %v5429 = vmul.f32 %v5141, %v5312
      %v5430 = vmul.f32 %v5144, %v5317
      %v5431 = vmul.f32 %v5149, %v5322
      %v5432 = vmul.f32 %v5152, %v5327
      %v5433 = vmul.f32 %v5157, %v5332
      %v5434 = vmul.f32 %v5160, %v5337
      %v5435 = vmul.f32 %v5165, %v5342
      %v5436 = vmul.f32 %v5168, %v5347
      %v5437 = vmul.f32 %v5173, %v5352
      %v5438 = vmul.f32 %v5176, %v5357
      %v5439 = vmul.f32 %v5181, %v5362
      %v5440 = vmul.f32 %v5184, %v5367
      %v5441 = vmul.f32 %v5189, %v5372
      %v5442 = vmul.f32 %v5192, %v5377
      %v5443 = vmul.f32 %v5197, %v5382
      %v5444 = vmul.f32 %v5200, %v5387
      %v5445 = vmul.f32 %v5205, %v5392
      %v5446 = vmul.f32 %v5208, %v5397
      %v5447 = vmul.f32 %v5213, %v5402
      %v5448 = vmul.f32 %v5216, %v5407
      %v5449 = vmul.f32 %v5221, %v5412
      %v5450 = vmul.f32 %v5224, %v5417
      %v5451 = vld [vmem:[#allocation2] sm:$0xff]
      %v5452 = vld [vmem:[#allocation2 + $0x8] sm:$0xff]
      %v5453 = vld [vmem:[#allocation2 + $0x10] sm:$0xff]
      %v5454 = vld [vmem:[#allocation2 + $0x18] sm:$0xff]
      %v5455 = vld [vmem:[#allocation2 + $0x20] sm:$0xff]
      %v5456 = vld [vmem:[#allocation2 + $0x28] sm:$0xff]
      %v5457 = vld [vmem:[#allocation2 + $0x30] sm:$0xff]
      %v5458 = vld [vmem:[#allocation2 + $0x38] sm:$0xff]
      %v5459 = vld [vmem:[#allocation2 + $0x40] sm:$0xff]
      %v5460 = vld [vmem:[#allocation2 + $0x48] sm:$0xff]
      %v5461 = vld [vmem:[#allocation2 + $0x50] sm:$0xff]
      %v5462 = vld [vmem:[#allocation2 + $0x58] sm:$0xff]
      %v5463 = vld [vmem:[#allocation2 + $0x60] sm:$0xff]
      %v5464 = vld [vmem:[#allocation2 + $0x68] sm:$0xff]
      %v5465 = vld [vmem:[#allocation2 + $0x70] sm:$0xff]
      %v5466 = vld [vmem:[#allocation2 + $0x78] sm:$0xff]
      %v5467 = vld [vmem:[#allocation2 + $0x80] sm:$0xff]
      %v5468 = vld [vmem:[#allocation2 + $0x88] sm:$0xff]
      %v5469 = vld [vmem:[#allocation2 + $0x90] sm:$0xff]
      %v5470 = vld [vmem:[#allocation2 + $0x98] sm:$0xff]
      %v5471 = vld [vmem:[#allocation2 + $0xa0] sm:$0xff]
      %v5472 = vld [vmem:[#allocation2 + $0xa8] sm:$0xff]
      %v5473 = vld [vmem:[#allocation2 + $0xb0] sm:$0xff]
      %v5474 = vld [vmem:[#allocation2 + $0xb8] sm:$0xff]
      %v5475 = vld [vmem:[#allocation2 + $0xc0] sm:$0xff]
      %v5476 = vld [vmem:[#allocation2 + $0xc8] sm:$0xff]
      %v5477 = vld [vmem:[#allocation2 + $0xd0] sm:$0xff]
      %v5478 = vld [vmem:[#allocation2 + $0xd8] sm:$0xff]
      %v5479 = vld [vmem:[#allocation2 + $0xe0] sm:$0xff]
      %v5480 = vld [vmem:[#allocation2 + $0xe8] sm:$0xff]
      %v5481 = vld [vmem:[#allocation2 + $0xf0] sm:$0xff]
      %v5482 = vld [vmem:[#allocation2 + $0xf8] sm:$0xff]
      %v5483 = vadd.f32 %v5451, %v5419
      %v5484 = vadd.f32 %v5452, %v5420
      %v5485 = vadd.f32 %v5453, %v5421
      %v5486 = vadd.f32 %v5454, %v5422
      %v5487 = vadd.f32 %v5455, %v5423
      %v5488 = vadd.f32 %v5456, %v5424
      %v5489 = vadd.f32 %v5457, %v5425
      %v5490 = vadd.f32 %v5458, %v5426
      %v5491 = vadd.f32 %v5459, %v5427
      %v5492 = vadd.f32 %v5460, %v5428
      %v5493 = vadd.f32 %v5461, %v5429
      %v5494 = vadd.f32 %v5462, %v5430
      %v5495 = vadd.f32 %v5463, %v5431
      %v5496 = vadd.f32 %v5464, %v5432
      %v5497 = vadd.f32 %v5465, %v5433
      %v5498 = vadd.f32 %v5466, %v5434
      %v5499 = vadd.f32 %v5467, %v5435
      %v5500 = vadd.f32 %v5468, %v5436
      %v5501 = vadd.f32 %v5469, %v5437
      %v5502 = vadd.f32 %v5470, %v5438
      %v5503 = vadd.f32 %v5471, %v5439
      %v5504 = vadd.f32 %v5472, %v5440
      %v5505 = vadd.f32 %v5473, %v5441
      %v5506 = vadd.f32 %v5474, %v5442
      %v5507 = vadd.f32 %v5475, %v5443
      %v5508 = vadd.f32 %v5476, %v5444
      %v5509 = vadd.f32 %v5477, %v5445
      %v5510 = vadd.f32 %v5478, %v5446
      %v5511 = vadd.f32 %v5479, %v5447
      %v5512 = vadd.f32 %v5480, %v5448
      %v5513 = vadd.f32 %v5481, %v5449
      %v5514 = vadd.f32 %v5482, %v5450
      %5515 = vst [vmem:[#allocation2] sm:$0xff] %v5483
      %5516 = vst [vmem:[#allocation2 + $0x8] sm:$0xff] %v5484
      %5517 = vst [vmem:[#allocation2 + $0x10] sm:$0xff] %v5485
      %5518 = vst [vmem:[#allocation2 + $0x18] sm:$0xff] %v5486
      %5519 = vst [vmem:[#allocation2 + $0x20] sm:$0xff] %v5487
      %5520 = vst [vmem:[#allocation2 + $0x28] sm:$0xff] %v5488
      %5521 = vst [vmem:[#allocation2 + $0x30] sm:$0xff] %v5489
      %5522 = vst [vmem:[#allocation2 + $0x38] sm:$0xff] %v5490
      %5523 = vst [vmem:[#allocation2 + $0x40] sm:$0xff] %v5491
      %5524 = vst [vmem:[#allocation2 + $0x48] sm:$0xff] %v5492
      %5525 = vst [vmem:[#allocation2 + $0x50] sm:$0xff] %v5493
      %5526 = vst [vmem:[#allocation2 + $0x58] sm:$0xff] %v5494
      %5527 = vst [vmem:[#allocation2 + $0x60] sm:$0xff] %v5495
      %5528 = vst [vmem:[#allocation2 + $0x68] sm:$0xff] %v5496
      %5529 = vst [vmem:[#allocation2 + $0x70] sm:$0xff] %v5497
      %5530 = vst [vmem:[#allocation2 + $0x78] sm:$0xff] %v5498
      %5531 = vst [vmem:[#allocation2 + $0x80] sm:$0xff] %v5499
      %5532 = vst [vmem:[#allocation2 + $0x88] sm:$0xff] %v5500
      %5533 = vst [vmem:[#allocation2 + $0x90] sm:$0xff] %v5501
      %5534 = vst [vmem:[#allocation2 + $0x98] sm:$0xff] %v5502
      %5535 = vst [vmem:[#allocation2 + $0xa0] sm:$0xff] %v5503
      %5536 = vst [vmem:[#allocation2 + $0xa8] sm:$0xff] %v5504
      %5537 = vst [vmem:[#allocation2 + $0xb0] sm:$0xff] %v5505
      %5538 = vst [vmem:[#allocation2 + $0xb8] sm:$0xff] %v5506
      %5539 = vst [vmem:[#allocation2 + $0xc0] sm:$0xff] %v5507
      %5540 = vst [vmem:[#allocation2 + $0xc8] sm:$0xff] %v5508
      %5541 = vst [vmem:[#allocation2 + $0xd0] sm:$0xff] %v5509
      %5542 = vst [vmem:[#allocation2 + $0xd8] sm:$0xff] %v5510
      %5543 = vst [vmem:[#allocation2 + $0xe0] sm:$0xff] %v5511
      %5544 = vst [vmem:[#allocation2 + $0xe8] sm:$0xff] %v5512
      %5545 = vst [vmem:[#allocation2 + $0xf0] sm:$0xff] %v5513
      %5546 = vst [vmem:[#allocation2 + $0xf8] sm:$0xff] %v5514
      %v5547 = vld [vmem:[#allocation2] sm:$0xff]
      %v5548 = vld [vmem:[#allocation2 + $0x8] sm:$0xff]
      %v5549 = vld [vmem:[#allocation2 + $0x10] sm:$0xff]
      %v5550 = vld [vmem:[#allocation2 + $0x18] sm:$0xff]
      %v5551 = vld [vmem:[#allocation2 + $0x20] sm:$0xff]
      %v5552 = vld [vmem:[#allocation2 + $0x28] sm:$0xff]
      %v5553 = vld [vmem:[#allocation2 + $0x30] sm:$0xff]
      %v5554 = vld [vmem:[#allocation2 + $0x38] sm:$0xff]
      %v5555 = vld [vmem:[#allocation2 + $0x40] sm:$0xff]
      %v5556 = vld [vmem:[#allocation2 + $0x48] sm:$0xff]
      %v5557 = vld [vmem:[#allocation2 + $0x50] sm:$0xff]
      %v5558 = vld [vmem:[#allocation2 + $0x58] sm:$0xff]
      %v5559 = vld [vmem:[#allocation2 + $0x60] sm:$0xff]
      %v5560 = vld [vmem:[#allocation2 + $0x68] sm:$0xff]
      %v5561 = vld [vmem:[#allocation2 + $0x70] sm:$0xff]
      %v5562 = vld [vmem:[#allocation2 + $0x78] sm:$0xff]
      %v5563 = vld [vmem:[#allocation2 + $0x80] sm:$0xff]
      %v5564 = vld [vmem:[#allocation2 + $0x88] sm:$0xff]
      %v5565 = vld [vmem:[#allocation2 + $0x90] sm:$0xff]
      %v5566 = vld [vmem:[#allocation2 + $0x98] sm:$0xff]
      %v5567 = vld [vmem:[#allocation2 + $0xa0] sm:$0xff]
      %v5568 = vld [vmem:[#allocation2 + $0xa8] sm:$0xff]
      %v5569 = vld [vmem:[#allocation2 + $0xb0] sm:$0xff]
      %v5570 = vld [vmem:[#allocation2 + $0xb8] sm:$0xff]
      %v5571 = vld [vmem:[#allocation2 + $0xc0] sm:$0xff]
      %v5572 = vld [vmem:[#allocation2 + $0xc8] sm:$0xff]
      %v5573 = vld [vmem:[#allocation2 + $0xd0] sm:$0xff]
      %v5574 = vld [vmem:[#allocation2 + $0xd8] sm:$0xff]
      %v5575 = vld [vmem:[#allocation2 + $0xe0] sm:$0xff]
      %v5576 = vld [vmem:[#allocation2 + $0xe8] sm:$0xff]
      %v5577 = vld [vmem:[#allocation2 + $0xf0] sm:$0xff]
      %v5578 = vld [vmem:[#allocation2 + $0xf8] sm:$0xff]
      %v5579 = vpack.c.bf16 %v5548, %v5547
      %v5580 = vpack.c.bf16 %v5550, %v5549
      %v5581 = vpack.c.bf16 %v5552, %v5551
      %v5582 = vpack.c.bf16 %v5554, %v5553
      %v5583 = vpack.c.bf16 %v5556, %v5555
      %v5584 = vpack.c.bf16 %v5558, %v5557
      %v5585 = vpack.c.bf16 %v5560, %v5559
      %v5586 = vpack.c.bf16 %v5562, %v5561
      %v5587 = vpack.c.bf16 %v5564, %v5563
      %v5588 = vpack.c.bf16 %v5566, %v5565
      %v5589 = vpack.c.bf16 %v5568, %v5567
      %v5590 = vpack.c.bf16 %v5570, %v5569
      %v5591 = vpack.c.bf16 %v5572, %v5571
      %v5592 = vpack.c.bf16 %v5574, %v5573
      %v5593 = vpack.c.bf16 %v5576, %v5575
      %v5594 = vpack.c.bf16 %v5578, %v5577
      %v5611 = vunpack.c.l.b16 %v5579
      %v5612 = vunpack.c.h.b16 %v5579
      %v5613 = vunpack.c.l.b16 %v5580
      %v5614 = vunpack.c.h.b16 %v5580
      %v5615 = vunpack.c.l.b16 %v5581
      %v5616 = vunpack.c.h.b16 %v5581
      %v5617 = vunpack.c.l.b16 %v5582
      %v5618 = vunpack.c.h.b16 %v5582
      %v5619 = vunpack.c.l.b16 %v5583
      %v5620 = vunpack.c.h.b16 %v5583
      %v5621 = vunpack.c.l.b16 %v5584
      %v5622 = vunpack.c.h.b16 %v5584
      %v5623 = vunpack.c.l.b16 %v5585
      %v5624 = vunpack.c.h.b16 %v5585
      %v5625 = vunpack.c.l.b16 %v5586
      %v5626 = vunpack.c.h.b16 %v5586
      %v5627 = vunpack.c.l.b16 %v5587
      %v5628 = vunpack.c.h.b16 %v5587
      %v5629 = vunpack.c.l.b16 %v5588
      %v5630 = vunpack.c.h.b16 %v5588
      %v5631 = vunpack.c.l.b16 %v5589
      %v5632 = vunpack.c.h.b16 %v5589
      %v5633 = vunpack.c.l.b16 %v5590
      %v5634 = vunpack.c.h.b16 %v5590
      %v5635 = vunpack.c.l.b16 %v5591
      %v5636 = vunpack.c.h.b16 %v5591
      %v5637 = vunpack.c.l.b16 %v5592
      %v5638 = vunpack.c.h.b16 %v5592
      %v5639 = vunpack.c.l.b16 %v5593
      %v5640 = vunpack.c.h.b16 %v5593
      %v5641 = vunpack.c.l.b16 %v5594
      %v5642 = vunpack.c.h.b16 %v5594
      %v5643 = vpack.c.b16 %v5611, %v5611
      %v5644 = vpack.c.b16 %v5612, %v5612
      %v5645 = vpack.c.b16 %v5613, %v5613
      %v5646 = vpack.c.b16 %v5614, %v5614
      %v5647 = vpack.c.b16 %v5615, %v5615
      %v5648 = vpack.c.b16 %v5616, %v5616
      %v5649 = vpack.c.b16 %v5617, %v5617
      %v5650 = vpack.c.b16 %v5618, %v5618
      %v5651 = vpack.c.b16 %v5619, %v5619
      %v5652 = vpack.c.b16 %v5620, %v5620
      %v5653 = vpack.c.b16 %v5621, %v5621
      %v5654 = vpack.c.b16 %v5622, %v5622
      %v5655 = vpack.c.b16 %v5623, %v5623
      %v5656 = vpack.c.b16 %v5624, %v5624
      %v5657 = vpack.c.b16 %v5625, %v5625
      %v5658 = vpack.c.b16 %v5626, %v5626
      %v5659 = vpack.c.b16 %v5627, %v5627
      %v5660 = vpack.c.b16 %v5628, %v5628
      %v5661 = vpack.c.b16 %v5629, %v5629
      %v5662 = vpack.c.b16 %v5630, %v5630
      %v5663 = vpack.c.b16 %v5631, %v5631
      %v5664 = vpack.c.b16 %v5632, %v5632
      %v5665 = vpack.c.b16 %v5633, %v5633
      %v5666 = vpack.c.b16 %v5634, %v5634
      %v5667 = vpack.c.b16 %v5635, %v5635
      %v5668 = vpack.c.b16 %v5636, %v5636
      %v5669 = vpack.c.b16 %v5637, %v5637
      %v5670 = vpack.c.b16 %v5638, %v5638
      %v5671 = vpack.c.b16 %v5639, %v5639
      %v5672 = vpack.c.b16 %v5640, %v5640
      %v5673 = vpack.c.b16 %v5641, %v5641
      %v5674 = vpack.c.b16 %v5642, %v5642
      %5707 = vst [vmem:[%s235] sm:$0xf] %v5643
      %5708 = vst [vmem:[%s235 + $0x4] sm:$0xf] %v5644
      %5709 = vst [vmem:[%s235 + $0x8] sm:$0xf] %v5645
      %5710 = vst [vmem:[%s235 + $0xc] sm:$0xf] %v5646
      %5711 = vst [vmem:[%s235 + $0x10] sm:$0xf] %v5647
      %5712 = vst [vmem:[%s235 + $0x14] sm:$0xf] %v5648
      %5713 = vst [vmem:[%s235 + $0x18] sm:$0xf] %v5649
      %5714 = vst [vmem:[%s235 + $0x1c] sm:$0xf] %v5650
      %5715 = vst [vmem:[%s235 + $0x20] sm:$0xf] %v5651
      %5716 = vst [vmem:[%s235 + $0x24] sm:$0xf] %v5652
      %5717 = vst [vmem:[%s235 + $0x28] sm:$0xf] %v5653
      %5718 = vst [vmem:[%s235 + $0x2c] sm:$0xf] %v5654
      %5719 = vst [vmem:[%s235 + $0x30] sm:$0xf] %v5655
      %5720 = vst [vmem:[%s235 + $0x34] sm:$0xf] %v5656
      %5721 = vst [vmem:[%s235 + $0x38] sm:$0xf] %v5657
      %5722 = vst [vmem:[%s235 + $0x3c] sm:$0xf] %v5658
      %5723 = vst [vmem:[%s235 + $0x40] sm:$0xf] %v5659
      %5724 = vst [vmem:[%s235 + $0x44] sm:$0xf] %v5660
      %5725 = vst [vmem:[%s235 + $0x48] sm:$0xf] %v5661
      %5726 = vst [vmem:[%s235 + $0x4c] sm:$0xf] %v5662
      %5727 = vst [vmem:[%s235 + $0x50] sm:$0xf] %v5663
      %5728 = vst [vmem:[%s235 + $0x54] sm:$0xf] %v5664
      %5729 = vst [vmem:[%s235 + $0x58] sm:$0xf] %v5665
      %5730 = vst [vmem:[%s235 + $0x5c] sm:$0xf] %v5666
      %5731 = vst [vmem:[%s235 + $0x60] sm:$0xf] %v5667
      %5732 = vst [vmem:[%s235 + $0x64] sm:$0xf] %v5668
      %5733 = vst [vmem:[%s235 + $0x68] sm:$0xf] %v5669
      %5734 = vst [vmem:[%s235 + $0x6c] sm:$0xf] %v5670
      %5735 = vst [vmem:[%s235 + $0x70] sm:$0xf] %v5671
      %5736 = vst [vmem:[%s235 + $0x74] sm:$0xf] %v5672
      %5737 = vst [vmem:[%s235 + $0x78] sm:$0xf] %v5673
      %5738 = vst [vmem:[%s235 + $0x7c] sm:$0xf] %v5674
      %v5739 = vadd.f32 %v5547, %v5548
      %v5740 = vadd.f32 %v5739, %v5549
      %v5741 = vadd.f32 %v5740, %v5550
      %v5742 = vadd.f32 %v5741, %v5551
      %v5743 = vadd.f32 %v5742, %v5552
      %v5744 = vadd.f32 %v5743, %v5553
      %v5745 = vadd.f32 %v5744, %v5554
      %v5746 = vadd.f32 %v5745, %v5555
      %v5747 = vadd.f32 %v5746, %v5556
      %v5748 = vadd.f32 %v5747, %v5557
      %v5749 = vadd.f32 %v5748, %v5558
      %v5750 = vadd.f32 %v5749, %v5559
      %v5751 = vadd.f32 %v5750, %v5560
      %v5752 = vadd.f32 %v5751, %v5561
      %v5753 = vadd.f32 %v5752, %v5562
      %v5754 = vadd.f32 %v5753, %v5563
      %v5755 = vadd.f32 %v5754, %v5564
      %v5756 = vadd.f32 %v5755, %v5565
      %v5757 = vadd.f32 %v5756, %v5566
      %v5758 = vadd.f32 %v5757, %v5567
      %v5759 = vadd.f32 %v5758, %v5568
      %v5760 = vadd.f32 %v5759, %v5569
      %v5761 = vadd.f32 %v5760, %v5570
      %v5762 = vadd.f32 %v5761, %v5571
      %v5763 = vadd.f32 %v5762, %v5572
      %v5764 = vadd.f32 %v5763, %v5573
      %v5765 = vadd.f32 %v5764, %v5574
      %v5766 = vadd.f32 %v5765, %v5575
      %v5767 = vadd.f32 %v5766, %v5576
      %v5768 = vadd.f32 %v5767, %v5577
      %v5769 = vadd.f32 %v5768, %v5578
      %v5770 = vrot.slane %v5769, 4
      %v5771 = vadd.f32 %v5769, %v5770
      %v5772 = vrot.slane %v5771, 2
      %v5773 = vadd.f32 %v5771, %v5772
      %v5774 = vrot.slane %v5773, 1
      %v5775 = vadd.f32 %v5773, %v5774
      %5776 = vst [vmem:[%s238] sm:$0x1] %v5775
      %v5777 = vmul.f32 %v5547, %v5547
      %v5778 = vmul.f32 %v5548, %v5548
      %v5779 = vmul.f32 %v5549, %v5549
      %v5780 = vmul.f32 %v5550, %v5550
      %v5781 = vmul.f32 %v5551, %v5551
      %v5782 = vmul.f32 %v5552, %v5552
      %v5783 = vmul.f32 %v5553, %v5553
      %v5784 = vmul.f32 %v5554, %v5554
      %v5785 = vmul.f32 %v5555, %v5555
      %v5786 = vmul.f32 %v5556, %v5556
      %v5787 = vmul.f32 %v5557, %v5557
      %v5788 = vmul.f32 %v5558, %v5558
      %v5789 = vmul.f32 %v5559, %v5559
      %v5790 = vmul.f32 %v5560, %v5560
      %v5791 = vmul.f32 %v5561, %v5561
      %v5792 = vmul.f32 %v5562, %v5562
      %v5793 = vmul.f32 %v5563, %v5563
      %v5794 = vmul.f32 %v5564, %v5564
      %v5795 = vmul.f32 %v5565, %v5565
      %v5796 = vmul.f32 %v5566, %v5566
      %v5797 = vmul.f32 %v5567, %v5567
      %v5798 = vmul.f32 %v5568, %v5568
      %v5799 = vmul.f32 %v5569, %v5569
      %v5800 = vmul.f32 %v5570, %v5570
      %v5801 = vmul.f32 %v5571, %v5571
      %v5802 = vmul.f32 %v5572, %v5572
      %v5803 = vmul.f32 %v5573, %v5573
      %v5804 = vmul.f32 %v5574, %v5574
      %v5805 = vmul.f32 %v5575, %v5575
      %v5806 = vmul.f32 %v5576, %v5576
      %v5807 = vmul.f32 %v5577, %v5577
      %v5808 = vmul.f32 %v5578, %v5578
      %v5809 = vadd.f32 %v5777, %v5778
      %v5810 = vadd.f32 %v5809, %v5779
      %v5811 = vadd.f32 %v5810, %v5780
      %v5812 = vadd.f32 %v5811, %v5781
      %v5813 = vadd.f32 %v5812, %v5782
      %v5814 = vadd.f32 %v5813, %v5783
      %v5815 = vadd.f32 %v5814, %v5784
      %v5816 = vadd.f32 %v5815, %v5785
      %v5817 = vadd.f32 %v5816, %v5786
      %v5818 = vadd.f32 %v5817, %v5787
      %v5819 = vadd.f32 %v5818, %v5788
      %v5820 = vadd.f32 %v5819, %v5789
      %v5821 = vadd.f32 %v5820, %v5790
      %v5822 = vadd.f32 %v5821, %v5791
      %v5823 = vadd.f32 %v5822, %v5792
      %v5824 = vadd.f32 %v5823, %v5793
      %v5825 = vadd.f32 %v5824, %v5794
      %v5826 = vadd.f32 %v5825, %v5795
      %v5827 = vadd.f32 %v5826, %v5796
      %v5828 = vadd.f32 %v5827, %v5797
      %v5829 = vadd.f32 %v5828, %v5798
      %v5830 = vadd.f32 %v5829, %v5799
      %v5831 = vadd.f32 %v5830, %v5800
      %v5832 = vadd.f32 %v5831, %v5801
      %v5833 = vadd.f32 %v5832, %v5802
      %v5834 = vadd.f32 %v5833, %v5803
      %v5835 = vadd.f32 %v5834, %v5804
      %v5836 = vadd.f32 %v5835, %v5805
      %v5837 = vadd.f32 %v5836, %v5806
      %v5838 = vadd.f32 %v5837, %v5807
      %v5839 = vadd.f32 %v5838, %v5808
      %v5840 = vrot.slane %v5839, 4
      %v5841 = vadd.f32 %v5839, %v5840
      %v5842 = vrot.slane %v5841, 2
      %v5843 = vadd.f32 %v5841, %v5842
      %v5844 = vrot.slane %v5843, 1
      %v5845 = vadd.f32 %v5843, %v5844
      %5846 = vst [vmem:[%s241] sm:$0x1] %v5845
      %p5847 = scmp.lt.s32.totalorder %s17, 1
      %s5848 = scalar_select %p5847, %s17, 1
      %s5849 = smul.addr %s5848, 32
      %s5850 = smul.addr %s5849, 4
      %s5851 = scalar_lea.vmem %s3, %s5850
      %p5852 = scmp.lt.s32.totalorder %s17, 1
      %s5853 = scalar_select %p5852, %s17, 1
      %s5854 = scalar_lea.vmem %s4, %s5853
      %p5855 = scmp.lt.s32.totalorder %s17, 1
      %s5856 = scalar_select %p5855, %s17, 1
      %s5857 = scalar_lea.vmem %s5, %s5856
      // Predicated region
      $region33: #{aspp_module_forward.2} parent=31 // pred_check
        %p5858 = pneg %p103
      $region34: #{aspp_module_forward.2} parent=31 // pred_check_branch
        %5860 = sbr.rel (%p5858) target = $region36
      $region35: #{aspp_module_forward.2} parent=31 // pred_region
        _
      $region36: #{aspp_module_forward.2} parent=31 // pred_fallthru
        _
      // Predicated region
      $region37: #{aspp_module_forward.2} parent=31 // pred_check
        %p5861 = pneg %p129
      $region38: #{aspp_module_forward.2} parent=31 // pred_check_branch
        %5863 = sbr.rel (%p5861) target = $region40
      $region39: #{aspp_module_forward.2} parent=31 // pred_region
        _
      $region40: #{aspp_module_forward.2} parent=31 // pred_fallthru
        _
      // Predicated region
      $region41: #{aspp_module_forward.2} parent=31 // pred_check
        %p5864 = pneg %p155
      $region42: #{aspp_module_forward.2} parent=31 // pred_check_branch
        %5866 = sbr.rel (%p5864) target = $region44
      $region43: #{aspp_module_forward.2} parent=31 // pred_region
        _
      $region44: #{aspp_module_forward.2} parent=31 // pred_fallthru
        _
    $region32: #{aspp_module_forward.2} parent=5 // pred_fallthru
      _
    %p5867 = scmp.le.s32.totalorder 2, %s12
    // Predicated region
    $region45: #{aspp_module_forward.2} parent=5 // pred_check
      %p5868 = pneg %p5867
    $region46: #{aspp_module_forward.2} parent=5 // pred_check_branch
      %5870 = sbr.rel (%p5868) target = $region48
    $region47: #{aspp_module_forward.2} parent=5 // pred_region
      %s5871 = ssub.s32 %s12, 2
      // Predicated region
      $region49: #{aspp_module_forward.2} parent=47 // pred_check
        %p5872 = pneg %p109
      $region50: #{aspp_module_forward.2} parent=47 // pred_check_branch
        %5874 = sbr.rel (%p5872) target = $region52
      $region51: #{aspp_module_forward.2} parent=47 // pred_region
        %p5875 = scmp.lt.s32.totalorder %s18, 1
        %s5876 = scalar_select %p5875, %s18, 1
        %s5877 = smul.addr %s5876, 32
        %s5878 = smul.addr %s5877, 4
        %s5879 = scalar_lea.vmem %s3, %s5878
      $region52: #{aspp_module_forward.2} parent=47 // pred_fallthru
        _
      // Predicated region
      $region53: #{aspp_module_forward.2} parent=47 // pred_check
        %p5880 = pneg %p135
      $region54: #{aspp_module_forward.2} parent=47 // pred_check_branch
        %5882 = sbr.rel (%p5880) target = $region56
      $region55: #{aspp_module_forward.2} parent=47 // pred_region
        %p5883 = scmp.lt.s32.totalorder %s18, 1
        %s5884 = scalar_select %p5883, %s18, 1
        %s5885 = scalar_lea.vmem %s4, %s5884
      $region56: #{aspp_module_forward.2} parent=47 // pred_fallthru
        _
      // Predicated region
      $region57: #{aspp_module_forward.2} parent=47 // pred_check
        %p5886 = pneg %p161
      $region58: #{aspp_module_forward.2} parent=47 // pred_check_branch
        %5888 = sbr.rel (%p5886) target = $region60
      $region59: #{aspp_module_forward.2} parent=47 // pred_region
        %p5889 = scmp.lt.s32.totalorder %s18, 1
        %s5890 = scalar_select %p5889, %s18, 1
        %s5891 = scalar_lea.vmem %s5, %s5890
      $region60: #{aspp_module_forward.2} parent=47 // pred_fallthru
        _
    $region48: #{aspp_module_forward.2} parent=5 // pred_fallthru
      _
  $region6: #{aspp_module_forward.2} parent=0 // loop_footer
    %s16 = sadd.s32 1, %s12
  $region7: #{aspp_module_forward.2} parent=0 // loop_footer_branch
    %11 = sbr.rel target = $region3
  $region8: #{aspp_module_forward.2} parent=0 // loop_exit
    _

</llo_original>
